<compile_context>
chip_gen: v7x
topology: tpu7x:2x2x1
jax: 0.10.0
libtpu: 0.0.40
codegen_flags: <defaults>
</compile_context>

<pallas_src>
import functools

import jax
import jax.numpy as jnp
from jax import lax
from jax.experimental import pallas as pl
from jax.experimental.pallas import tpu as pltpu


def _layernorm(x, gamma, beta, eps=1e-5):
    # x: (T, E) f32; gamma/beta: (1, E). PyTorch LayerNorm: biased variance,
    # eps inside the sqrt. Fused as (x - mean) * (gamma * rstd) + beta.
    mean = jnp.mean(x, axis=-1, keepdims=True)
    var = jnp.mean((x - mean) ** 2, axis=-1, keepdims=True)
    rstd = lax.rsqrt(var + eps)
    return (x - mean) * (gamma * rstd) + beta


def encoder_block_kernel(
    x_bf_ref, x_res_ref,
    wq_ref, bq_ref, wk_ref, bk_ref, wv_ref, bv_ref, wo_ref, bo_ref,
    g1_ref, be1_ref,
    w1_ref, b1_ref, w2_ref, b2_ref,
    g2_ref, be2_ref,
    o_ref,
    k_scr, v_scr, q_scr, ctx_scr,
    *, num_heads, tq, head_group,
):
    qi = pl.program_id(1)
    S = x_bf_ref.shape[1]
    E = x_bf_ref.shape[2]
    H = num_heads
    D = E // H
    HG = head_group
    scale = D ** (-0.5)
    bf16 = jnp.bfloat16
    f32 = jnp.float32

    # --- K/V projections: once per batch element, head-major bf16 VMEM cache ---
    @pl.when(qi == 0)
    def _():
        xf = x_bf_ref[0]                                             # (S, E) bf16
        for h in range(H):
            kh = jnp.dot(xf, wk_ref[h], preferred_element_type=f32) + bk_ref[h]
            vh = jnp.dot(xf, wv_ref[h], preferred_element_type=f32) + bv_ref[h]
            k_scr[h] = kh.astype(bf16)                               # (S, D)
            v_scr[h] = vh.astype(bf16)                               # (S, D)

    # --- query tile (TQ rows of bf16 x) ---
    row0 = qi * tq
    if tq % 16 == 0:
        row0 = pl.multiple_of(row0, 16)
    elif tq % 8 == 0:
        row0 = pl.multiple_of(row0, 8)
    xq = x_bf_ref[0, pl.ds(row0, tq), :]                             # (TQ, E) bf16

    # Q projection, head-major; 1/sqrt(D) applied to q (TQ*E) not scores (H*TQ*S).
    for h in range(H):
        qh = jnp.dot(xq, wq_ref[h], preferred_element_type=f32) + bq_ref[h]
        q_scr[h] = (qh * scale).astype(bf16)                         # (TQ, D)

    # --- attention: head-batched MXU matmuls on head-major operands ---
    # TODO(synk): for very large S add flash-style online-softmax K tiling so
    # the (HG, TQ, S) score block is bounded by a K tile as well.
    for g in range(H // HG):
        h0 = g * HG
        qg = q_scr[h0:h0 + HG]                                       # (HG, TQ, D) bf16
        kg = k_scr[h0:h0 + HG]                                       # (HG, S, D) bf16
        vg = v_scr[h0:h0 + HG]                                       # (HG, S, D) bf16
        s = lax.dot_general(qg, kg, (((2,), (2,)), ((0,), (0,))),
                            preferred_element_type=f32)              # (HG, TQ, S)
        m = jnp.max(s, axis=-1, keepdims=True)
        p = jnp.exp(s - m)                                           # f32
        l = jnp.sum(p, axis=-1, keepdims=True)                       # (HG, TQ, 1)
        ctx = lax.dot_general(p.astype(bf16), vg,
                              (((2,), (1,)), ((0,), (0,))),
                              preferred_element_type=f32)            # (HG, TQ, D)
        inv_l = pl.reciprocal(l, approx=False)                       # exact, EUP
        for hh in range(HG):
            h = h0 + hh
            # write each head straight into its lane slot; frees its values
            # immediately (no concatenate, no per-tile transpose).
            ctx_scr[:, h * D:(h + 1) * D] = (ctx[hh] * inv_l[hh]).astype(bf16)

    attn_out = jnp.dot(ctx_scr[...], wo_ref[...],
                       preferred_element_type=f32) + bo_ref[...]     # (TQ, E) f32

    # --- residual (exact f32 x) + LayerNorm 1 ---
    x1 = _layernorm(attn_out + x_res_ref[0], g1_ref[...], be1_ref[...])

    # --- feed-forward ---
    hmid = jnp.dot(x1.astype(bf16), w1_ref[...],
                   preferred_element_type=f32) + b1_ref[...]
    hmid = jnp.maximum(hmid, 0.0)
    fc_out = jnp.dot(hmid.astype(bf16), w2_ref[...],
                     preferred_element_type=f32) + b2_ref[...]

    # --- residual + LayerNorm 2 (f32) ---
    x2 = _layernorm(fc_out + x1, g2_ref[...], be2_ref[...])

    o_ref[0] = x2.astype(o_ref.dtype)


def _pick_tq(S):
    # Cap at 128: matches the v5e 128x128 MXU M-dim and keeps the live
    # (TQ,S) score / (TQ,F) FFN blocks small enough for v7x's 64 MiB VMEM.
    # TODO(synk): allow TQ=256 on v6e when the VMEM budget is verified.
    for cand in (128, 64, 32, 16, 8):
        if S >= cand and S % cand == 0:
            return cand
    return S


def _pick_head_group(H, tq, S, budget_bytes=4 << 20):
    # Largest divisor of H whose (HG, TQ, S) f32 score block fits the budget.
    hg = 1
    for cand in range(1, H + 1):
        if H % cand == 0 and cand * tq * S * 4 <= budget_bytes:
            hg = cand
    return hg


def _vmem_capacity_bytes():
    try:
        return int(pltpu.get_tpu_info().vmem_capacity_bytes)
    except Exception:
        return 64 << 20      # conservative default: v7x per-core VMEM


def _vmem_limit_bytes(S, E, F, H, tq, hg, single_buffer_weights):
    f32b, bf16b = 4, 2
    D = E // H
    wbuf = 1 if single_buffer_weights else 2
    weights = (4 * E * E + 2 * E * F) * bf16b * wbuf       # bf16 matmul weights
    small = (8 * E + F) * f32b * 2                         # biases + LN params
    x_bf = S * E * bf16b * 2                               # bf16 full-seq x block
    x_res = tq * E * f32b * 2                              # f32 residual tile
    out = tq * E * f32b * 2                                # output tile
    scratch = (2 * S * E + 2 * tq * E) * bf16b             # K, V, Q, ctx caches
    live = (2 * hg * tq * S + tq * F + 8 * tq * E + 2 * S * D) * f32b
    total = weights + small + x_bf + x_res + out + scratch + live
    cap = _vmem_capacity_bytes() - (4 << 20)               # headroom
    return int(min(cap, max(total + (16 << 20), 32 << 20)))


def _split_heads(w, b, H, bf16):
    # (E, E) weight -> (H, E, D) head-major; (1, E) bias -> (H, 1, D) f32.
    E = w.shape[0]
    D = E // H
    w_h = w.reshape(E, H, D).transpose(1, 0, 2).astype(bf16)
    b_h = b.reshape(1, H, D).transpose(1, 0, 2)
    return w_h, b_h


def encoder_block(x, params, num_heads, *, tq=None, single_buffer_weights=True):
    B, S, E = x.shape
    H = num_heads
    assert E % H == 0
    D = E // H
    F = params['w1'].shape[1]
    if tq is None:
        tq = _pick_tq(S)
    assert S % tq == 0
    nq = S // tq
    hg = _pick_head_group(H, tq, S)

    bf16 = jnp.bfloat16
    # bf16 x feeds every matmul (halves x DMA/VMEM); f32 x tile keeps the
    # residual/LayerNorm path exact.
    x_bf = x.astype(bf16)

    # Q/K/V weights pre-split head-major in the wrapper so the kernel never
    # lane-slices at h*D offsets; all matmul weights in bf16.
    wq, bq = _split_heads(params['wq'], params['bq'], H, bf16)
    wk, bk = _split_heads(params['wk'], params['bk'], H, bf16)
    wv, bv = _split_heads(params['wv'], params['bv'], H, bf16)
    wo = params['wo'].astype(bf16)
    w1 = params['w1'].astype(bf16)
    w2 = params['w2'].astype(bf16)

    # Weight/bias blocks never change across the grid -> single-buffer them.
    wkw = dict(pipeline_mode=pl.Buffered(1)) if single_buffer_weights else {}

    def wspec(shape):
        if len(shape) == 2:
            idx = lambda b, qi: (0, 0)
        else:
            idx = lambda b, qi: (0, 0, 0)
        return pl.BlockSpec(shape, idx, **wkw)

    # NOTE: for production E (multiple of 128) the (1, TQ, E) output block is
    # lane-dense; toy E (e.g. 32) falls into masked partial stores.
    in_specs = [
        pl.BlockSpec((1, S, E), lambda b, qi: (b, 0, 0)),    # x (bf16, full seq)
        pl.BlockSpec((1, tq, E), lambda b, qi: (b, qi, 0)),  # x (f32, residual tile)
        wspec((H, E, D)), wspec((H, 1, D)),                  # wq, bq (head-major)
        wspec((H, E, D)), wspec((H, 1, D)),                  # wk, bk
        wspec((H, E, D)), wspec((H, 1, D)),                  # wv, bv
        wspec((E, E)), wspec((1, E)),                        # wo, bo
        wspec((1, E)), wspec((1, E)),                        # ln1 gamma, beta
        wspec((E, F)), wspec((1, F)),                        # w1, b1
        wspec((F, E)), wspec((1, E)),                        # w2, b2
        wspec((1, E)), wspec((1, E)),                        # ln2 gamma, beta
    ]
    out_specs = pl.BlockSpec((1, tq, E), lambda b, qi: (b, qi, 0))

    kernel = functools.partial(encoder_block_kernel, num_heads=H, tq=tq,
                               head_group=hg)

    # TODO(synk): for B == 1 deployments on v7x, add an explicit core-split
    # grid axis over query tiles so both TensorCores stay busy.
    return pl.pallas_call(
        kernel,
        out_shape=jax.ShapeDtypeStruct((B, S, E), x.dtype),
        grid_spec=pltpu.PrefetchScalarGridSpec(
            num_scalar_prefetch=0,
            grid=(B, nq),
            in_specs=in_specs,
            out_specs=out_specs,
            scratch_shapes=[
                pltpu.VMEM((H, S, D), bf16),    # K cache (head-major, per batch)
                pltpu.VMEM((H, S, D), bf16),    # V cache
                pltpu.VMEM((H, tq, D), bf16),   # Q (head-major, per tile)
                pltpu.VMEM((tq, E), bf16),      # assembled attention context
            ],
        ),
        compiler_params=pltpu.CompilerParams(
            dimension_semantics=("parallel", "arbitrary"),
            vmem_limit_bytes=_vmem_limit_bytes(S, E, F, H, tq, hg,
                                               single_buffer_weights),
        ),
    )(
        x_bf, x,
        wq, bq, wk, bk, wv, bv, wo, params['bo'],
        params['g1'], params['be1'],
        w1, params['b1'], w2, params['b2'],
        params['g2'], params['be2'],
    )


def encoder_block_ref(x, params, num_heads):
    # Pure-JAX f32 reference mirroring the PyTorch forward pass.
    B, S, E = x.shape
    H = num_heads
    D = E // H
    scale = D ** (-0.5)

    def ln(v, g, b, eps=1e-5):
        m = jnp.mean(v, axis=-1, keepdims=True)
        var = jnp.mean((v - m) ** 2, axis=-1, keepdims=True)
        return (v - m) / jnp.sqrt(var + eps) * g + b

    q = x @ params['wq'] + params['bq']
    k = x @ params['wk'] + params['bk']
    v = x @ params['wv'] + params['bv']
    q = q.reshape(B, S, H, D).transpose(0, 2, 1, 3)
    k = k.reshape(B, S, H, D).transpose(0, 2, 1, 3)
    v = v.reshape(B, S, H, D).transpose(0, 2, 1, 3)
    att = jax.nn.softmax(jnp.einsum('bhqd,bhkd->bhqk', q, k) * scale, axis=-1)
    out = jnp.einsum('bhqk,bhkd->bhqd', att, v).transpose(0, 2, 1, 3).reshape(B, S, E)
    attn_out = out @ params['wo'] + params['bo']
    x1 = ln(attn_out + x, params['g1'], params['be1'])
    h = jnp.maximum(x1 @ params['w1'] + params['b1'], 0.0)
    fc_out = h @ params['w2'] + params['b2']
    return ln(fc_out + x1, params['g2'], params['be2'])


def init_params(key, embed_dim, fc_hidden_dim):
    E, F = embed_dim, fc_hidden_dim
    keys = jax.random.split(key, 12)
    s = 0.05
    # Linear weights stored pre-transposed as (in, out); biases as (1, out).
    return {
        'wq': jax.random.normal(keys[0], (E, E), jnp.float32) * s,
        'bq': jax.random.normal(keys[1], (1, E), jnp.float32) * s,
        'wk': jax.random.normal(keys[2], (E, E), jnp.float32) * s,
        'bk': jax.random.normal(keys[3], (1, E), jnp.float32) * s,
        'wv': jax.random.normal(keys[4], (E, E), jnp.float32) * s,
        'bv': jax.random.normal(keys[5], (1, E), jnp.float32) * s,
        'wo': jax.random.normal(keys[6], (E, E), jnp.float32) * s,
        'bo': jax.random.normal(keys[7], (1, E), jnp.float32) * s,
        'g1': jnp.ones((1, E), jnp.float32),
        'be1': jnp.zeros((1, E), jnp.float32),
        'w1': jax.random.normal(keys[8], (E, F), jnp.float32) * s,
        'b1': jax.random.normal(keys[9], (1, F), jnp.float32) * s,
        'w2': jax.random.normal(keys[10], (F, E), jnp.float32) * s,
        'b2': jax.random.normal(keys[11], (1, E), jnp.float32) * s,
        'g2': jnp.ones((1, E), jnp.float32),
        'be2': jnp.zeros((1, E), jnp.float32),
    }


if __name__ == "__main__":
    B, S, E = 2, 8, 32
    NUM_HEADS = 4
    FC_HIDDEN = 4 * E  # fc_dim=None default

    key = jax.random.PRNGKey(0)
    kx, kp = jax.random.split(key)
    x = jax.random.normal(kx, (B, S, E), jnp.float32)
    params = init_params(kp, E, FC_HIDDEN)

    try:
        out = jax.block_until_ready(encoder_block(x, params, NUM_HEADS))
    except Exception:
        # Fallback: if this jax version rejects pl.Buffered(1) weight specs,
        # rerun with default (double-buffered) weight specs.
        out = jax.block_until_ready(
            encoder_block(x, params, NUM_HEADS, single_buffer_weights=False))

    ref = encoder_block_ref(x, params, NUM_HEADS)
    assert out.shape == (B, S, E)
    # bf16 MXU inputs (f32 accumulation) -> compare against f32 reference with
    # a bf16-appropriate tolerance.
    max_err = float(jnp.max(jnp.abs(out - ref)))
    assert jnp.allclose(out, ref, atol=2e-2, rtol=2e-2), \
        f"mismatch vs reference (max abs err {max_err})"

    print("KERNEL_OK")
</pallas_src>

<mosaic_0001>
module attributes {stable_mosaic.version = 11 : i64} {
  func.func @encoder_block_kernel(%arg0: i32, %arg1: i32, %arg2: memref<1x8x32xbf16, #tpu.memory_space<vmem>>, %arg3: memref<1x8x32xf32, #tpu.memory_space<vmem>>, %arg4: memref<4x32x8xbf16, #tpu.memory_space<vmem>>, %arg5: memref<4x1x8xf32, #tpu.memory_space<vmem>>, %arg6: memref<4x32x8xbf16, #tpu.memory_space<vmem>>, %arg7: memref<4x1x8xf32, #tpu.memory_space<vmem>>, %arg8: memref<4x32x8xbf16, #tpu.memory_space<vmem>>, %arg9: memref<4x1x8xf32, #tpu.memory_space<vmem>>, %arg10: memref<32x32xbf16, #tpu.memory_space<vmem>>, %arg11: memref<1x32xf32, #tpu.memory_space<vmem>>, %arg12: memref<1x32xf32, #tpu.memory_space<vmem>>, %arg13: memref<1x32xf32, #tpu.memory_space<vmem>>, %arg14: memref<32x128xbf16, #tpu.memory_space<vmem>>, %arg15: memref<1x128xf32, #tpu.memory_space<vmem>>, %arg16: memref<128x32xbf16, #tpu.memory_space<vmem>>, %arg17: memref<1x32xf32, #tpu.memory_space<vmem>>, %arg18: memref<1x32xf32, #tpu.memory_space<vmem>>, %arg19: memref<1x32xf32, #tpu.memory_space<vmem>>, %arg20: memref<1x8x32xf32, #tpu.memory_space<vmem>>, %arg21: memref<4x8x8xbf16, #tpu.memory_space<vmem>>, %arg22: memref<4x8x8xbf16, #tpu.memory_space<vmem>>, %arg23: memref<4x8x8xbf16, #tpu.memory_space<vmem>>, %arg24: memref<8x32xbf16, #tpu.memory_space<vmem>>) attributes {dimension_semantics = [#tpu.dimension_semantics<parallel>, #tpu.dimension_semantics<arbitrary>], iteration_bounds = array<i64: 2, 1>, scalar_prefetch = 0 : i64, scratch_operands = 4 : i64, tpu.core_type = #tpu.core_type<tc>, window_params = [{transform_indices = @transform_0, window_bounds = array<i64: 1, 8, 32>}, {transform_indices = @transform_1, window_bounds = array<i64: 1, 8, 32>}, {pipeline_mode = #tpu.pipeline_mode<synchronous>, transform_indices = @transform_2, window_bounds = array<i64: 4, 32, 8>}, {pipeline_mode = #tpu.pipeline_mode<synchronous>, transform_indices = @transform_3, window_bounds = array<i64: 4, 1, 8>}, {pipeline_mode = #tpu.pipeline_mode<synchronous>, transform_indices = @transform_4, window_bounds = array<i64: 4, 32, 8>}, {pipeline_mode = #tpu.pipeline_mode<synchronous>, transform_indices = @transform_5, window_bounds = array<i64: 4, 1, 8>}, {pipeline_mode = #tpu.pipeline_mode<synchronous>, transform_indices = @transform_6, window_bounds = array<i64: 4, 32, 8>}, {pipeline_mode = #tpu.pipeline_mode<synchronous>, transform_indices = @transform_7, window_bounds = array<i64: 4, 1, 8>}, {pipeline_mode = #tpu.pipeline_mode<synchronous>, transform_indices = @transform_8, window_bounds = array<i64: 32, 32>}, {pipeline_mode = #tpu.pipeline_mode<synchronous>, transform_indices = @transform_9, window_bounds = array<i64: 1, 32>}, {pipeline_mode = #tpu.pipeline_mode<synchronous>, transform_indices = @transform_10, window_bounds = array<i64: 1, 32>}, {pipeline_mode = #tpu.pipeline_mode<synchronous>, transform_indices = @transform_11, window_bounds = array<i64: 1, 32>}, {pipeline_mode = #tpu.pipeline_mode<synchronous>, transform_indices = @transform_12, window_bounds = array<i64: 32, 128>}, {pipeline_mode = #tpu.pipeline_mode<synchronous>, transform_indices = @transform_13, window_bounds = array<i64: 1, 128>}, {pipeline_mode = #tpu.pipeline_mode<synchronous>, transform_indices = @transform_14, window_bounds = array<i64: 128, 32>}, {pipeline_mode = #tpu.pipeline_mode<synchronous>, transform_indices = @transform_15, window_bounds = array<i64: 1, 32>}, {pipeline_mode = #tpu.pipeline_mode<synchronous>, transform_indices = @transform_16, window_bounds = array<i64: 1, 32>}, {pipeline_mode = #tpu.pipeline_mode<synchronous>, transform_indices = @transform_17, window_bounds = array<i64: 1, 32>}, {transform_indices = @transform_18, window_bounds = array<i64: 1, 8, 32>}]} {
    %c0_i32 = arith.constant 0 : i32
    %0 = arith.cmpi eq, %arg1, %c0_i32 : i32
    %1 = arith.extui %0 : i1 to i32
    %c0_i32_0 = arith.constant 0 : i32
    %2 = arith.cmpi ne, %1, %c0_i32_0 : i32
    scf.if %2 {
      %c0_102 = arith.constant 0 : index
      %c0_103 = arith.constant 0 : index
      %c0_104 = arith.constant 0 : index
      %181 = vector.load %arg2[%c0_102, %c0_103, %c0_104] : memref<1x8x32xbf16, #tpu.memory_space<vmem>>, vector<1x8x32xbf16>
      %182 = vector.shape_cast %181 : vector<1x8x32xbf16> to vector<8x32xbf16>
      %c0_105 = arith.constant 0 : index
      %c0_106 = arith.constant 0 : index
      %c0_107 = arith.constant 0 : index
      %183 = vector.load %arg6[%c0_105, %c0_106, %c0_107] : memref<4x32x8xbf16, #tpu.memory_space<vmem>>, vector<1x32x8xbf16>
      %184 = vector.shape_cast %183 : vector<1x32x8xbf16> to vector<32x8xbf16>
      %cst_108 = arith.constant dense<0.000000e+00> : vector<8x8xf32>
      %185 = tpu.matmul %182, %184, %cst_108 {dimension_numbers = #tpu.dot_dimension_numbers<[1], [0], [0], [1], [0, 0, 1, 1], [], []>} : vector<8x32xbf16>, vector<32x8xbf16>, vector<8x8xf32> -> vector<8x8xf32>
      %c0_109 = arith.constant 0 : index
      %c0_110 = arith.constant 0 : index
      %c0_111 = arith.constant 0 : index
      %186 = vector.load %arg7[%c0_109, %c0_110, %c0_111] : memref<4x1x8xf32, #tpu.memory_space<vmem>>, vector<1x1x8xf32>
      %187 = vector.shape_cast %186 : vector<1x1x8xf32> to vector<1x8xf32>
      %188 = vector.broadcast %187 : vector<1x8xf32> to vector<8x8xf32>
      %189 = arith.addf %185, %188 : vector<8x8xf32>
      %c0_112 = arith.constant 0 : index
      %c0_113 = arith.constant 0 : index
      %c0_114 = arith.constant 0 : index
      %190 = vector.load %arg8[%c0_112, %c0_113, %c0_114] : memref<4x32x8xbf16, #tpu.memory_space<vmem>>, vector<1x32x8xbf16>
      %191 = vector.shape_cast %190 : vector<1x32x8xbf16> to vector<32x8xbf16>
      %cst_115 = arith.constant dense<0.000000e+00> : vector<8x8xf32>
      %192 = tpu.matmul %182, %191, %cst_115 {dimension_numbers = #tpu.dot_dimension_numbers<[1], [0], [0], [1], [0, 0, 1, 1], [], []>} : vector<8x32xbf16>, vector<32x8xbf16>, vector<8x8xf32> -> vector<8x8xf32>
      %c0_116 = arith.constant 0 : index
      %c0_117 = arith.constant 0 : index
      %c0_118 = arith.constant 0 : index
      %193 = vector.load %arg9[%c0_116, %c0_117, %c0_118] : memref<4x1x8xf32, #tpu.memory_space<vmem>>, vector<1x1x8xf32>
      %194 = vector.shape_cast %193 : vector<1x1x8xf32> to vector<1x8xf32>
      %195 = vector.broadcast %194 : vector<1x8xf32> to vector<8x8xf32>
      %196 = arith.addf %192, %195 : vector<8x8xf32>
      %197 = arith.truncf %189 : vector<8x8xf32> to vector<8x8xbf16>
      %c0_119 = arith.constant 0 : index
      %c0_120 = arith.constant 0 : index
      %c0_121 = arith.constant 0 : index
      %198 = vector.load %arg21[%c0_119, %c0_120, %c0_121] : memref<4x8x8xbf16, #tpu.memory_space<vmem>>, vector<1x8x8xbf16>
      %199 = vector.shape_cast %198 : vector<1x8x8xbf16> to vector<8x8xbf16>
      %200 = vector.shape_cast %197 : vector<8x8xbf16> to vector<1x8x8xbf16>
      tpu.vector_store %arg21[%c0_119, %c0_120, %c0_121], %200 {strides = array<i32>} : memref<4x8x8xbf16, #tpu.memory_space<vmem>>, vector<1x8x8xbf16>,
      %201 = arith.truncf %196 : vector<8x8xf32> to vector<8x8xbf16>
      %c0_122 = arith.constant 0 : index
      %c0_123 = arith.constant 0 : index
      %c0_124 = arith.constant 0 : index
      %202 = vector.load %arg22[%c0_122, %c0_123, %c0_124] : memref<4x8x8xbf16, #tpu.memory_space<vmem>>, vector<1x8x8xbf16>
      %203 = vector.shape_cast %202 : vector<1x8x8xbf16> to vector<8x8xbf16>
      %204 = vector.shape_cast %201 : vector<8x8xbf16> to vector<1x8x8xbf16>
      tpu.vector_store %arg22[%c0_122, %c0_123, %c0_124], %204 {strides = array<i32>} : memref<4x8x8xbf16, #tpu.memory_space<vmem>>, vector<1x8x8xbf16>,
      %c1_125 = arith.constant 1 : index
      %c0_126 = arith.constant 0 : index
      %c0_127 = arith.constant 0 : index
      %205 = vector.load %arg6[%c1_125, %c0_126, %c0_127] : memref<4x32x8xbf16, #tpu.memory_space<vmem>>, vector<1x32x8xbf16>
      %206 = vector.shape_cast %205 : vector<1x32x8xbf16> to vector<32x8xbf16>
      %cst_128 = arith.constant dense<0.000000e+00> : vector<8x8xf32>
      %207 = tpu.matmul %182, %206, %cst_128 {dimension_numbers = #tpu.dot_dimension_numbers<[1], [0], [0], [1], [0, 0, 1, 1], [], []>} : vector<8x32xbf16>, vector<32x8xbf16>, vector<8x8xf32> -> vector<8x8xf32>
      %c1_129 = arith.constant 1 : index
      %c0_130 = arith.constant 0 : index
      %c0_131 = arith.constant 0 : index
      %208 = vector.load %arg7[%c1_129, %c0_130, %c0_131] : memref<4x1x8xf32, #tpu.memory_space<vmem>>, vector<1x1x8xf32>
      %209 = vector.shape_cast %208 : vector<1x1x8xf32> to vector<1x8xf32>
      %210 = vector.broadcast %209 : vector<1x8xf32> to vector<8x8xf32>
      %211 = arith.addf %207, %210 : vector<8x8xf32>
      %c1_132 = arith.constant 1 : index
      %c0_133 = arith.constant 0 : index
      %c0_134 = arith.constant 0 : index
      %212 = vector.load %arg8[%c1_132, %c0_133, %c0_134] : memref<4x32x8xbf16, #tpu.memory_space<vmem>>, vector<1x32x8xbf16>
      %213 = vector.shape_cast %212 : vector<1x32x8xbf16> to vector<32x8xbf16>
      %cst_135 = arith.constant dense<0.000000e+00> : vector<8x8xf32>
      %214 = tpu.matmul %182, %213, %cst_135 {dimension_numbers = #tpu.dot_dimension_numbers<[1], [0], [0], [1], [0, 0, 1, 1], [], []>} : vector<8x32xbf16>, vector<32x8xbf16>, vector<8x8xf32> -> vector<8x8xf32>
      %c1_136 = arith.constant 1 : index
      %c0_137 = arith.constant 0 : index
      %c0_138 = arith.constant 0 : index
      %215 = vector.load %arg9[%c1_136, %c0_137, %c0_138] : memref<4x1x8xf32, #tpu.memory_space<vmem>>, vector<1x1x8xf32>
      %216 = vector.shape_cast %215 : vector<1x1x8xf32> to vector<1x8xf32>
      %217 = vector.broadcast %216 : vector<1x8xf32> to vector<8x8xf32>
      %218 = arith.addf %214, %217 : vector<8x8xf32>
      %219 = arith.truncf %211 : vector<8x8xf32> to vector<8x8xbf16>
      %c1_139 = arith.constant 1 : index
      %c0_140 = arith.constant 0 : index
      %c0_141 = arith.constant 0 : index
      %220 = vector.load %arg21[%c1_139, %c0_140, %c0_141] : memref<4x8x8xbf16, #tpu.memory_space<vmem>>, vector<1x8x8xbf16>
      %221 = vector.shape_cast %220 : vector<1x8x8xbf16> to vector<8x8xbf16>
      %222 = vector.shape_cast %219 : vector<8x8xbf16> to vector<1x8x8xbf16>
      tpu.vector_store %arg21[%c1_139, %c0_140, %c0_141], %222 {strides = array<i32>} : memref<4x8x8xbf16, #tpu.memory_space<vmem>>, vector<1x8x8xbf16>,
      %223 = arith.truncf %218 : vector<8x8xf32> to vector<8x8xbf16>
      %c1_142 = arith.constant 1 : index
      %c0_143 = arith.constant 0 : index
      %c0_144 = arith.constant 0 : index
      %224 = vector.load %arg22[%c1_142, %c0_143, %c0_144] : memref<4x8x8xbf16, #tpu.memory_space<vmem>>, vector<1x8x8xbf16>
      %225 = vector.shape_cast %224 : vector<1x8x8xbf16> to vector<8x8xbf16>
      %226 = vector.shape_cast %223 : vector<8x8xbf16> to vector<1x8x8xbf16>
      tpu.vector_store %arg22[%c1_142, %c0_143, %c0_144], %226 {strides = array<i32>} : memref<4x8x8xbf16, #tpu.memory_space<vmem>>, vector<1x8x8xbf16>,
      %c2_145 = arith.constant 2 : index
      %c0_146 = arith.constant 0 : index
      %c0_147 = arith.constant 0 : index
      %227 = vector.load %arg6[%c2_145, %c0_146, %c0_147] : memref<4x32x8xbf16, #tpu.memory_space<vmem>>, vector<1x32x8xbf16>
      %228 = vector.shape_cast %227 : vector<1x32x8xbf16> to vector<32x8xbf16>
      %cst_148 = arith.constant dense<0.000000e+00> : vector<8x8xf32>
      %229 = tpu.matmul %182, %228, %cst_148 {dimension_numbers = #tpu.dot_dimension_numbers<[1], [0], [0], [1], [0, 0, 1, 1], [], []>} : vector<8x32xbf16>, vector<32x8xbf16>, vector<8x8xf32> -> vector<8x8xf32>
      %c2_149 = arith.constant 2 : index
      %c0_150 = arith.constant 0 : index
      %c0_151 = arith.constant 0 : index
      %230 = vector.load %arg7[%c2_149, %c0_150, %c0_151] : memref<4x1x8xf32, #tpu.memory_space<vmem>>, vector<1x1x8xf32>
      %231 = vector.shape_cast %230 : vector<1x1x8xf32> to vector<1x8xf32>
      %232 = vector.broadcast %231 : vector<1x8xf32> to vector<8x8xf32>
      %233 = arith.addf %229, %232 : vector<8x8xf32>
      %c2_152 = arith.constant 2 : index
      %c0_153 = arith.constant 0 : index
      %c0_154 = arith.constant 0 : index
      %234 = vector.load %arg8[%c2_152, %c0_153, %c0_154] : memref<4x32x8xbf16, #tpu.memory_space<vmem>>, vector<1x32x8xbf16>
      %235 = vector.shape_cast %234 : vector<1x32x8xbf16> to vector<32x8xbf16>
      %cst_155 = arith.constant dense<0.000000e+00> : vector<8x8xf32>
      %236 = tpu.matmul %182, %235, %cst_155 {dimension_numbers = #tpu.dot_dimension_numbers<[1], [0], [0], [1], [0, 0, 1, 1], [], []>} : vector<8x32xbf16>, vector<32x8xbf16>, vector<8x8xf32> -> vector<8x8xf32>
      %c2_156 = arith.constant 2 : index
      %c0_157 = arith.constant 0 : index
      %c0_158 = arith.constant 0 : index
      %237 = vector.load %arg9[%c2_156, %c0_157, %c0_158] : memref<4x1x8xf32, #tpu.memory_space<vmem>>, vector<1x1x8xf32>
      %238 = vector.shape_cast %237 : vector<1x1x8xf32> to vector<1x8xf32>
      %239 = vector.broadcast %238 : vector<1x8xf32> to vector<8x8xf32>
      %240 = arith.addf %236, %239 : vector<8x8xf32>
      %241 = arith.truncf %233 : vector<8x8xf32> to vector<8x8xbf16>
      %c2_159 = arith.constant 2 : index
      %c0_160 = arith.constant 0 : index
      %c0_161 = arith.constant 0 : index
      %242 = vector.load %arg21[%c2_159, %c0_160, %c0_161] : memref<4x8x8xbf16, #tpu.memory_space<vmem>>, vector<1x8x8xbf16>
      %243 = vector.shape_cast %242 : vector<1x8x8xbf16> to vector<8x8xbf16>
      %244 = vector.shape_cast %241 : vector<8x8xbf16> to vector<1x8x8xbf16>
      tpu.vector_store %arg21[%c2_159, %c0_160, %c0_161], %244 {strides = array<i32>} : memref<4x8x8xbf16, #tpu.memory_space<vmem>>, vector<1x8x8xbf16>,
      %245 = arith.truncf %240 : vector<8x8xf32> to vector<8x8xbf16>
      %c2_162 = arith.constant 2 : index
      %c0_163 = arith.constant 0 : index
      %c0_164 = arith.constant 0 : index
      %246 = vector.load %arg22[%c2_162, %c0_163, %c0_164] : memref<4x8x8xbf16, #tpu.memory_space<vmem>>, vector<1x8x8xbf16>
      %247 = vector.shape_cast %246 : vector<1x8x8xbf16> to vector<8x8xbf16>
      %248 = vector.shape_cast %245 : vector<8x8xbf16> to vector<1x8x8xbf16>
      tpu.vector_store %arg22[%c2_162, %c0_163, %c0_164], %248 {strides = array<i32>} : memref<4x8x8xbf16, #tpu.memory_space<vmem>>, vector<1x8x8xbf16>,
      %c3_165 = arith.constant 3 : index
      %c0_166 = arith.constant 0 : index
      %c0_167 = arith.constant 0 : index
      %249 = vector.load %arg6[%c3_165, %c0_166, %c0_167] : memref<4x32x8xbf16, #tpu.memory_space<vmem>>, vector<1x32x8xbf16>
      %250 = vector.shape_cast %249 : vector<1x32x8xbf16> to vector<32x8xbf16>
      %cst_168 = arith.constant dense<0.000000e+00> : vector<8x8xf32>
      %251 = tpu.matmul %182, %250, %cst_168 {dimension_numbers = #tpu.dot_dimension_numbers<[1], [0], [0], [1], [0, 0, 1, 1], [], []>} : vector<8x32xbf16>, vector<32x8xbf16>, vector<8x8xf32> -> vector<8x8xf32>
      %c3_169 = arith.constant 3 : index
      %c0_170 = arith.constant 0 : index
      %c0_171 = arith.constant 0 : index
      %252 = vector.load %arg7[%c3_169, %c0_170, %c0_171] : memref<4x1x8xf32, #tpu.memory_space<vmem>>, vector<1x1x8xf32>
      %253 = vector.shape_cast %252 : vector<1x1x8xf32> to vector<1x8xf32>
      %254 = vector.broadcast %253 : vector<1x8xf32> to vector<8x8xf32>
      %255 = arith.addf %251, %254 : vector<8x8xf32>
      %c3_172 = arith.constant 3 : index
      %c0_173 = arith.constant 0 : index
      %c0_174 = arith.constant 0 : index
      %256 = vector.load %arg8[%c3_172, %c0_173, %c0_174] : memref<4x32x8xbf16, #tpu.memory_space<vmem>>, vector<1x32x8xbf16>
      %257 = vector.shape_cast %256 : vector<1x32x8xbf16> to vector<32x8xbf16>
      %cst_175 = arith.constant dense<0.000000e+00> : vector<8x8xf32>
      %258 = tpu.matmul %182, %257, %cst_175 {dimension_numbers = #tpu.dot_dimension_numbers<[1], [0], [0], [1], [0, 0, 1, 1], [], []>} : vector<8x32xbf16>, vector<32x8xbf16>, vector<8x8xf32> -> vector<8x8xf32>
      %c3_176 = arith.constant 3 : index
      %c0_177 = arith.constant 0 : index
      %c0_178 = arith.constant 0 : index
      %259 = vector.load %arg9[%c3_176, %c0_177, %c0_178] : memref<4x1x8xf32, #tpu.memory_space<vmem>>, vector<1x1x8xf32>
      %260 = vector.shape_cast %259 : vector<1x1x8xf32> to vector<1x8xf32>
      %261 = vector.broadcast %260 : vector<1x8xf32> to vector<8x8xf32>
      %262 = arith.addf %258, %261 : vector<8x8xf32>
      %263 = arith.truncf %255 : vector<8x8xf32> to vector<8x8xbf16>
      %c3_179 = arith.constant 3 : index
      %c0_180 = arith.constant 0 : index
      %c0_181 = arith.constant 0 : index
      %264 = vector.load %arg21[%c3_179, %c0_180, %c0_181] : memref<4x8x8xbf16, #tpu.memory_space<vmem>>, vector<1x8x8xbf16>
      %265 = vector.shape_cast %264 : vector<1x8x8xbf16> to vector<8x8xbf16>
      %266 = vector.shape_cast %263 : vector<8x8xbf16> to vector<1x8x8xbf16>
      tpu.vector_store %arg21[%c3_179, %c0_180, %c0_181], %266 {strides = array<i32>} : memref<4x8x8xbf16, #tpu.memory_space<vmem>>, vector<1x8x8xbf16>,
      %267 = arith.truncf %262 : vector<8x8xf32> to vector<8x8xbf16>
      %c3_182 = arith.constant 3 : index
      %c0_183 = arith.constant 0 : index
      %c0_184 = arith.constant 0 : index
      %268 = vector.load %arg22[%c3_182, %c0_183, %c0_184] : memref<4x8x8xbf16, #tpu.memory_space<vmem>>, vector<1x8x8xbf16>
      %269 = vector.shape_cast %268 : vector<1x8x8xbf16> to vector<8x8xbf16>
      %270 = vector.shape_cast %267 : vector<8x8xbf16> to vector<1x8x8xbf16>
      tpu.vector_store %arg22[%c3_182, %c0_183, %c0_184], %270 {strides = array<i32>} : memref<4x8x8xbf16, #tpu.memory_space<vmem>>, vector<1x8x8xbf16>,
    } else {
    }
    %c8_i32 = arith.constant 8 : i32
    %3 = arith.muli %arg1, %c8_i32 : i32
    %4 = tpu.assume_multiple %3, 8 : i32
    %c0 = arith.constant 0 : index
    %5 = arith.index_cast %4 : i32 to index
    %c0_1 = arith.constant 0 : index
    %6 = vector.load %arg2[%c0, %5, %c0_1] : memref<1x8x32xbf16, #tpu.memory_space<vmem>>, vector<1x8x32xbf16>
    %7 = vector.shape_cast %6 : vector<1x8x32xbf16> to vector<8x32xbf16>
    %c0_2 = arith.constant 0 : index
    %c0_3 = arith.constant 0 : index
    %c0_4 = arith.constant 0 : index
    %8 = vector.load %arg4[%c0_2, %c0_3, %c0_4] : memref<4x32x8xbf16, #tpu.memory_space<vmem>>, vector<1x32x8xbf16>
    %9 = vector.shape_cast %8 : vector<1x32x8xbf16> to vector<32x8xbf16>
    %cst = arith.constant dense<0.000000e+00> : vector<8x8xf32>
    %10 = tpu.matmul %7, %9, %cst {dimension_numbers = #tpu.dot_dimension_numbers<[1], [0], [0], [1], [0, 0, 1, 1], [], []>} : vector<8x32xbf16>, vector<32x8xbf16>, vector<8x8xf32> -> vector<8x8xf32>
    %c0_5 = arith.constant 0 : index
    %c0_6 = arith.constant 0 : index
    %c0_7 = arith.constant 0 : index
    %11 = vector.load %arg5[%c0_5, %c0_6, %c0_7] : memref<4x1x8xf32, #tpu.memory_space<vmem>>, vector<1x1x8xf32>
    %12 = vector.shape_cast %11 : vector<1x1x8xf32> to vector<1x8xf32>
    %13 = vector.broadcast %12 : vector<1x8xf32> to vector<8x8xf32>
    %14 = arith.addf %10, %13 : vector<8x8xf32>
    %cst_8 = arith.constant 0.353553385 : f32
    %15 = vector.broadcast %cst_8 : f32 to vector<8x8xf32>
    %16 = arith.mulf %14, %15 : vector<8x8xf32>
    %17 = arith.truncf %16 : vector<8x8xf32> to vector<8x8xbf16>
    %c0_9 = arith.constant 0 : index
    %c0_10 = arith.constant 0 : index
    %c0_11 = arith.constant 0 : index
    %18 = vector.load %arg23[%c0_9, %c0_10, %c0_11] : memref<4x8x8xbf16, #tpu.memory_space<vmem>>, vector<1x8x8xbf16>
    %19 = vector.shape_cast %18 : vector<1x8x8xbf16> to vector<8x8xbf16>
    %20 = vector.shape_cast %17 : vector<8x8xbf16> to vector<1x8x8xbf16>
    tpu.vector_store %arg23[%c0_9, %c0_10, %c0_11], %20 {strides = array<i32>} : memref<4x8x8xbf16, #tpu.memory_space<vmem>>, vector<1x8x8xbf16>,
    %c1 = arith.constant 1 : index
    %c0_12 = arith.constant 0 : index
    %c0_13 = arith.constant 0 : index
    %21 = vector.load %arg4[%c1, %c0_12, %c0_13] : memref<4x32x8xbf16, #tpu.memory_space<vmem>>, vector<1x32x8xbf16>
    %22 = vector.shape_cast %21 : vector<1x32x8xbf16> to vector<32x8xbf16>
    %cst_14 = arith.constant dense<0.000000e+00> : vector<8x8xf32>
    %23 = tpu.matmul %7, %22, %cst_14 {dimension_numbers = #tpu.dot_dimension_numbers<[1], [0], [0], [1], [0, 0, 1, 1], [], []>} : vector<8x32xbf16>, vector<32x8xbf16>, vector<8x8xf32> -> vector<8x8xf32>
    %c1_15 = arith.constant 1 : index
    %c0_16 = arith.constant 0 : index
    %c0_17 = arith.constant 0 : index
    %24 = vector.load %arg5[%c1_15, %c0_16, %c0_17] : memref<4x1x8xf32, #tpu.memory_space<vmem>>, vector<1x1x8xf32>
    %25 = vector.shape_cast %24 : vector<1x1x8xf32> to vector<1x8xf32>
    %26 = vector.broadcast %25 : vector<1x8xf32> to vector<8x8xf32>
    %27 = arith.addf %23, %26 : vector<8x8xf32>
    %cst_18 = arith.constant 0.353553385 : f32
    %28 = vector.broadcast %cst_18 : f32 to vector<8x8xf32>
    %29 = arith.mulf %27, %28 : vector<8x8xf32>
    %30 = arith.truncf %29 : vector<8x8xf32> to vector<8x8xbf16>
    %c1_19 = arith.constant 1 : index
    %c0_20 = arith.constant 0 : index
    %c0_21 = arith.constant 0 : index
    %31 = vector.load %arg23[%c1_19, %c0_20, %c0_21] : memref<4x8x8xbf16, #tpu.memory_space<vmem>>, vector<1x8x8xbf16>
    %32 = vector.shape_cast %31 : vector<1x8x8xbf16> to vector<8x8xbf16>
    %33 = vector.shape_cast %30 : vector<8x8xbf16> to vector<1x8x8xbf16>
    tpu.vector_store %arg23[%c1_19, %c0_20, %c0_21], %33 {strides = array<i32>} : memref<4x8x8xbf16, #tpu.memory_space<vmem>>, vector<1x8x8xbf16>,
    %c2 = arith.constant 2 : index
    %c0_22 = arith.constant 0 : index
    %c0_23 = arith.constant 0 : index
    %34 = vector.load %arg4[%c2, %c0_22, %c0_23] : memref<4x32x8xbf16, #tpu.memory_space<vmem>>, vector<1x32x8xbf16>
    %35 = vector.shape_cast %34 : vector<1x32x8xbf16> to vector<32x8xbf16>
    %cst_24 = arith.constant dense<0.000000e+00> : vector<8x8xf32>
    %36 = tpu.matmul %7, %35, %cst_24 {dimension_numbers = #tpu.dot_dimension_numbers<[1], [0], [0], [1], [0, 0, 1, 1], [], []>} : vector<8x32xbf16>, vector<32x8xbf16>, vector<8x8xf32> -> vector<8x8xf32>
    %c2_25 = arith.constant 2 : index
    %c0_26 = arith.constant 0 : index
    %c0_27 = arith.constant 0 : index
    %37 = vector.load %arg5[%c2_25, %c0_26, %c0_27] : memref<4x1x8xf32, #tpu.memory_space<vmem>>, vector<1x1x8xf32>
    %38 = vector.shape_cast %37 : vector<1x1x8xf32> to vector<1x8xf32>
    %39 = vector.broadcast %38 : vector<1x8xf32> to vector<8x8xf32>
    %40 = arith.addf %36, %39 : vector<8x8xf32>
    %cst_28 = arith.constant 0.353553385 : f32
    %41 = vector.broadcast %cst_28 : f32 to vector<8x8xf32>
    %42 = arith.mulf %40, %41 : vector<8x8xf32>
    %43 = arith.truncf %42 : vector<8x8xf32> to vector<8x8xbf16>
    %c2_29 = arith.constant 2 : index
    %c0_30 = arith.constant 0 : index
    %c0_31 = arith.constant 0 : index
    %44 = vector.load %arg23[%c2_29, %c0_30, %c0_31] : memref<4x8x8xbf16, #tpu.memory_space<vmem>>, vector<1x8x8xbf16>
    %45 = vector.shape_cast %44 : vector<1x8x8xbf16> to vector<8x8xbf16>
    %46 = vector.shape_cast %43 : vector<8x8xbf16> to vector<1x8x8xbf16>
    tpu.vector_store %arg23[%c2_29, %c0_30, %c0_31], %46 {strides = array<i32>} : memref<4x8x8xbf16, #tpu.memory_space<vmem>>, vector<1x8x8xbf16>,
    %c3 = arith.constant 3 : index
    %c0_32 = arith.constant 0 : index
    %c0_33 = arith.constant 0 : index
    %47 = vector.load %arg4[%c3, %c0_32, %c0_33] : memref<4x32x8xbf16, #tpu.memory_space<vmem>>, vector<1x32x8xbf16>
    %48 = vector.shape_cast %47 : vector<1x32x8xbf16> to vector<32x8xbf16>
    %cst_34 = arith.constant dense<0.000000e+00> : vector<8x8xf32>
    %49 = tpu.matmul %7, %48, %cst_34 {dimension_numbers = #tpu.dot_dimension_numbers<[1], [0], [0], [1], [0, 0, 1, 1], [], []>} : vector<8x32xbf16>, vector<32x8xbf16>, vector<8x8xf32> -> vector<8x8xf32>
    %c3_35 = arith.constant 3 : index
    %c0_36 = arith.constant 0 : index
    %c0_37 = arith.constant 0 : index
    %50 = vector.load %arg5[%c3_35, %c0_36, %c0_37] : memref<4x1x8xf32, #tpu.memory_space<vmem>>, vector<1x1x8xf32>
    %51 = vector.shape_cast %50 : vector<1x1x8xf32> to vector<1x8xf32>
    %52 = vector.broadcast %51 : vector<1x8xf32> to vector<8x8xf32>
    %53 = arith.addf %49, %52 : vector<8x8xf32>
    %cst_38 = arith.constant 0.353553385 : f32
    %54 = vector.broadcast %cst_38 : f32 to vector<8x8xf32>
    %55 = arith.mulf %53, %54 : vector<8x8xf32>
    %56 = arith.truncf %55 : vector<8x8xf32> to vector<8x8xbf16>
    %c3_39 = arith.constant 3 : index
    %c0_40 = arith.constant 0 : index
    %c0_41 = arith.constant 0 : index
    %57 = vector.load %arg23[%c3_39, %c0_40, %c0_41] : memref<4x8x8xbf16, #tpu.memory_space<vmem>>, vector<1x8x8xbf16>
    %58 = vector.shape_cast %57 : vector<1x8x8xbf16> to vector<8x8xbf16>
    %59 = vector.shape_cast %56 : vector<8x8xbf16> to vector<1x8x8xbf16>
    tpu.vector_store %arg23[%c3_39, %c0_40, %c0_41], %59 {strides = array<i32>} : memref<4x8x8xbf16, #tpu.memory_space<vmem>>, vector<1x8x8xbf16>,
    %c0_42 = arith.constant 0 : index
    %c0_43 = arith.constant 0 : index
    %c0_44 = arith.constant 0 : index
    %60 = vector.load %arg23[%c0_42, %c0_43, %c0_44] : memref<4x8x8xbf16, #tpu.memory_space<vmem>>, vector<4x8x8xbf16>
    %c0_45 = arith.constant 0 : index
    %c0_46 = arith.constant 0 : index
    %c0_47 = arith.constant 0 : index
    %61 = vector.load %arg21[%c0_45, %c0_46, %c0_47] : memref<4x8x8xbf16, #tpu.memory_space<vmem>>, vector<4x8x8xbf16>
    %c0_48 = arith.constant 0 : index
    %c0_49 = arith.constant 0 : index
    %c0_50 = arith.constant 0 : index
    %62 = vector.load %arg22[%c0_48, %c0_49, %c0_50] : memref<4x8x8xbf16, #tpu.memory_space<vmem>>, vector<4x8x8xbf16>
    %cst_51 = arith.constant dense<0.000000e+00> : vector<4x8x8xf32>
    %63 = tpu.matmul %60, %61, %cst_51 {dimension_numbers = #tpu.dot_dimension_numbers<[2], [2], [1], [1], [0, 0, 0, 1, 1, 1], [0], [0]>} : vector<4x8x8xbf16>, vector<4x8x8xbf16>, vector<4x8x8xf32> -> vector<4x8x8xf32>
    %cst_52 = arith.constant dense<0xFF800000> : vector<4x8xf32>
    %64 = vector.multi_reduction <maximumf>, %63, %cst_52 [2] : vector<4x8x8xf32> to vector<4x8xf32>
    %65 = vector.shape_cast %64 : vector<4x8xf32> to vector<4x8x1xf32>
    %66 = vector.broadcast %65 : vector<4x8x1xf32> to vector<4x8x8xf32>
    %67 = arith.subf %63, %66 : vector<4x8x8xf32>
    %68 = math.exp %67 : vector<4x8x8xf32>
    %cst_53 = arith.constant dense<0.000000e+00> : vector<4x8xf32>
    %69 = vector.multi_reduction <add>, %68, %cst_53 [2] : vector<4x8x8xf32> to vector<4x8xf32>
    %70 = vector.shape_cast %69 : vector<4x8xf32> to vector<4x8x1xf32>
    %71 = arith.truncf %68 : vector<4x8x8xf32> to vector<4x8x8xbf16>
    %cst_54 = arith.constant dense<0.000000e+00> : vector<4x8x8xf32>
    %72 = tpu.matmul %71, %62, %cst_54 {dimension_numbers = #tpu.dot_dimension_numbers<[2], [1], [1], [2], [0, 0, 0, 1, 1, 2], [0], [0]>} : vector<4x8x8xbf16>, vector<4x8x8xbf16>, vector<4x8x8xf32> -> vector<4x8x8xf32>
    %73 = tpu.reciprocal %70 : vector<4x8x1xf32> -> vector<4x8x1xf32>
    %74 = vector.extract_strided_slice %72 {offsets = [0, 0, 0], sizes = [1, 8, 8], strides = [1, 1, 1]} : vector<4x8x8xf32> to vector<1x8x8xf32>
    %75 = vector.shape_cast %74 : vector<1x8x8xf32> to vector<8x8xf32>
    %76 = vector.extract_strided_slice %73 {offsets = [0, 0, 0], sizes = [1, 8, 1], strides = [1, 1, 1]} : vector<4x8x1xf32> to vector<1x8x1xf32>
    %77 = vector.shape_cast %76 : vector<1x8x1xf32> to vector<8x1xf32>
    %78 = vector.broadcast %77 : vector<8x1xf32> to vector<8x8xf32>
    %79 = arith.mulf %75, %78 : vector<8x8xf32>
    %80 = arith.truncf %79 : vector<8x8xf32> to vector<8x8xbf16>
    %c0_55 = arith.constant 0 : index
    %c0_56 = arith.constant 0 : index
    %81 = vector.load %arg24[%c0_55, %c0_56] : memref<8x32xbf16, #tpu.memory_space<vmem>>, vector<8x8xbf16>
    tpu.vector_store %arg24[%c0_55, %c0_56], %80 {strides = array<i32>} : memref<8x32xbf16, #tpu.memory_space<vmem>>, vector<8x8xbf16>,
    %82 = vector.extract_strided_slice %72 {offsets = [1, 0, 0], sizes = [1, 8, 8], strides = [1, 1, 1]} : vector<4x8x8xf32> to vector<1x8x8xf32>
    %83 = vector.shape_cast %82 : vector<1x8x8xf32> to vector<8x8xf32>
    %84 = vector.extract_strided_slice %73 {offsets = [1, 0, 0], sizes = [1, 8, 1], strides = [1, 1, 1]} : vector<4x8x1xf32> to vector<1x8x1xf32>
    %85 = vector.shape_cast %84 : vector<1x8x1xf32> to vector<8x1xf32>
    %86 = vector.broadcast %85 : vector<8x1xf32> to vector<8x8xf32>
    %87 = arith.mulf %83, %86 : vector<8x8xf32>
    %88 = arith.truncf %87 : vector<8x8xf32> to vector<8x8xbf16>
    %c0_57 = arith.constant 0 : index
    %c8 = arith.constant 8 : index
    %89 = vector.load %arg24[%c0_57, %c8] : memref<8x32xbf16, #tpu.memory_space<vmem>>, vector<8x8xbf16>
    tpu.vector_store %arg24[%c0_57, %c8], %88 {strides = array<i32>} : memref<8x32xbf16, #tpu.memory_space<vmem>>, vector<8x8xbf16>,
    %90 = vector.extract_strided_slice %72 {offsets = [2, 0, 0], sizes = [1, 8, 8], strides = [1, 1, 1]} : vector<4x8x8xf32> to vector<1x8x8xf32>
    %91 = vector.shape_cast %90 : vector<1x8x8xf32> to vector<8x8xf32>
    %92 = vector.extract_strided_slice %73 {offsets = [2, 0, 0], sizes = [1, 8, 1], strides = [1, 1, 1]} : vector<4x8x1xf32> to vector<1x8x1xf32>
    %93 = vector.shape_cast %92 : vector<1x8x1xf32> to vector<8x1xf32>
    %94 = vector.broadcast %93 : vector<8x1xf32> to vector<8x8xf32>
    %95 = arith.mulf %91, %94 : vector<8x8xf32>
    %96 = arith.truncf %95 : vector<8x8xf32> to vector<8x8xbf16>
    %c0_58 = arith.constant 0 : index
    %c16 = arith.constant 16 : index
    %97 = vector.load %arg24[%c0_58, %c16] : memref<8x32xbf16, #tpu.memory_space<vmem>>, vector<8x8xbf16>
    tpu.vector_store %arg24[%c0_58, %c16], %96 {strides = array<i32>} : memref<8x32xbf16, #tpu.memory_space<vmem>>, vector<8x8xbf16>,
    %98 = vector.extract_strided_slice %72 {offsets = [3, 0, 0], sizes = [1, 8, 8], strides = [1, 1, 1]} : vector<4x8x8xf32> to vector<1x8x8xf32>
    %99 = vector.shape_cast %98 : vector<1x8x8xf32> to vector<8x8xf32>
    %100 = vector.extract_strided_slice %73 {offsets = [3, 0, 0], sizes = [1, 8, 1], strides = [1, 1, 1]} : vector<4x8x1xf32> to vector<1x8x1xf32>
    %101 = vector.shape_cast %100 : vector<1x8x1xf32> to vector<8x1xf32>
    %102 = vector.broadcast %101 : vector<8x1xf32> to vector<8x8xf32>
    %103 = arith.mulf %99, %102 : vector<8x8xf32>
    %104 = arith.truncf %103 : vector<8x8xf32> to vector<8x8xbf16>
    %c0_59 = arith.constant 0 : index
    %c24 = arith.constant 24 : index
    %105 = vector.load %arg24[%c0_59, %c24] : memref<8x32xbf16, #tpu.memory_space<vmem>>, vector<8x8xbf16>
    tpu.vector_store %arg24[%c0_59, %c24], %104 {strides = array<i32>} : memref<8x32xbf16, #tpu.memory_space<vmem>>, vector<8x8xbf16>,
    %c0_60 = arith.constant 0 : index
    %c0_61 = arith.constant 0 : index
    %106 = vector.load %arg24[%c0_60, %c0_61] : memref<8x32xbf16, #tpu.memory_space<vmem>>, vector<8x32xbf16>
    %c0_62 = arith.constant 0 : index
    %c0_63 = arith.constant 0 : index
    %107 = vector.load %arg10[%c0_62, %c0_63] : memref<32x32xbf16, #tpu.memory_space<vmem>>, vector<32x32xbf16>
    %cst_64 = arith.constant dense<0.000000e+00> : vector<8x32xf32>
    %108 = tpu.matmul %106, %107, %cst_64 {dimension_numbers = #tpu.dot_dimension_numbers<[1], [0], [0], [1], [0, 0, 1, 1], [], []>} : vector<8x32xbf16>, vector<32x32xbf16>, vector<8x32xf32> -> vector<8x32xf32>
    %c0_65 = arith.constant 0 : index
    %c0_66 = arith.constant 0 : index
    %109 = vector.load %arg11[%c0_65, %c0_66] : memref<1x32xf32, #tpu.memory_space<vmem>>, vector<1x32xf32>
    %110 = vector.broadcast %109 : vector<1x32xf32> to vector<8x32xf32>
    %111 = arith.addf %108, %110 : vector<8x32xf32>
    %c0_67 = arith.constant 0 : index
    %c0_68 = arith.constant 0 : index
    %c0_69 = arith.constant 0 : index
    %112 = vector.load %arg3[%c0_67, %c0_68, %c0_69] : memref<1x8x32xf32, #tpu.memory_space<vmem>>, vector<1x8x32xf32>
    %113 = vector.shape_cast %112 : vector<1x8x32xf32> to vector<8x32xf32>
    %114 = arith.addf %111, %113 : vector<8x32xf32>
    %c0_70 = arith.constant 0 : index
    %c0_71 = arith.constant 0 : index
    %115 = vector.load %arg12[%c0_70, %c0_71] : memref<1x32xf32, #tpu.memory_space<vmem>>, vector<1x32xf32>
    %c0_72 = arith.constant 0 : index
    %c0_73 = arith.constant 0 : index
    %116 = vector.load %arg13[%c0_72, %c0_73] : memref<1x32xf32, #tpu.memory_space<vmem>>, vector<1x32xf32>
    %cst_74 = arith.constant dense<0.000000e+00> : vector<8xf32>
    %117 = vector.multi_reduction <add>, %114, %cst_74 [1] : vector<8x32xf32> to vector<8xf32>
    %118 = vector.shape_cast %117 : vector<8xf32> to vector<8x1xf32>
    %cst_75 = arith.constant 3.200000e+01 : f32
    %119 = vector.broadcast %cst_75 : f32 to vector<8x1xf32>
    %120 = arith.divf %118, %119 : vector<8x1xf32>
    %121 = vector.broadcast %120 : vector<8x1xf32> to vector<8x32xf32>
    %122 = arith.subf %114, %121 : vector<8x32xf32>
    %123 = arith.mulf %122, %122 : vector<8x32xf32>
    %cst_76 = arith.constant dense<0.000000e+00> : vector<8xf32>
    %124 = vector.multi_reduction <add>, %123, %cst_76 [1] : vector<8x32xf32> to vector<8xf32>
    %125 = vector.shape_cast %124 : vector<8xf32> to vector<8x1xf32>
    %cst_77 = arith.constant 3.200000e+01 : f32
    %126 = vector.broadcast %cst_77 : f32 to vector<8x1xf32>
    %127 = arith.divf %125, %126 : vector<8x1xf32>
    %cst_78 = arith.constant 9.99999974E-6 : f32
    %128 = vector.broadcast %cst_78 : f32 to vector<8x1xf32>
    %129 = arith.addf %127, %128 : vector<8x1xf32>
    %130 = math.rsqrt %129 : vector<8x1xf32>
    %131 = vector.broadcast %120 : vector<8x1xf32> to vector<8x32xf32>
    %132 = arith.subf %114, %131 : vector<8x32xf32>
    %133 = vector.broadcast %115 : vector<1x32xf32> to vector<8x32xf32>
    %134 = vector.broadcast %130 : vector<8x1xf32> to vector<8x32xf32>
    %135 = arith.mulf %133, %134 : vector<8x32xf32>
    %136 = arith.mulf %132, %135 : vector<8x32xf32>
    %137 = vector.broadcast %116 : vector<1x32xf32> to vector<8x32xf32>
    %138 = arith.addf %136, %137 : vector<8x32xf32>
    %139 = arith.truncf %138 : vector<8x32xf32> to vector<8x32xbf16>
    %c0_79 = arith.constant 0 : index
    %c0_80 = arith.constant 0 : index
    %140 = vector.load %arg14[%c0_79, %c0_80] : memref<32x128xbf16, #tpu.memory_space<vmem>>, vector<32x128xbf16>
    %cst_81 = arith.constant dense<0.000000e+00> : vector<8x128xf32>
    %141 = tpu.matmul %139, %140, %cst_81 {dimension_numbers = #tpu.dot_dimension_numbers<[1], [0], [0], [1], [0, 0, 1, 1], [], []>} : vector<8x32xbf16>, vector<32x128xbf16>, vector<8x128xf32> -> vector<8x128xf32>
    %c0_82 = arith.constant 0 : index
    %c0_83 = arith.constant 0 : index
    %142 = vector.load %arg15[%c0_82, %c0_83] : memref<1x128xf32, #tpu.memory_space<vmem>>, vector<1x128xf32>
    %143 = vector.broadcast %142 : vector<1x128xf32> to vector<8x128xf32>
    %144 = arith.addf %141, %143 : vector<8x128xf32>
    %cst_84 = arith.constant 0.000000e+00 : f32
    %145 = vector.broadcast %cst_84 : f32 to vector<8x128xf32>
    %146 = arith.maximumf %144, %145 : vector<8x128xf32>
    %147 = arith.truncf %146 : vector<8x128xf32> to vector<8x128xbf16>
    %c0_85 = arith.constant 0 : index
    %c0_86 = arith.constant 0 : index
    %148 = vector.load %arg16[%c0_85, %c0_86] : memref<128x32xbf16, #tpu.memory_space<vmem>>, vector<128x32xbf16>
    %cst_87 = arith.constant dense<0.000000e+00> : vector<8x32xf32>
    %149 = tpu.matmul %147, %148, %cst_87 {dimension_numbers = #tpu.dot_dimension_numbers<[1], [0], [0], [1], [0, 0, 1, 1], [], []>} : vector<8x128xbf16>, vector<128x32xbf16>, vector<8x32xf32> -> vector<8x32xf32>
    %c0_88 = arith.constant 0 : index
    %c0_89 = arith.constant 0 : index
    %150 = vector.load %arg17[%c0_88, %c0_89] : memref<1x32xf32, #tpu.memory_space<vmem>>, vector<1x32xf32>
    %151 = vector.broadcast %150 : vector<1x32xf32> to vector<8x32xf32>
    %152 = arith.addf %149, %151 : vector<8x32xf32>
    %153 = arith.addf %152, %138 : vector<8x32xf32>
    %c0_90 = arith.constant 0 : index
    %c0_91 = arith.constant 0 : index
    %154 = vector.load %arg18[%c0_90, %c0_91] : memref<1x32xf32, #tpu.memory_space<vmem>>, vector<1x32xf32>
    %c0_92 = arith.constant 0 : index
    %c0_93 = arith.constant 0 : index
    %155 = vector.load %arg19[%c0_92, %c0_93] : memref<1x32xf32, #tpu.memory_space<vmem>>, vector<1x32xf32>
    %cst_94 = arith.constant dense<0.000000e+00> : vector<8xf32>
    %156 = vector.multi_reduction <add>, %153, %cst_94 [1] : vector<8x32xf32> to vector<8xf32>
    %157 = vector.shape_cast %156 : vector<8xf32> to vector<8x1xf32>
    %cst_95 = arith.constant 3.200000e+01 : f32
    %158 = vector.broadcast %cst_95 : f32 to vector<8x1xf32>
    %159 = arith.divf %157, %158 : vector<8x1xf32>
    %160 = vector.broadcast %159 : vector<8x1xf32> to vector<8x32xf32>
    %161 = arith.subf %153, %160 : vector<8x32xf32>
    %162 = arith.mulf %161, %161 : vector<8x32xf32>
    %cst_96 = arith.constant dense<0.000000e+00> : vector<8xf32>
    %163 = vector.multi_reduction <add>, %162, %cst_96 [1] : vector<8x32xf32> to vector<8xf32>
    %164 = vector.shape_cast %163 : vector<8xf32> to vector<8x1xf32>
    %cst_97 = arith.constant 3.200000e+01 : f32
    %165 = vector.broadcast %cst_97 : f32 to vector<8x1xf32>
    %166 = arith.divf %164, %165 : vector<8x1xf32>
    %cst_98 = arith.constant 9.99999974E-6 : f32
    %167 = vector.broadcast %cst_98 : f32 to vector<8x1xf32>
    %168 = arith.addf %166, %167 : vector<8x1xf32>
    %169 = math.rsqrt %168 : vector<8x1xf32>
    %170 = vector.broadcast %159 : vector<8x1xf32> to vector<8x32xf32>
    %171 = arith.subf %153, %170 : vector<8x32xf32>
    %172 = vector.broadcast %154 : vector<1x32xf32> to vector<8x32xf32>
    %173 = vector.broadcast %169 : vector<8x1xf32> to vector<8x32xf32>
    %174 = arith.mulf %172, %173 : vector<8x32xf32>
    %175 = arith.mulf %171, %174 : vector<8x32xf32>
    %176 = vector.broadcast %155 : vector<1x32xf32> to vector<8x32xf32>
    %177 = arith.addf %175, %176 : vector<8x32xf32>
    %c0_99 = arith.constant 0 : index
    %c0_100 = arith.constant 0 : index
    %c0_101 = arith.constant 0 : index
    %178 = vector.load %arg20[%c0_99, %c0_100, %c0_101] : memref<1x8x32xf32, #tpu.memory_space<vmem>>, vector<1x8x32xf32>
    %179 = vector.shape_cast %178 : vector<1x8x32xf32> to vector<8x32xf32>
    %180 = vector.shape_cast %177 : vector<8x32xf32> to vector<1x8x32xf32>
    tpu.vector_store %arg20[%c0_99, %c0_100, %c0_101], %180 {strides = array<i32>} : memref<1x8x32xf32, #tpu.memory_space<vmem>>, vector<1x8x32xf32>,
    return
  }
  func.func @transform_0(%arg0: i32, %arg1: i32) -> (i32, i32, i32) {
    %c0_i32 = arith.constant 0 : i32
    %c0_i32_0 = arith.constant 0 : i32
    %c0_i32_1 = arith.constant 0 : i32
    return %arg0, %c0_i32, %c0_i32_0 : i32, i32, i32
  }
  func.func @transform_1(%arg0: i32, %arg1: i32) -> (i32, i32, i32) {
    %c0_i32 = arith.constant 0 : i32
    %c0_i32_0 = arith.constant 0 : i32
    return %arg0, %arg1, %c0_i32 : i32, i32, i32
  }
  func.func @transform_2(%arg0: i32, %arg1: i32) -> (i32, i32, i32) {
    %c0_i32 = arith.constant 0 : i32
    %c0_i32_0 = arith.constant 0 : i32
    %c0_i32_1 = arith.constant 0 : i32
    %c0_i32_2 = arith.constant 0 : i32
    return %c0_i32, %c0_i32_0, %c0_i32_1 : i32, i32, i32
  }
  func.func @transform_3(%arg0: i32, %arg1: i32) -> (i32, i32, i32) {
    %c0_i32 = arith.constant 0 : i32
    %c0_i32_0 = arith.constant 0 : i32
    %c0_i32_1 = arith.constant 0 : i32
    %c0_i32_2 = arith.constant 0 : i32
    return %c0_i32, %c0_i32_0, %c0_i32_1 : i32, i32, i32
  }
  func.func @transform_4(%arg0: i32, %arg1: i32) -> (i32, i32, i32) {
    %c0_i32 = arith.constant 0 : i32
    %c0_i32_0 = arith.constant 0 : i32
    %c0_i32_1 = arith.constant 0 : i32
    %c0_i32_2 = arith.constant 0 : i32
    return %c0_i32, %c0_i32_0, %c0_i32_1 : i32, i32, i32
  }
  func.func @transform_5(%arg0: i32, %arg1: i32) -> (i32, i32, i32) {
    %c0_i32 = arith.constant 0 : i32
    %c0_i32_0 = arith.constant 0 : i32
    %c0_i32_1 = arith.constant 0 : i32
    %c0_i32_2 = arith.constant 0 : i32
    return %c0_i32, %c0_i32_0, %c0_i32_1 : i32, i32, i32
  }
  func.func @transform_6(%arg0: i32, %arg1: i32) -> (i32, i32, i32) {
    %c0_i32 = arith.constant 0 : i32
    %c0_i32_0 = arith.constant 0 : i32
    %c0_i32_1 = arith.constant 0 : i32
    %c0_i32_2 = arith.constant 0 : i32
    return %c0_i32, %c0_i32_0, %c0_i32_1 : i32, i32, i32
  }
  func.func @transform_7(%arg0: i32, %arg1: i32) -> (i32, i32, i32) {
    %c0_i32 = arith.constant 0 : i32
    %c0_i32_0 = arith.constant 0 : i32
    %c0_i32_1 = arith.constant 0 : i32
    %c0_i32_2 = arith.constant 0 : i32
    return %c0_i32, %c0_i32_0, %c0_i32_1 : i32, i32, i32
  }
  func.func @transform_8(%arg0: i32, %arg1: i32) -> (i32, i32) {
    %c0_i32 = arith.constant 0 : i32
    %c0_i32_0 = arith.constant 0 : i32
    %c0_i32_1 = arith.constant 0 : i32
    return %c0_i32, %c0_i32_0 : i32, i32
  }
  func.func @transform_9(%arg0: i32, %arg1: i32) -> (i32, i32) {
    %c0_i32 = arith.constant 0 : i32
    %c0_i32_0 = arith.constant 0 : i32
    %c0_i32_1 = arith.constant 0 : i32
    return %c0_i32, %c0_i32_0 : i32, i32
  }
  func.func @transform_10(%arg0: i32, %arg1: i32) -> (i32, i32) {
    %c0_i32 = arith.constant 0 : i32
    %c0_i32_0 = arith.constant 0 : i32
    %c0_i32_1 = arith.constant 0 : i32
    return %c0_i32, %c0_i32_0 : i32, i32
  }
  func.func @transform_11(%arg0: i32, %arg1: i32) -> (i32, i32) {
    %c0_i32 = arith.constant 0 : i32
    %c0_i32_0 = arith.constant 0 : i32
    %c0_i32_1 = arith.constant 0 : i32
    return %c0_i32, %c0_i32_0 : i32, i32
  }
  func.func @transform_12(%arg0: i32, %arg1: i32) -> (i32, i32) {
    %c0_i32 = arith.constant 0 : i32
    %c0_i32_0 = arith.constant 0 : i32
    %c0_i32_1 = arith.constant 0 : i32
    return %c0_i32, %c0_i32_0 : i32, i32
  }
  func.func @transform_13(%arg0: i32, %arg1: i32) -> (i32, i32) {
    %c0_i32 = arith.constant 0 : i32
    %c0_i32_0 = arith.constant 0 : i32
    %c0_i32_1 = arith.constant 0 : i32
    return %c0_i32, %c0_i32_0 : i32, i32
  }
  func.func @transform_14(%arg0: i32, %arg1: i32) -> (i32, i32) {
    %c0_i32 = arith.constant 0 : i32
    %c0_i32_0 = arith.constant 0 : i32
    %c0_i32_1 = arith.constant 0 : i32
    return %c0_i32, %c0_i32_0 : i32, i32
  }
  func.func @transform_15(%arg0: i32, %arg1: i32) -> (i32, i32) {
    %c0_i32 = arith.constant 0 : i32
    %c0_i32_0 = arith.constant 0 : i32
    %c0_i32_1 = arith.constant 0 : i32
    return %c0_i32, %c0_i32_0 : i32, i32
  }
  func.func @transform_16(%arg0: i32, %arg1: i32) -> (i32, i32) {
    %c0_i32 = arith.constant 0 : i32
    %c0_i32_0 = arith.constant 0 : i32
    %c0_i32_1 = arith.constant 0 : i32
    return %c0_i32, %c0_i32_0 : i32, i32
  }
  func.func @transform_17(%arg0: i32, %arg1: i32) -> (i32, i32) {
    %c0_i32 = arith.constant 0 : i32
    %c0_i32_0 = arith.constant 0 : i32
    %c0_i32_1 = arith.constant 0 : i32
    return %c0_i32, %c0_i32_0 : i32, i32
  }
  func.func @transform_18(%arg0: i32, %arg1: i32) -> (i32, i32, i32) {
    %c0_i32 = arith.constant 0 : i32
    %c0_i32_0 = arith.constant 0 : i32
    return %arg0, %arg1, %c0_i32 : i32, i32, i32
  }
}

module attributes {stable_mosaic.version = 11 : i64} {
  func.func @encoder_block_kernel(%arg0: i32, %arg1: i32, %arg2: memref<1x8x32xbf16, #tpu.memory_space<vmem>>, %arg3: memref<1x8x32xf32, #tpu.memory_space<vmem>>, %arg4: memref<4x32x8xbf16, #tpu.memory_space<vmem>>, %arg5: memref<4x1x8xf32, #tpu.memory_space<vmem>>, %arg6: memref<4x32x8xbf16, #tpu.memory_space<vmem>>, %arg7: memref<4x1x8xf32, #tpu.memory_space<vmem>>, %arg8: memref<4x32x8xbf16, #tpu.memory_space<vmem>>, %arg9: memref<4x1x8xf32, #tpu.memory_space<vmem>>, %arg10: memref<32x32xbf16, #tpu.memory_space<vmem>>, %arg11: memref<1x32xf32, #tpu.memory_space<vmem>>, %arg12: memref<1x32xf32, #tpu.memory_space<vmem>>, %arg13: memref<1x32xf32, #tpu.memory_space<vmem>>, %arg14: memref<32x128xbf16, #tpu.memory_space<vmem>>, %arg15: memref<1x128xf32, #tpu.memory_space<vmem>>, %arg16: memref<128x32xbf16, #tpu.memory_space<vmem>>, %arg17: memref<1x32xf32, #tpu.memory_space<vmem>>, %arg18: memref<1x32xf32, #tpu.memory_space<vmem>>, %arg19: memref<1x32xf32, #tpu.memory_space<vmem>>, %arg20: memref<1x8x32xf32, #tpu.memory_space<vmem>>, %arg21: memref<4x8x8xbf16, #tpu.memory_space<vmem>>, %arg22: memref<4x8x8xbf16, #tpu.memory_space<vmem>>, %arg23: memref<4x8x8xbf16, #tpu.memory_space<vmem>>, %arg24: memref<8x32xbf16, #tpu.memory_space<vmem>>) attributes {dimension_semantics = [#tpu.dimension_semantics<parallel>, #tpu.dimension_semantics<arbitrary>], iteration_bounds = array<i64: 2, 1>, scalar_prefetch = 0 : i64, scratch_operands = 4 : i64, tpu.core_type = #tpu.core_type<tc>, window_params = [{transform_indices = @transform_0, window_bounds = array<i64: 1, 8, 32>}, {transform_indices = @transform_1, window_bounds = array<i64: 1, 8, 32>}, {pipeline_mode = #tpu.pipeline_mode<synchronous>, transform_indices = @transform_2, window_bounds = array<i64: 4, 32, 8>}, {pipeline_mode = #tpu.pipeline_mode<synchronous>, transform_indices = @transform_3, window_bounds = array<i64: 4, 1, 8>}, {pipeline_mode = #tpu.pipeline_mode<synchronous>, transform_indices = @transform_4, window_bounds = array<i64: 4, 32, 8>}, {pipeline_mode = #tpu.pipeline_mode<synchronous>, transform_indices = @transform_5, window_bounds = array<i64: 4, 1, 8>}, {pipeline_mode = #tpu.pipeline_mode<synchronous>, transform_indices = @transform_6, window_bounds = array<i64: 4, 32, 8>}, {pipeline_mode = #tpu.pipeline_mode<synchronous>, transform_indices = @transform_7, window_bounds = array<i64: 4, 1, 8>}, {pipeline_mode = #tpu.pipeline_mode<synchronous>, transform_indices = @transform_8, window_bounds = array<i64: 32, 32>}, {pipeline_mode = #tpu.pipeline_mode<synchronous>, transform_indices = @transform_9, window_bounds = array<i64: 1, 32>}, {pipeline_mode = #tpu.pipeline_mode<synchronous>, transform_indices = @transform_10, window_bounds = array<i64: 1, 32>}, {pipeline_mode = #tpu.pipeline_mode<synchronous>, transform_indices = @transform_11, window_bounds = array<i64: 1, 32>}, {pipeline_mode = #tpu.pipeline_mode<synchronous>, transform_indices = @transform_12, window_bounds = array<i64: 32, 128>}, {pipeline_mode = #tpu.pipeline_mode<synchronous>, transform_indices = @transform_13, window_bounds = array<i64: 1, 128>}, {pipeline_mode = #tpu.pipeline_mode<synchronous>, transform_indices = @transform_14, window_bounds = array<i64: 128, 32>}, {pipeline_mode = #tpu.pipeline_mode<synchronous>, transform_indices = @transform_15, window_bounds = array<i64: 1, 32>}, {pipeline_mode = #tpu.pipeline_mode<synchronous>, transform_indices = @transform_16, window_bounds = array<i64: 1, 32>}, {pipeline_mode = #tpu.pipeline_mode<synchronous>, transform_indices = @transform_17, window_bounds = array<i64: 1, 32>}, {transform_indices = @transform_18, window_bounds = array<i64: 1, 8, 32>}]} {
    %c0_i32 = arith.constant 0 : i32
    %0 = arith.cmpi eq, %arg1, %c0_i32 : i32
    %1 = arith.extui %0 : i1 to i32
    %c0_i32_0 = arith.constant 0 : i32
    %2 = arith.cmpi ne, %1, %c0_i32_0 : i32
    scf.if %2 {
      %c0_102 = arith.constant 0 : index
      %c0_103 = arith.constant 0 : index
      %c0_104 = arith.constant 0 : index
      %181 = vector.load %arg2[%c0_102, %c0_103, %c0_104] : memref<1x8x32xbf16, #tpu.memory_space<vmem>>, vector<1x8x32xbf16>
      %182 = vector.shape_cast %181 : vector<1x8x32xbf16> to vector<8x32xbf16>
      %c0_105 = arith.constant 0 : index
      %c0_106 = arith.constant 0 : index
      %c0_107 = arith.constant 0 : index
      %183 = vector.load %arg6[%c0_105, %c0_106, %c0_107] : memref<4x32x8xbf16, #tpu.memory_space<vmem>>, vector<1x32x8xbf16>
      %184 = vector.shape_cast %183 : vector<1x32x8xbf16> to vector<32x8xbf16>
      %cst_108 = arith.constant dense<0.000000e+00> : vector<8x8xf32>
      %185 = tpu.matmul %182, %184, %cst_108 {dimension_numbers = #tpu.dot_dimension_numbers<[1], [0], [0], [1], [0, 0, 1, 1], [], []>} : vector<8x32xbf16>, vector<32x8xbf16>, vector<8x8xf32> -> vector<8x8xf32>
      %c0_109 = arith.constant 0 : index
      %c0_110 = arith.constant 0 : index
      %c0_111 = arith.constant 0 : index
      %186 = vector.load %arg7[%c0_109, %c0_110, %c0_111] : memref<4x1x8xf32, #tpu.memory_space<vmem>>, vector<1x1x8xf32>
      %187 = vector.shape_cast %186 : vector<1x1x8xf32> to vector<1x8xf32>
      %188 = vector.broadcast %187 : vector<1x8xf32> to vector<8x8xf32>
      %189 = arith.addf %185, %188 : vector<8x8xf32>
      %c0_112 = arith.constant 0 : index
      %c0_113 = arith.constant 0 : index
      %c0_114 = arith.constant 0 : index
      %190 = vector.load %arg8[%c0_112, %c0_113, %c0_114] : memref<4x32x8xbf16, #tpu.memory_space<vmem>>, vector<1x32x8xbf16>
      %191 = vector.shape_cast %190 : vector<1x32x8xbf16> to vector<32x8xbf16>
      %cst_115 = arith.constant dense<0.000000e+00> : vector<8x8xf32>
      %192 = tpu.matmul %182, %191, %cst_115 {dimension_numbers = #tpu.dot_dimension_numbers<[1], [0], [0], [1], [0, 0, 1, 1], [], []>} : vector<8x32xbf16>, vector<32x8xbf16>, vector<8x8xf32> -> vector<8x8xf32>
      %c0_116 = arith.constant 0 : index
      %c0_117 = arith.constant 0 : index
      %c0_118 = arith.constant 0 : index
      %193 = vector.load %arg9[%c0_116, %c0_117, %c0_118] : memref<4x1x8xf32, #tpu.memory_space<vmem>>, vector<1x1x8xf32>
      %194 = vector.shape_cast %193 : vector<1x1x8xf32> to vector<1x8xf32>
      %195 = vector.broadcast %194 : vector<1x8xf32> to vector<8x8xf32>
      %196 = arith.addf %192, %195 : vector<8x8xf32>
      %197 = arith.truncf %189 : vector<8x8xf32> to vector<8x8xbf16>
      %c0_119 = arith.constant 0 : index
      %c0_120 = arith.constant 0 : index
      %c0_121 = arith.constant 0 : index
      %198 = vector.load %arg21[%c0_119, %c0_120, %c0_121] : memref<4x8x8xbf16, #tpu.memory_space<vmem>>, vector<1x8x8xbf16>
      %199 = vector.shape_cast %198 : vector<1x8x8xbf16> to vector<8x8xbf16>
      %200 = vector.shape_cast %197 : vector<8x8xbf16> to vector<1x8x8xbf16>
      tpu.vector_store %arg21[%c0_119, %c0_120, %c0_121], %200 {strides = array<i32>} : memref<4x8x8xbf16, #tpu.memory_space<vmem>>, vector<1x8x8xbf16>,
      %201 = arith.truncf %196 : vector<8x8xf32> to vector<8x8xbf16>
      %c0_122 = arith.constant 0 : index
      %c0_123 = arith.constant 0 : index
      %c0_124 = arith.constant 0 : index
      %202 = vector.load %arg22[%c0_122, %c0_123, %c0_124] : memref<4x8x8xbf16, #tpu.memory_space<vmem>>, vector<1x8x8xbf16>
      %203 = vector.shape_cast %202 : vector<1x8x8xbf16> to vector<8x8xbf16>
      %204 = vector.shape_cast %201 : vector<8x8xbf16> to vector<1x8x8xbf16>
      tpu.vector_store %arg22[%c0_122, %c0_123, %c0_124], %204 {strides = array<i32>} : memref<4x8x8xbf16, #tpu.memory_space<vmem>>, vector<1x8x8xbf16>,
      %c1_125 = arith.constant 1 : index
      %c0_126 = arith.constant 0 : index
      %c0_127 = arith.constant 0 : index
      %205 = vector.load %arg6[%c1_125, %c0_126, %c0_127] : memref<4x32x8xbf16, #tpu.memory_space<vmem>>, vector<1x32x8xbf16>
      %206 = vector.shape_cast %205 : vector<1x32x8xbf16> to vector<32x8xbf16>
      %cst_128 = arith.constant dense<0.000000e+00> : vector<8x8xf32>
      %207 = tpu.matmul %182, %206, %cst_128 {dimension_numbers = #tpu.dot_dimension_numbers<[1], [0], [0], [1], [0, 0, 1, 1], [], []>} : vector<8x32xbf16>, vector<32x8xbf16>, vector<8x8xf32> -> vector<8x8xf32>
      %c1_129 = arith.constant 1 : index
      %c0_130 = arith.constant 0 : index
      %c0_131 = arith.constant 0 : index
      %208 = vector.load %arg7[%c1_129, %c0_130, %c0_131] : memref<4x1x8xf32, #tpu.memory_space<vmem>>, vector<1x1x8xf32>
      %209 = vector.shape_cast %208 : vector<1x1x8xf32> to vector<1x8xf32>
      %210 = vector.broadcast %209 : vector<1x8xf32> to vector<8x8xf32>
      %211 = arith.addf %207, %210 : vector<8x8xf32>
      %c1_132 = arith.constant 1 : index
      %c0_133 = arith.constant 0 : index
      %c0_134 = arith.constant 0 : index
      %212 = vector.load %arg8[%c1_132, %c0_133, %c0_134] : memref<4x32x8xbf16, #tpu.memory_space<vmem>>, vector<1x32x8xbf16>
      %213 = vector.shape_cast %212 : vector<1x32x8xbf16> to vector<32x8xbf16>
      %cst_135 = arith.constant dense<0.000000e+00> : vector<8x8xf32>
      %214 = tpu.matmul %182, %213, %cst_135 {dimension_numbers = #tpu.dot_dimension_numbers<[1], [0], [0], [1], [0, 0, 1, 1], [], []>} : vector<8x32xbf16>, vector<32x8xbf16>, vector<8x8xf32> -> vector<8x8xf32>
      %c1_136 = arith.constant 1 : index
      %c0_137 = arith.constant 0 : index
      %c0_138 = arith.constant 0 : index
      %215 = vector.load %arg9[%c1_136, %c0_137, %c0_138] : memref<4x1x8xf32, #tpu.memory_space<vmem>>, vector<1x1x8xf32>
      %216 = vector.shape_cast %215 : vector<1x1x8xf32> to vector<1x8xf32>
      %217 = vector.broadcast %216 : vector<1x8xf32> to vector<8x8xf32>
      %218 = arith.addf %214, %217 : vector<8x8xf32>
      %219 = arith.truncf %211 : vector<8x8xf32> to vector<8x8xbf16>
      %c1_139 = arith.constant 1 : index
      %c0_140 = arith.constant 0 : index
      %c0_141 = arith.constant 0 : index
      %220 = vector.load %arg21[%c1_139, %c0_140, %c0_141] : memref<4x8x8xbf16, #tpu.memory_space<vmem>>, vector<1x8x8xbf16>
      %221 = vector.shape_cast %220 : vector<1x8x8xbf16> to vector<8x8xbf16>
      %222 = vector.shape_cast %219 : vector<8x8xbf16> to vector<1x8x8xbf16>
      tpu.vector_store %arg21[%c1_139, %c0_140, %c0_141], %222 {strides = array<i32>} : memref<4x8x8xbf16, #tpu.memory_space<vmem>>, vector<1x8x8xbf16>,
      %223 = arith.truncf %218 : vector<8x8xf32> to vector<8x8xbf16>
      %c1_142 = arith.constant 1 : index
      %c0_143 = arith.constant 0 : index
      %c0_144 = arith.constant 0 : index
      %224 = vector.load %arg22[%c1_142, %c0_143, %c0_144] : memref<4x8x8xbf16, #tpu.memory_space<vmem>>, vector<1x8x8xbf16>
      %225 = vector.shape_cast %224 : vector<1x8x8xbf16> to vector<8x8xbf16>
      %226 = vector.shape_cast %223 : vector<8x8xbf16> to vector<1x8x8xbf16>
      tpu.vector_store %arg22[%c1_142, %c0_143, %c0_144], %226 {strides = array<i32>} : memref<4x8x8xbf16, #tpu.memory_space<vmem>>, vector<1x8x8xbf16>,
      %c2_145 = arith.constant 2 : index
      %c0_146 = arith.constant 0 : index
      %c0_147 = arith.constant 0 : index
      %227 = vector.load %arg6[%c2_145, %c0_146, %c0_147] : memref<4x32x8xbf16, #tpu.memory_space<vmem>>, vector<1x32x8xbf16>
      %228 = vector.shape_cast %227 : vector<1x32x8xbf16> to vector<32x8xbf16>
      %cst_148 = arith.constant dense<0.000000e+00> : vector<8x8xf32>
      %229 = tpu.matmul %182, %228, %cst_148 {dimension_numbers = #tpu.dot_dimension_numbers<[1], [0], [0], [1], [0, 0, 1, 1], [], []>} : vector<8x32xbf16>, vector<32x8xbf16>, vector<8x8xf32> -> vector<8x8xf32>
      %c2_149 = arith.constant 2 : index
      %c0_150 = arith.constant 0 : index
      %c0_151 = arith.constant 0 : index
      %230 = vector.load %arg7[%c2_149, %c0_150, %c0_151] : memref<4x1x8xf32, #tpu.memory_space<vmem>>, vector<1x1x8xf32>
      %231 = vector.shape_cast %230 : vector<1x1x8xf32> to vector<1x8xf32>
      %232 = vector.broadcast %231 : vector<1x8xf32> to vector<8x8xf32>
      %233 = arith.addf %229, %232 : vector<8x8xf32>
      %c2_152 = arith.constant 2 : index
      %c0_153 = arith.constant 0 : index
      %c0_154 = arith.constant 0 : index
      %234 = vector.load %arg8[%c2_152, %c0_153, %c0_154] : memref<4x32x8xbf16, #tpu.memory_space<vmem>>, vector<1x32x8xbf16>
      %235 = vector.shape_cast %234 : vector<1x32x8xbf16> to vector<32x8xbf16>
      %cst_155 = arith.constant dense<0.000000e+00> : vector<8x8xf32>
      %236 = tpu.matmul %182, %235, %cst_155 {dimension_numbers = #tpu.dot_dimension_numbers<[1], [0], [0], [1], [0, 0, 1, 1], [], []>} : vector<8x32xbf16>, vector<32x8xbf16>, vector<8x8xf32> -> vector<8x8xf32>
      %c2_156 = arith.constant 2 : index
      %c0_157 = arith.constant 0 : index
      %c0_158 = arith.constant 0 : index
      %237 = vector.load %arg9[%c2_156, %c0_157, %c0_158] : memref<4x1x8xf32, #tpu.memory_space<vmem>>, vector<1x1x8xf32>
      %238 = vector.shape_cast %237 : vector<1x1x8xf32> to vector<1x8xf32>
      %239 = vector.broadcast %238 : vector<1x8xf32> to vector<8x8xf32>
      %240 = arith.addf %236, %239 : vector<8x8xf32>
      %241 = arith.truncf %233 : vector<8x8xf32> to vector<8x8xbf16>
      %c2_159 = arith.constant 2 : index
      %c0_160 = arith.constant 0 : index
      %c0_161 = arith.constant 0 : index
      %242 = vector.load %arg21[%c2_159, %c0_160, %c0_161] : memref<4x8x8xbf16, #tpu.memory_space<vmem>>, vector<1x8x8xbf16>
      %243 = vector.shape_cast %242 : vector<1x8x8xbf16> to vector<8x8xbf16>
      %244 = vector.shape_cast %241 : vector<8x8xbf16> to vector<1x8x8xbf16>
      tpu.vector_store %arg21[%c2_159, %c0_160, %c0_161], %244 {strides = array<i32>} : memref<4x8x8xbf16, #tpu.memory_space<vmem>>, vector<1x8x8xbf16>,
      %245 = arith.truncf %240 : vector<8x8xf32> to vector<8x8xbf16>
      %c2_162 = arith.constant 2 : index
      %c0_163 = arith.constant 0 : index
      %c0_164 = arith.constant 0 : index
      %246 = vector.load %arg22[%c2_162, %c0_163, %c0_164] : memref<4x8x8xbf16, #tpu.memory_space<vmem>>, vector<1x8x8xbf16>
      %247 = vector.shape_cast %246 : vector<1x8x8xbf16> to vector<8x8xbf16>
      %248 = vector.shape_cast %245 : vector<8x8xbf16> to vector<1x8x8xbf16>
      tpu.vector_store %arg22[%c2_162, %c0_163, %c0_164], %248 {strides = array<i32>} : memref<4x8x8xbf16, #tpu.memory_space<vmem>>, vector<1x8x8xbf16>,
      %c3_165 = arith.constant 3 : index
      %c0_166 = arith.constant 0 : index
      %c0_167 = arith.constant 0 : index
      %249 = vector.load %arg6[%c3_165, %c0_166, %c0_167] : memref<4x32x8xbf16, #tpu.memory_space<vmem>>, vector<1x32x8xbf16>
      %250 = vector.shape_cast %249 : vector<1x32x8xbf16> to vector<32x8xbf16>
      %cst_168 = arith.constant dense<0.000000e+00> : vector<8x8xf32>
      %251 = tpu.matmul %182, %250, %cst_168 {dimension_numbers = #tpu.dot_dimension_numbers<[1], [0], [0], [1], [0, 0, 1, 1], [], []>} : vector<8x32xbf16>, vector<32x8xbf16>, vector<8x8xf32> -> vector<8x8xf32>
      %c3_169 = arith.constant 3 : index
      %c0_170 = arith.constant 0 : index
      %c0_171 = arith.constant 0 : index
      %252 = vector.load %arg7[%c3_169, %c0_170, %c0_171] : memref<4x1x8xf32, #tpu.memory_space<vmem>>, vector<1x1x8xf32>
      %253 = vector.shape_cast %252 : vector<1x1x8xf32> to vector<1x8xf32>
      %254 = vector.broadcast %253 : vector<1x8xf32> to vector<8x8xf32>
      %255 = arith.addf %251, %254 : vector<8x8xf32>
      %c3_172 = arith.constant 3 : index
      %c0_173 = arith.constant 0 : index
      %c0_174 = arith.constant 0 : index
      %256 = vector.load %arg8[%c3_172, %c0_173, %c0_174] : memref<4x32x8xbf16, #tpu.memory_space<vmem>>, vector<1x32x8xbf16>
      %257 = vector.shape_cast %256 : vector<1x32x8xbf16> to vector<32x8xbf16>
      %cst_175 = arith.constant dense<0.000000e+00> : vector<8x8xf32>
      %258 = tpu.matmul %182, %257, %cst_175 {dimension_numbers = #tpu.dot_dimension_numbers<[1], [0], [0], [1], [0, 0, 1, 1], [], []>} : vector<8x32xbf16>, vector<32x8xbf16>, vector<8x8xf32> -> vector<8x8xf32>
      %c3_176 = arith.constant 3 : index
      %c0_177 = arith.constant 0 : index
      %c0_178 = arith.constant 0 : index
      %259 = vector.load %arg9[%c3_176, %c0_177, %c0_178] : memref<4x1x8xf32, #tpu.memory_space<vmem>>, vector<1x1x8xf32>
      %260 = vector.shape_cast %259 : vector<1x1x8xf32> to vector<1x8xf32>
      %261 = vector.broadcast %260 : vector<1x8xf32> to vector<8x8xf32>
      %262 = arith.addf %258, %261 : vector<8x8xf32>
      %263 = arith.truncf %255 : vector<8x8xf32> to vector<8x8xbf16>
      %c3_179 = arith.constant 3 : index
      %c0_180 = arith.constant 0 : index
      %c0_181 = arith.constant 0 : index
      %264 = vector.load %arg21[%c3_179, %c0_180, %c0_181] : memref<4x8x8xbf16, #tpu.memory_space<vmem>>, vector<1x8x8xbf16>
      %265 = vector.shape_cast %264 : vector<1x8x8xbf16> to vector<8x8xbf16>
      %266 = vector.shape_cast %263 : vector<8x8xbf16> to vector<1x8x8xbf16>
      tpu.vector_store %arg21[%c3_179, %c0_180, %c0_181], %266 {strides = array<i32>} : memref<4x8x8xbf16, #tpu.memory_space<vmem>>, vector<1x8x8xbf16>,
      %267 = arith.truncf %262 : vector<8x8xf32> to vector<8x8xbf16>
      %c3_182 = arith.constant 3 : index
      %c0_183 = arith.constant 0 : index
      %c0_184 = arith.constant 0 : index
      %268 = vector.load %arg22[%c3_182, %c0_183, %c0_184] : memref<4x8x8xbf16, #tpu.memory_space<vmem>>, vector<1x8x8xbf16>
      %269 = vector.shape_cast %268 : vector<1x8x8xbf16> to vector<8x8xbf16>
      %270 = vector.shape_cast %267 : vector<8x8xbf16> to vector<1x8x8xbf16>
      tpu.vector_store %arg22[%c3_182, %c0_183, %c0_184], %270 {strides = array<i32>} : memref<4x8x8xbf16, #tpu.memory_space<vmem>>, vector<1x8x8xbf16>,
    } else {
    }
    %c8_i32 = arith.constant 8 : i32
    %3 = arith.muli %arg1, %c8_i32 : i32
    %4 = tpu.assume_multiple %3, 8 : i32
    %c0 = arith.constant 0 : index
    %5 = arith.index_cast %4 : i32 to index
    %c0_1 = arith.constant 0 : index
    %6 = vector.load %arg2[%c0, %5, %c0_1] : memref<1x8x32xbf16, #tpu.memory_space<vmem>>, vector<1x8x32xbf16>
    %7 = vector.shape_cast %6 : vector<1x8x32xbf16> to vector<8x32xbf16>
    %c0_2 = arith.constant 0 : index
    %c0_3 = arith.constant 0 : index
    %c0_4 = arith.constant 0 : index
    %8 = vector.load %arg4[%c0_2, %c0_3, %c0_4] : memref<4x32x8xbf16, #tpu.memory_space<vmem>>, vector<1x32x8xbf16>
    %9 = vector.shape_cast %8 : vector<1x32x8xbf16> to vector<32x8xbf16>
    %cst = arith.constant dense<0.000000e+00> : vector<8x8xf32>
    %10 = tpu.matmul %7, %9, %cst {dimension_numbers = #tpu.dot_dimension_numbers<[1], [0], [0], [1], [0, 0, 1, 1], [], []>} : vector<8x32xbf16>, vector<32x8xbf16>, vector<8x8xf32> -> vector<8x8xf32>
    %c0_5 = arith.constant 0 : index
    %c0_6 = arith.constant 0 : index
    %c0_7 = arith.constant 0 : index
    %11 = vector.load %arg5[%c0_5, %c0_6, %c0_7] : memref<4x1x8xf32, #tpu.memory_space<vmem>>, vector<1x1x8xf32>
    %12 = vector.shape_cast %11 : vector<1x1x8xf32> to vector<1x8xf32>
    %13 = vector.broadcast %12 : vector<1x8xf32> to vector<8x8xf32>
    %14 = arith.addf %10, %13 : vector<8x8xf32>
    %cst_8 = arith.constant 0.353553385 : f32
    %15 = vector.broadcast %cst_8 : f32 to vector<8x8xf32>
    %16 = arith.mulf %14, %15 : vector<8x8xf32>
    %17 = arith.truncf %16 : vector<8x8xf32> to vector<8x8xbf16>
    %c0_9 = arith.constant 0 : index
    %c0_10 = arith.constant 0 : index
    %c0_11 = arith.constant 0 : index
    %18 = vector.load %arg23[%c0_9, %c0_10, %c0_11] : memref<4x8x8xbf16, #tpu.memory_space<vmem>>, vector<1x8x8xbf16>
    %19 = vector.shape_cast %18 : vector<1x8x8xbf16> to vector<8x8xbf16>
    %20 = vector.shape_cast %17 : vector<8x8xbf16> to vector<1x8x8xbf16>
    tpu.vector_store %arg23[%c0_9, %c0_10, %c0_11], %20 {strides = array<i32>} : memref<4x8x8xbf16, #tpu.memory_space<vmem>>, vector<1x8x8xbf16>,
    %c1 = arith.constant 1 : index
    %c0_12 = arith.constant 0 : index
    %c0_13 = arith.constant 0 : index
    %21 = vector.load %arg4[%c1, %c0_12, %c0_13] : memref<4x32x8xbf16, #tpu.memory_space<vmem>>, vector<1x32x8xbf16>
    %22 = vector.shape_cast %21 : vector<1x32x8xbf16> to vector<32x8xbf16>
    %cst_14 = arith.constant dense<0.000000e+00> : vector<8x8xf32>
    %23 = tpu.matmul %7, %22, %cst_14 {dimension_numbers = #tpu.dot_dimension_numbers<[1], [0], [0], [1], [0, 0, 1, 1], [], []>} : vector<8x32xbf16>, vector<32x8xbf16>, vector<8x8xf32> -> vector<8x8xf32>
    %c1_15 = arith.constant 1 : index
    %c0_16 = arith.constant 0 : index
    %c0_17 = arith.constant 0 : index
    %24 = vector.load %arg5[%c1_15, %c0_16, %c0_17] : memref<4x1x8xf32, #tpu.memory_space<vmem>>, vector<1x1x8xf32>
    %25 = vector.shape_cast %24 : vector<1x1x8xf32> to vector<1x8xf32>
    %26 = vector.broadcast %25 : vector<1x8xf32> to vector<8x8xf32>
    %27 = arith.addf %23, %26 : vector<8x8xf32>
    %cst_18 = arith.constant 0.353553385 : f32
    %28 = vector.broadcast %cst_18 : f32 to vector<8x8xf32>
    %29 = arith.mulf %27, %28 : vector<8x8xf32>
    %30 = arith.truncf %29 : vector<8x8xf32> to vector<8x8xbf16>
    %c1_19 = arith.constant 1 : index
    %c0_20 = arith.constant 0 : index
    %c0_21 = arith.constant 0 : index
    %31 = vector.load %arg23[%c1_19, %c0_20, %c0_21] : memref<4x8x8xbf16, #tpu.memory_space<vmem>>, vector<1x8x8xbf16>
    %32 = vector.shape_cast %31 : vector<1x8x8xbf16> to vector<8x8xbf16>
    %33 = vector.shape_cast %30 : vector<8x8xbf16> to vector<1x8x8xbf16>
    tpu.vector_store %arg23[%c1_19, %c0_20, %c0_21], %33 {strides = array<i32>} : memref<4x8x8xbf16, #tpu.memory_space<vmem>>, vector<1x8x8xbf16>,
    %c2 = arith.constant 2 : index
    %c0_22 = arith.constant 0 : index
    %c0_23 = arith.constant 0 : index
    %34 = vector.load %arg4[%c2, %c0_22, %c0_23] : memref<4x32x8xbf16, #tpu.memory_space<vmem>>, vector<1x32x8xbf16>
    %35 = vector.shape_cast %34 : vector<1x32x8xbf16> to vector<32x8xbf16>
    %cst_24 = arith.constant dense<0.000000e+00> : vector<8x8xf32>
    %36 = tpu.matmul %7, %35, %cst_24 {dimension_numbers = #tpu.dot_dimension_numbers<[1], [0], [0], [1], [0, 0, 1, 1], [], []>} : vector<8x32xbf16>, vector<32x8xbf16>, vector<8x8xf32> -> vector<8x8xf32>
    %c2_25 = arith.constant 2 : index
    %c0_26 = arith.constant 0 : index
    %c0_27 = arith.constant 0 : index
    %37 = vector.load %arg5[%c2_25, %c0_26, %c0_27] : memref<4x1x8xf32, #tpu.memory_space<vmem>>, vector<1x1x8xf32>
    %38 = vector.shape_cast %37 : vector<1x1x8xf32> to vector<1x8xf32>
    %39 = vector.broadcast %38 : vector<1x8xf32> to vector<8x8xf32>
    %40 = arith.addf %36, %39 : vector<8x8xf32>
    %cst_28 = arith.constant 0.353553385 : f32
    %41 = vector.broadcast %cst_28 : f32 to vector<8x8xf32>
    %42 = arith.mulf %40, %41 : vector<8x8xf32>
    %43 = arith.truncf %42 : vector<8x8xf32> to vector<8x8xbf16>
    %c2_29 = arith.constant 2 : index
    %c0_30 = arith.constant 0 : index
    %c0_31 = arith.constant 0 : index
    %44 = vector.load %arg23[%c2_29, %c0_30, %c0_31] : memref<4x8x8xbf16, #tpu.memory_space<vmem>>, vector<1x8x8xbf16>
    %45 = vector.shape_cast %44 : vector<1x8x8xbf16> to vector<8x8xbf16>
    %46 = vector.shape_cast %43 : vector<8x8xbf16> to vector<1x8x8xbf16>
    tpu.vector_store %arg23[%c2_29, %c0_30, %c0_31], %46 {strides = array<i32>} : memref<4x8x8xbf16, #tpu.memory_space<vmem>>, vector<1x8x8xbf16>,
    %c3 = arith.constant 3 : index
    %c0_32 = arith.constant 0 : index
    %c0_33 = arith.constant 0 : index
    %47 = vector.load %arg4[%c3, %c0_32, %c0_33] : memref<4x32x8xbf16, #tpu.memory_space<vmem>>, vector<1x32x8xbf16>
    %48 = vector.shape_cast %47 : vector<1x32x8xbf16> to vector<32x8xbf16>
    %cst_34 = arith.constant dense<0.000000e+00> : vector<8x8xf32>
    %49 = tpu.matmul %7, %48, %cst_34 {dimension_numbers = #tpu.dot_dimension_numbers<[1], [0], [0], [1], [0, 0, 1, 1], [], []>} : vector<8x32xbf16>, vector<32x8xbf16>, vector<8x8xf32> -> vector<8x8xf32>
    %c3_35 = arith.constant 3 : index
    %c0_36 = arith.constant 0 : index
    %c0_37 = arith.constant 0 : index
    %50 = vector.load %arg5[%c3_35, %c0_36, %c0_37] : memref<4x1x8xf32, #tpu.memory_space<vmem>>, vector<1x1x8xf32>
    %51 = vector.shape_cast %50 : vector<1x1x8xf32> to vector<1x8xf32>
    %52 = vector.broadcast %51 : vector<1x8xf32> to vector<8x8xf32>
    %53 = arith.addf %49, %52 : vector<8x8xf32>
    %cst_38 = arith.constant 0.353553385 : f32
    %54 = vector.broadcast %cst_38 : f32 to vector<8x8xf32>
    %55 = arith.mulf %53, %54 : vector<8x8xf32>
    %56 = arith.truncf %55 : vector<8x8xf32> to vector<8x8xbf16>
    %c3_39 = arith.constant 3 : index
    %c0_40 = arith.constant 0 : index
    %c0_41 = arith.constant 0 : index
    %57 = vector.load %arg23[%c3_39, %c0_40, %c0_41] : memref<4x8x8xbf16, #tpu.memory_space<vmem>>, vector<1x8x8xbf16>
    %58 = vector.shape_cast %57 : vector<1x8x8xbf16> to vector<8x8xbf16>
    %59 = vector.shape_cast %56 : vector<8x8xbf16> to vector<1x8x8xbf16>
    tpu.vector_store %arg23[%c3_39, %c0_40, %c0_41], %59 {strides = array<i32>} : memref<4x8x8xbf16, #tpu.memory_space<vmem>>, vector<1x8x8xbf16>,
    %c0_42 = arith.constant 0 : index
    %c0_43 = arith.constant 0 : index
    %c0_44 = arith.constant 0 : index
    %60 = vector.load %arg23[%c0_42, %c0_43, %c0_44] : memref<4x8x8xbf16, #tpu.memory_space<vmem>>, vector<4x8x8xbf16>
    %c0_45 = arith.constant 0 : index
    %c0_46 = arith.constant 0 : index
    %c0_47 = arith.constant 0 : index
    %61 = vector.load %arg21[%c0_45, %c0_46, %c0_47] : memref<4x8x8xbf16, #tpu.memory_space<vmem>>, vector<4x8x8xbf16>
    %c0_48 = arith.constant 0 : index
    %c0_49 = arith.constant 0 : index
    %c0_50 = arith.constant 0 : index
    %62 = vector.load %arg22[%c0_48, %c0_49, %c0_50] : memref<4x8x8xbf16, #tpu.memory_space<vmem>>, vector<4x8x8xbf16>
    %cst_51 = arith.constant dense<0.000000e+00> : vector<4x8x8xf32>
    %63 = tpu.matmul %60, %61, %cst_51 {dimension_numbers = #tpu.dot_dimension_numbers<[2], [2], [1], [1], [0, 0, 0, 1, 1, 1], [0], [0]>} : vector<4x8x8xbf16>, vector<4x8x8xbf16>, vector<4x8x8xf32> -> vector<4x8x8xf32>
    %cst_52 = arith.constant dense<0xFF800000> : vector<4x8xf32>
    %64 = vector.multi_reduction <maximumf>, %63, %cst_52 [2] : vector<4x8x8xf32> to vector<4x8xf32>
    %65 = vector.shape_cast %64 : vector<4x8xf32> to vector<4x8x1xf32>
    %66 = vector.broadcast %65 : vector<4x8x1xf32> to vector<4x8x8xf32>
    %67 = arith.subf %63, %66 : vector<4x8x8xf32>
    %68 = math.exp %67 : vector<4x8x8xf32>
    %cst_53 = arith.constant dense<0.000000e+00> : vector<4x8xf32>
    %69 = vector.multi_reduction <add>, %68, %cst_53 [2] : vector<4x8x8xf32> to vector<4x8xf32>
    %70 = vector.shape_cast %69 : vector<4x8xf32> to vector<4x8x1xf32>
    %71 = arith.truncf %68 : vector<4x8x8xf32> to vector<4x8x8xbf16>
    %cst_54 = arith.constant dense<0.000000e+00> : vector<4x8x8xf32>
    %72 = tpu.matmul %71, %62, %cst_54 {dimension_numbers = #tpu.dot_dimension_numbers<[2], [1], [1], [2], [0, 0, 0, 1, 1, 2], [0], [0]>} : vector<4x8x8xbf16>, vector<4x8x8xbf16>, vector<4x8x8xf32> -> vector<4x8x8xf32>
    %73 = tpu.reciprocal %70 : vector<4x8x1xf32> -> vector<4x8x1xf32>
    %74 = vector.extract_strided_slice %72 {offsets = [0, 0, 0], sizes = [1, 8, 8], strides = [1, 1, 1]} : vector<4x8x8xf32> to vector<1x8x8xf32>
    %75 = vector.shape_cast %74 : vector<1x8x8xf32> to vector<8x8xf32>
    %76 = vector.extract_strided_slice %73 {offsets = [0, 0, 0], sizes = [1, 8, 1], strides = [1, 1, 1]} : vector<4x8x1xf32> to vector<1x8x1xf32>
    %77 = vector.shape_cast %76 : vector<1x8x1xf32> to vector<8x1xf32>
    %78 = vector.broadcast %77 : vector<8x1xf32> to vector<8x8xf32>
    %79 = arith.mulf %75, %78 : vector<8x8xf32>
    %80 = arith.truncf %79 : vector<8x8xf32> to vector<8x8xbf16>
    %c0_55 = arith.constant 0 : index
    %c0_56 = arith.constant 0 : index
    %81 = vector.load %arg24[%c0_55, %c0_56] : memref<8x32xbf16, #tpu.memory_space<vmem>>, vector<8x8xbf16>
    tpu.vector_store %arg24[%c0_55, %c0_56], %80 {strides = array<i32>} : memref<8x32xbf16, #tpu.memory_space<vmem>>, vector<8x8xbf16>,
    %82 = vector.extract_strided_slice %72 {offsets = [1, 0, 0], sizes = [1, 8, 8], strides = [1, 1, 1]} : vector<4x8x8xf32> to vector<1x8x8xf32>
    %83 = vector.shape_cast %82 : vector<1x8x8xf32> to vector<8x8xf32>
    %84 = vector.extract_strided_slice %73 {offsets = [1, 0, 0], sizes = [1, 8, 1], strides = [1, 1, 1]} : vector<4x8x1xf32> to vector<1x8x1xf32>
    %85 = vector.shape_cast %84 : vector<1x8x1xf32> to vector<8x1xf32>
    %86 = vector.broadcast %85 : vector<8x1xf32> to vector<8x8xf32>
    %87 = arith.mulf %83, %86 : vector<8x8xf32>
    %88 = arith.truncf %87 : vector<8x8xf32> to vector<8x8xbf16>
    %c0_57 = arith.constant 0 : index
    %c8 = arith.constant 8 : index
    %89 = vector.load %arg24[%c0_57, %c8] : memref<8x32xbf16, #tpu.memory_space<vmem>>, vector<8x8xbf16>
    tpu.vector_store %arg24[%c0_57, %c8], %88 {strides = array<i32>} : memref<8x32xbf16, #tpu.memory_space<vmem>>, vector<8x8xbf16>,
    %90 = vector.extract_strided_slice %72 {offsets = [2, 0, 0], sizes = [1, 8, 8], strides = [1, 1, 1]} : vector<4x8x8xf32> to vector<1x8x8xf32>
    %91 = vector.shape_cast %90 : vector<1x8x8xf32> to vector<8x8xf32>
    %92 = vector.extract_strided_slice %73 {offsets = [2, 0, 0], sizes = [1, 8, 1], strides = [1, 1, 1]} : vector<4x8x1xf32> to vector<1x8x1xf32>
    %93 = vector.shape_cast %92 : vector<1x8x1xf32> to vector<8x1xf32>
    %94 = vector.broadcast %93 : vector<8x1xf32> to vector<8x8xf32>
    %95 = arith.mulf %91, %94 : vector<8x8xf32>
    %96 = arith.truncf %95 : vector<8x8xf32> to vector<8x8xbf16>
    %c0_58 = arith.constant 0 : index
    %c16 = arith.constant 16 : index
    %97 = vector.load %arg24[%c0_58, %c16] : memref<8x32xbf16, #tpu.memory_space<vmem>>, vector<8x8xbf16>
    tpu.vector_store %arg24[%c0_58, %c16], %96 {strides = array<i32>} : memref<8x32xbf16, #tpu.memory_space<vmem>>, vector<8x8xbf16>,
    %98 = vector.extract_strided_slice %72 {offsets = [3, 0, 0], sizes = [1, 8, 8], strides = [1, 1, 1]} : vector<4x8x8xf32> to vector<1x8x8xf32>
    %99 = vector.shape_cast %98 : vector<1x8x8xf32> to vector<8x8xf32>
    %100 = vector.extract_strided_slice %73 {offsets = [3, 0, 0], sizes = [1, 8, 1], strides = [1, 1, 1]} : vector<4x8x1xf32> to vector<1x8x1xf32>
    %101 = vector.shape_cast %100 : vector<1x8x1xf32> to vector<8x1xf32>
    %102 = vector.broadcast %101 : vector<8x1xf32> to vector<8x8xf32>
    %103 = arith.mulf %99, %102 : vector<8x8xf32>
    %104 = arith.truncf %103 : vector<8x8xf32> to vector<8x8xbf16>
    %c0_59 = arith.constant 0 : index
    %c24 = arith.constant 24 : index
    %105 = vector.load %arg24[%c0_59, %c24] : memref<8x32xbf16, #tpu.memory_space<vmem>>, vector<8x8xbf16>
    tpu.vector_store %arg24[%c0_59, %c24], %104 {strides = array<i32>} : memref<8x32xbf16, #tpu.memory_space<vmem>>, vector<8x8xbf16>,
    %c0_60 = arith.constant 0 : index
    %c0_61 = arith.constant 0 : index
    %106 = vector.load %arg24[%c0_60, %c0_61] : memref<8x32xbf16, #tpu.memory_space<vmem>>, vector<8x32xbf16>
    %c0_62 = arith.constant 0 : index
    %c0_63 = arith.constant 0 : index
    %107 = vector.load %arg10[%c0_62, %c0_63] : memref<32x32xbf16, #tpu.memory_space<vmem>>, vector<32x32xbf16>
    %cst_64 = arith.constant dense<0.000000e+00> : vector<8x32xf32>
    %108 = tpu.matmul %106, %107, %cst_64 {dimension_numbers = #tpu.dot_dimension_numbers<[1], [0], [0], [1], [0, 0, 1, 1], [], []>} : vector<8x32xbf16>, vector<32x32xbf16>, vector<8x32xf32> -> vector<8x32xf32>
    %c0_65 = arith.constant 0 : index
    %c0_66 = arith.constant 0 : index
    %109 = vector.load %arg11[%c0_65, %c0_66] : memref<1x32xf32, #tpu.memory_space<vmem>>, vector<1x32xf32>
    %110 = vector.broadcast %109 : vector<1x32xf32> to vector<8x32xf32>
    %111 = arith.addf %108, %110 : vector<8x32xf32>
    %c0_67 = arith.constant 0 : index
    %c0_68 = arith.constant 0 : index
    %c0_69 = arith.constant 0 : index
    %112 = vector.load %arg3[%c0_67, %c0_68, %c0_69] : memref<1x8x32xf32, #tpu.memory_space<vmem>>, vector<1x8x32xf32>
    %113 = vector.shape_cast %112 : vector<1x8x32xf32> to vector<8x32xf32>
    %114 = arith.addf %111, %113 : vector<8x32xf32>
    %c0_70 = arith.constant 0 : index
    %c0_71 = arith.constant 0 : index
    %115 = vector.load %arg12[%c0_70, %c0_71] : memref<1x32xf32, #tpu.memory_space<vmem>>, vector<1x32xf32>
    %c0_72 = arith.constant 0 : index
    %c0_73 = arith.constant 0 : index
    %116 = vector.load %arg13[%c0_72, %c0_73] : memref<1x32xf32, #tpu.memory_space<vmem>>, vector<1x32xf32>
    %cst_74 = arith.constant dense<0.000000e+00> : vector<8xf32>
    %117 = vector.multi_reduction <add>, %114, %cst_74 [1] : vector<8x32xf32> to vector<8xf32>
    %118 = vector.shape_cast %117 : vector<8xf32> to vector<8x1xf32>
    %cst_75 = arith.constant 3.200000e+01 : f32
    %119 = vector.broadcast %cst_75 : f32 to vector<8x1xf32>
    %120 = arith.divf %118, %119 : vector<8x1xf32>
    %121 = vector.broadcast %120 : vector<8x1xf32> to vector<8x32xf32>
    %122 = arith.subf %114, %121 : vector<8x32xf32>
    %123 = arith.mulf %122, %122 : vector<8x32xf32>
    %cst_76 = arith.constant dense<0.000000e+00> : vector<8xf32>
    %124 = vector.multi_reduction <add>, %123, %cst_76 [1] : vector<8x32xf32> to vector<8xf32>
    %125 = vector.shape_cast %124 : vector<8xf32> to vector<8x1xf32>
    %cst_77 = arith.constant 3.200000e+01 : f32
    %126 = vector.broadcast %cst_77 : f32 to vector<8x1xf32>
    %127 = arith.divf %125, %126 : vector<8x1xf32>
    %cst_78 = arith.constant 9.99999974E-6 : f32
    %128 = vector.broadcast %cst_78 : f32 to vector<8x1xf32>
    %129 = arith.addf %127, %128 : vector<8x1xf32>
    %130 = math.rsqrt %129 : vector<8x1xf32>
    %131 = vector.broadcast %120 : vector<8x1xf32> to vector<8x32xf32>
    %132 = arith.subf %114, %131 : vector<8x32xf32>
    %133 = vector.broadcast %115 : vector<1x32xf32> to vector<8x32xf32>
    %134 = vector.broadcast %130 : vector<8x1xf32> to vector<8x32xf32>
    %135 = arith.mulf %133, %134 : vector<8x32xf32>
    %136 = arith.mulf %132, %135 : vector<8x32xf32>
    %137 = vector.broadcast %116 : vector<1x32xf32> to vector<8x32xf32>
    %138 = arith.addf %136, %137 : vector<8x32xf32>
    %139 = arith.truncf %138 : vector<8x32xf32> to vector<8x32xbf16>
    %c0_79 = arith.constant 0 : index
    %c0_80 = arith.constant 0 : index
    %140 = vector.load %arg14[%c0_79, %c0_80] : memref<32x128xbf16, #tpu.memory_space<vmem>>, vector<32x128xbf16>
    %cst_81 = arith.constant dense<0.000000e+00> : vector<8x128xf32>
    %141 = tpu.matmul %139, %140, %cst_81 {dimension_numbers = #tpu.dot_dimension_numbers<[1], [0], [0], [1], [0, 0, 1, 1], [], []>} : vector<8x32xbf16>, vector<32x128xbf16>, vector<8x128xf32> -> vector<8x128xf32>
    %c0_82 = arith.constant 0 : index
    %c0_83 = arith.constant 0 : index
    %142 = vector.load %arg15[%c0_82, %c0_83] : memref<1x128xf32, #tpu.memory_space<vmem>>, vector<1x128xf32>
    %143 = vector.broadcast %142 : vector<1x128xf32> to vector<8x128xf32>
    %144 = arith.addf %141, %143 : vector<8x128xf32>
    %cst_84 = arith.constant 0.000000e+00 : f32
    %145 = vector.broadcast %cst_84 : f32 to vector<8x128xf32>
    %146 = arith.maximumf %144, %145 : vector<8x128xf32>
    %147 = arith.truncf %146 : vector<8x128xf32> to vector<8x128xbf16>
    %c0_85 = arith.constant 0 : index
    %c0_86 = arith.constant 0 : index
    %148 = vector.load %arg16[%c0_85, %c0_86] : memref<128x32xbf16, #tpu.memory_space<vmem>>, vector<128x32xbf16>
    %cst_87 = arith.constant dense<0.000000e+00> : vector<8x32xf32>
    %149 = tpu.matmul %147, %148, %cst_87 {dimension_numbers = #tpu.dot_dimension_numbers<[1], [0], [0], [1], [0, 0, 1, 1], [], []>} : vector<8x128xbf16>, vector<128x32xbf16>, vector<8x32xf32> -> vector<8x32xf32>
    %c0_88 = arith.constant 0 : index
    %c0_89 = arith.constant 0 : index
    %150 = vector.load %arg17[%c0_88, %c0_89] : memref<1x32xf32, #tpu.memory_space<vmem>>, vector<1x32xf32>
    %151 = vector.broadcast %150 : vector<1x32xf32> to vector<8x32xf32>
    %152 = arith.addf %149, %151 : vector<8x32xf32>
    %153 = arith.addf %152, %138 : vector<8x32xf32>
    %c0_90 = arith.constant 0 : index
    %c0_91 = arith.constant 0 : index
    %154 = vector.load %arg18[%c0_90, %c0_91] : memref<1x32xf32, #tpu.memory_space<vmem>>, vector<1x32xf32>
    %c0_92 = arith.constant 0 : index
    %c0_93 = arith.constant 0 : index
    %155 = vector.load %arg19[%c0_92, %c0_93] : memref<1x32xf32, #tpu.memory_space<vmem>>, vector<1x32xf32>
    %cst_94 = arith.constant dense<0.000000e+00> : vector<8xf32>
    %156 = vector.multi_reduction <add>, %153, %cst_94 [1] : vector<8x32xf32> to vector<8xf32>
    %157 = vector.shape_cast %156 : vector<8xf32> to vector<8x1xf32>
    %cst_95 = arith.constant 3.200000e+01 : f32
    %158 = vector.broadcast %cst_95 : f32 to vector<8x1xf32>
    %159 = arith.divf %157, %158 : vector<8x1xf32>
    %160 = vector.broadcast %159 : vector<8x1xf32> to vector<8x32xf32>
    %161 = arith.subf %153, %160 : vector<8x32xf32>
    %162 = arith.mulf %161, %161 : vector<8x32xf32>
    %cst_96 = arith.constant dense<0.000000e+00> : vector<8xf32>
    %163 = vector.multi_reduction <add>, %162, %cst_96 [1] : vector<8x32xf32> to vector<8xf32>
    %164 = vector.shape_cast %163 : vector<8xf32> to vector<8x1xf32>
    %cst_97 = arith.constant 3.200000e+01 : f32
    %165 = vector.broadcast %cst_97 : f32 to vector<8x1xf32>
    %166 = arith.divf %164, %165 : vector<8x1xf32>
    %cst_98 = arith.constant 9.99999974E-6 : f32
    %167 = vector.broadcast %cst_98 : f32 to vector<8x1xf32>
    %168 = arith.addf %166, %167 : vector<8x1xf32>
    %169 = math.rsqrt %168 : vector<8x1xf32>
    %170 = vector.broadcast %159 : vector<8x1xf32> to vector<8x32xf32>
    %171 = arith.subf %153, %170 : vector<8x32xf32>
    %172 = vector.broadcast %154 : vector<1x32xf32> to vector<8x32xf32>
    %173 = vector.broadcast %169 : vector<8x1xf32> to vector<8x32xf32>
    %174 = arith.mulf %172, %173 : vector<8x32xf32>
    %175 = arith.mulf %171, %174 : vector<8x32xf32>
    %176 = vector.broadcast %155 : vector<1x32xf32> to vector<8x32xf32>
    %177 = arith.addf %175, %176 : vector<8x32xf32>
    %c0_99 = arith.constant 0 : index
    %c0_100 = arith.constant 0 : index
    %c0_101 = arith.constant 0 : index
    %178 = vector.load %arg20[%c0_99, %c0_100, %c0_101] : memref<1x8x32xf32, #tpu.memory_space<vmem>>, vector<1x8x32xf32>
    %179 = vector.shape_cast %178 : vector<1x8x32xf32> to vector<8x32xf32>
    %180 = vector.shape_cast %177 : vector<8x32xf32> to vector<1x8x32xf32>
    tpu.vector_store %arg20[%c0_99, %c0_100, %c0_101], %180 {strides = array<i32>} : memref<1x8x32xf32, #tpu.memory_space<vmem>>, vector<1x8x32xf32>,
    return
  }
  func.func @transform_0(%arg0: i32, %arg1: i32) -> (i32, i32, i32) {
    %c0_i32 = arith.constant 0 : i32
    %c0_i32_0 = arith.constant 0 : i32
    %c0_i32_1 = arith.constant 0 : i32
    return %arg0, %c0_i32, %c0_i32_0 : i32, i32, i32
  }
  func.func @transform_1(%arg0: i32, %arg1: i32) -> (i32, i32, i32) {
    %c0_i32 = arith.constant 0 : i32
    %c0_i32_0 = arith.constant 0 : i32
    return %arg0, %arg1, %c0_i32 : i32, i32, i32
  }
  func.func @transform_2(%arg0: i32, %arg1: i32) -> (i32, i32, i32) {
    %c0_i32 = arith.constant 0 : i32
    %c0_i32_0 = arith.constant 0 : i32
    %c0_i32_1 = arith.constant 0 : i32
    %c0_i32_2 = arith.constant 0 : i32
    return %c0_i32, %c0_i32_0, %c0_i32_1 : i32, i32, i32
  }
  func.func @transform_3(%arg0: i32, %arg1: i32) -> (i32, i32, i32) {
    %c0_i32 = arith.constant 0 : i32
    %c0_i32_0 = arith.constant 0 : i32
    %c0_i32_1 = arith.constant 0 : i32
    %c0_i32_2 = arith.constant 0 : i32
    return %c0_i32, %c0_i32_0, %c0_i32_1 : i32, i32, i32
  }
  func.func @transform_4(%arg0: i32, %arg1: i32) -> (i32, i32, i32) {
    %c0_i32 = arith.constant 0 : i32
    %c0_i32_0 = arith.constant 0 : i32
    %c0_i32_1 = arith.constant 0 : i32
    %c0_i32_2 = arith.constant 0 : i32
    return %c0_i32, %c0_i32_0, %c0_i32_1 : i32, i32, i32
  }
  func.func @transform_5(%arg0: i32, %arg1: i32) -> (i32, i32, i32) {
    %c0_i32 = arith.constant 0 : i32
    %c0_i32_0 = arith.constant 0 : i32
    %c0_i32_1 = arith.constant 0 : i32
    %c0_i32_2 = arith.constant 0 : i32
    return %c0_i32, %c0_i32_0, %c0_i32_1 : i32, i32, i32
  }
  func.func @transform_6(%arg0: i32, %arg1: i32) -> (i32, i32, i32) {
    %c0_i32 = arith.constant 0 : i32
    %c0_i32_0 = arith.constant 0 : i32
    %c0_i32_1 = arith.constant 0 : i32
    %c0_i32_2 = arith.constant 0 : i32
    return %c0_i32, %c0_i32_0, %c0_i32_1 : i32, i32, i32
  }
  func.func @transform_7(%arg0: i32, %arg1: i32) -> (i32, i32, i32) {
    %c0_i32 = arith.constant 0 : i32
    %c0_i32_0 = arith.constant 0 : i32
    %c0_i32_1 = arith.constant 0 : i32
    %c0_i32_2 = arith.constant 0 : i32
    return %c0_i32, %c0_i32_0, %c0_i32_1 : i32, i32, i32
  }
  func.func @transform_8(%arg0: i32, %arg1: i32) -> (i32, i32) {
    %c0_i32 = arith.constant 0 : i32
    %c0_i32_0 = arith.constant 0 : i32
    %c0_i32_1 = arith.constant 0 : i32
    return %c0_i32, %c0_i32_0 : i32, i32
  }
  func.func @transform_9(%arg0: i32, %arg1: i32) -> (i32, i32) {
    %c0_i32 = arith.constant 0 : i32
    %c0_i32_0 = arith.constant 0 : i32
    %c0_i32_1 = arith.constant 0 : i32
    return %c0_i32, %c0_i32_0 : i32, i32
  }
  func.func @transform_10(%arg0: i32, %arg1: i32) -> (i32, i32) {
    %c0_i32 = arith.constant 0 : i32
    %c0_i32_0 = arith.constant 0 : i32
    %c0_i32_1 = arith.constant 0 : i32
    return %c0_i32, %c0_i32_0 : i32, i32
  }
  func.func @transform_11(%arg0: i32, %arg1: i32) -> (i32, i32) {
    %c0_i32 = arith.constant 0 : i32
    %c0_i32_0 = arith.constant 0 : i32
    %c0_i32_1 = arith.constant 0 : i32
    return %c0_i32, %c0_i32_0 : i32, i32
  }
  func.func @transform_12(%arg0: i32, %arg1: i32) -> (i32, i32) {
    %c0_i32 = arith.constant 0 : i32
    %c0_i32_0 = arith.constant 0 : i32
    %c0_i32_1 = arith.constant 0 : i32
    return %c0_i32, %c0_i32_0 : i32, i32
  }
  func.func @transform_13(%arg0: i32, %arg1: i32) -> (i32, i32) {
    %c0_i32 = arith.constant 0 : i32
    %c0_i32_0 = arith.constant 0 : i32
    %c0_i32_1 = arith.constant 0 : i32
    return %c0_i32, %c0_i32_0 : i32, i32
  }
  func.func @transform_14(%arg0: i32, %arg1: i32) -> (i32, i32) {
    %c0_i32 = arith.constant 0 : i32
    %c0_i32_0 = arith.constant 0 : i32
    %c0_i32_1 = arith.constant 0 : i32
    return %c0_i32, %c0_i32_0 : i32, i32
  }
  func.func @transform_15(%arg0: i32, %arg1: i32) -> (i32, i32) {
    %c0_i32 = arith.constant 0 : i32
    %c0_i32_0 = arith.constant 0 : i32
    %c0_i32_1 = arith.constant 0 : i32
    return %c0_i32, %c0_i32_0 : i32, i32
  }
  func.func @transform_16(%arg0: i32, %arg1: i32) -> (i32, i32) {
    %c0_i32 = arith.constant 0 : i32
    %c0_i32_0 = arith.constant 0 : i32
    %c0_i32_1 = arith.constant 0 : i32
    return %c0_i32, %c0_i32_0 : i32, i32
  }
  func.func @transform_17(%arg0: i32, %arg1: i32) -> (i32, i32) {
    %c0_i32 = arith.constant 0 : i32
    %c0_i32_0 = arith.constant 0 : i32
    %c0_i32_1 = arith.constant 0 : i32
    return %c0_i32, %c0_i32_0 : i32, i32
  }
  func.func @transform_18(%arg0: i32, %arg1: i32) -> (i32, i32, i32) {
    %c0_i32 = arith.constant 0 : i32
    %c0_i32_0 = arith.constant 0 : i32
    return %arg0, %arg1, %c0_i32 : i32, i32, i32
  }
}

</mosaic_0001>

<llo_original>
// kernel: tpu_custom_call.1
$region0: #{tpu_custom_call.1}
  #allocation0 [shape = 'u32[]', space=smem, size = 0x4, offset = 0x4, fixed_abs, tag = 'smem constant byte address 0x4 - core index']
  #allocation1 [shape = 'u32[144,128]{1,0:T(1,128)}', space=vmem, size = 0x12000, scoped, tag = 'internal scratch']
  #allocation2 [shape = 'bf16[4,8,8]{2,1,0:T(8,128)(2,1)}', space=vmem, size = 0x2000, scoped, tag = 'scratch operand']
  #allocation3 [shape = 'bf16[4,8,8]{2,1,0:T(8,128)(2,1)}', space=vmem, size = 0x2000, scoped, tag = 'scratch operand']
  #allocation4 [shape = 'bf16[4,8,8]{2,1,0:T(8,128)(2,1)}', space=vmem, size = 0x2000, scoped, tag = 'scratch operand']
  #allocation5 [shape = 'bf16[8,32]{1,0:T(8,128)(2,1)}', space=vmem, size = 0x800, scoped, tag = 'scratch operand']
  %s0 = inlined_call_operand.vmem [shape: bf16[2,8,32], index: 0, kind: input, shape index: {}]
  %s1 = inlined_call_operand.vmem [shape: f32[2,8,32], index: 1, kind: input, shape index: {}]
  %s2 = inlined_call_operand.vmem [shape: bf16[4,32,8], index: 2, kind: input, shape index: {}]
  %s3 = inlined_call_operand.vmem [shape: f32[4,1,8], index: 3, kind: input, shape index: {}]
  %s4 = inlined_call_operand.vmem [shape: bf16[4,32,8], index: 4, kind: input, shape index: {}]
  %s5 = inlined_call_operand.vmem [shape: f32[4,1,8], index: 5, kind: input, shape index: {}]
  %s6 = inlined_call_operand.vmem [shape: bf16[4,32,8], index: 6, kind: input, shape index: {}]
  %s7 = inlined_call_operand.vmem [shape: f32[4,1,8], index: 7, kind: input, shape index: {}]
  %s8 = inlined_call_operand.vmem [shape: bf16[32,32], index: 8, kind: input, shape index: {}]
  %s9 = inlined_call_operand.vmem [shape: f32[1,32], index: 9, kind: input, shape index: {}]
  %s10 = inlined_call_operand.vmem [shape: f32[1,32], index: 10, kind: input, shape index: {}]
  %s11 = inlined_call_operand.vmem [shape: f32[1,32], index: 11, kind: input, shape index: {}]
  %s12 = inlined_call_operand.vmem [shape: bf16[32,128], index: 12, kind: input, shape index: {}]
  %s13 = inlined_call_operand.vmem [shape: f32[1,128], index: 13, kind: input, shape index: {}]
  %s14 = inlined_call_operand.vmem [shape: bf16[128,32], index: 14, kind: input, shape index: {}]
  %s15 = inlined_call_operand.vmem [shape: f32[1,32], index: 15, kind: input, shape index: {}]
  %s16 = inlined_call_operand.vmem [shape: f32[1,32], index: 16, kind: input, shape index: {}]
  %s17 = inlined_call_operand.vmem [shape: f32[1,32], index: 17, kind: input, shape index: {}]
  %s18 = inlined_call_operand.hbm [shape: f32[2,8,32], index: 18, kind: output, shape index: {}]
  %s19 = sld [smem:[#allocation0]]
  $region109: #{tpu_custom_call.1} parent=0
    _
  %s21 = ssub.s32 1, %s19
  %s22 = scalar_select 0, %s21, %s19
  $region1: #{tpu_custom_call.1} parent=0
    #allocation6 [shape = 'u8[8192]{0}', space=vmem, size = 0x2000, scoped, tag = 'output window, operand 0']
    #allocation7 [shape = 's32[2]{0}', space=sflag, size = 0x8, scoped, tag = 'scoped memory for tpu_custom_call.1']
    %23 = vsyncpa [#allocation7], 0
    %s24 = scalar_lea.sflag [#allocation7], 1
    %25 = vsyncpa %s24, 0
    loop: start=0, step=1, limit=4
    $region2: #{tpu_custom_call.1} parent=1 // loop_pre_header
      _
    $region3: #{tpu_custom_call.1} parent=1 // loop_header
      %s27 = sphi 0, %s31
      %p28 = scmp.ge.s32.totalorder %s27, 4
      %s34 = sphi 0, %s46
      %s35 = sphi 0, %s42
      %s36 = sphi 0, %s34
      %s37 = sphi 0, %s35
      %s38 = sphi 0, %s36
      %s39 = sphi 0, %s37
      %s49 = sphi 0, %s51
      %s52 = sphi 0, %s49
      %s53 = sphi 0, %s52
      %s69 = sphi 0, %s53
      %s77 = sphi 0, %s79
      %s80 = sphi 0, %s77
      %s81 = sphi 0, %s80
      %s97 = sphi 0, %s81
      %s101 = sphi 0, %s101
      %s103 = sphi 0, %s101
      %s104 = sphi 0, %s103
      %s118 = sphi 0, %s104
      %s122 = sphi 0, %s122
      %s124 = sphi 0, %s122
      %s125 = sphi 0, %s124
      %s139 = sphi 0, %s125
      %s143 = sphi 0, %s143
      %s145 = sphi 0, %s143
      %s146 = sphi 0, %s145
      %s160 = sphi 0, %s146
      %s164 = sphi 0, %s164
      %s166 = sphi 0, %s164
      %s167 = sphi 0, %s166
      %s181 = sphi 0, %s167
      %s185 = sphi 0, %s185
      %s187 = sphi 0, %s185
      %s188 = sphi 0, %s187
      %s202 = sphi 0, %s188
      %s206 = sphi 0, %s206
      %s208 = sphi 0, %s206
      %s209 = sphi 0, %s208
      %s223 = sphi 0, %s209
      %s227 = sphi 0, %s227
      %s229 = sphi 0, %s227
      %s230 = sphi 0, %s229
      %s244 = sphi 0, %s230
      %s248 = sphi 0, %s248
      %s250 = sphi 0, %s248
      %s251 = sphi 0, %s250
      %s265 = sphi 0, %s251
      %s269 = sphi 0, %s269
      %s271 = sphi 0, %s269
      %s272 = sphi 0, %s271
      %s286 = sphi 0, %s272
      %s290 = sphi 0, %s290
      %s292 = sphi 0, %s290
      %s293 = sphi 0, %s292
      %s307 = sphi 0, %s293
      %s311 = sphi 0, %s311
      %s313 = sphi 0, %s311
      %s314 = sphi 0, %s313
      %s328 = sphi 0, %s314
      %s332 = sphi 0, %s332
      %s334 = sphi 0, %s332
      %s335 = sphi 0, %s334
      %s349 = sphi 0, %s335
      %s353 = sphi 0, %s353
      %s355 = sphi 0, %s353
      %s356 = sphi 0, %s355
      %s370 = sphi 0, %s356
      %s374 = sphi 0, %s374
      %s376 = sphi 0, %s374
      %s377 = sphi 0, %s376
      %s391 = sphi 0, %s377
      %s395 = sphi 0, %s395
      %s397 = sphi 0, %s395
      %s398 = sphi 0, %s397
      %s412 = sphi 0, %s398
      %s416 = sphi 0, %s416
      %s418 = sphi 0, %s416
      %s419 = sphi 0, %s418
      %s433 = sphi 0, %s419
      %s441 = sphi 0, %s443
      %s444 = sphi 0, %s441
      %s445 = sphi 0, %s444
      %s461 = sphi 0, %s445
    $region4: #{tpu_custom_call.1} parent=1 // loop_header_branch
      %30 = sbr.rel (%p28) target = $region8
    $region5: #{tpu_custom_call.1} parent=1 // loop_body
      %s32 = ssub.s32 %s27, 1
      %s33 = ssub.s32 %s27, 2
      %s40 = sadd.s32 1, %s35
      %p41 = scmp.ge.s32.totalorder %s40, 1
      %s42 = scalar_select %p41, 0, %s40
      %s43 = sadd.s32 1, %s34
      %s44 = scalar_select %p41, %s43, %s34
      %p45 = scmp.ge.s32.totalorder %s44, 2
      %s46 = scalar_select %p45, 0, %s44
      %s47 = ssub.s32 %s34, %s46
      %p48 = scmp.eq.s32.totalorder %s47, 0
      %s50 = sadd.s32 %s49, 1
      %s51 = scalar_select %p48, %s49, %s50
      %p54 = pneg %p48
      %p55 = scmp.eq.s32.totalorder %s27, 1
      %p56 = por %p54, %p55
      %p57 = scmp.ne.s32.totalorder %s49, %s52
      %p58 = scmp.eq.s32.totalorder %s27, 0
      %p59 = por %p57, %p58
      %p60 = scmp.ne.s32.totalorder %s49, %s52
      %p61 = scmp.eq.s32.totalorder %s32, 1
      %p62 = por %p60, %p61
      %p63 = scmp.ne.s32.totalorder %s52, %s53
      %p64 = scmp.eq.s32.totalorder %s32, 0
      %p65 = por %p63, %p64
      %p66 = scmp.ne.s32.totalorder %s52, %s53
      %p67 = scmp.eq.s32.totalorder %s33, 1
      %p68 = por %p66, %p67
      %p70 = scmp.ne.s32.totalorder %s53, %s69
      %p71 = scmp.eq.s32.totalorder %s33, 0
      %p72 = por %p70, %p71
      %s73 = ssub.s32 %s34, %s46
      %s74 = ssub.s32 %s35, %s42
      %s75 = sor.u32 %s73, %s74
      %p76 = scmp.eq.s32.totalorder %s75, 0
      %s78 = sadd.s32 %s77, 1
      %s79 = scalar_select %p76, %s77, %s78
      %p82 = pneg %p76
      %p83 = scmp.eq.s32.totalorder %s27, 1
      %p84 = por %p82, %p83
      %p85 = scmp.ne.s32.totalorder %s77, %s80
      %p86 = scmp.eq.s32.totalorder %s27, 0
      %p87 = por %p85, %p86
      %p88 = scmp.ne.s32.totalorder %s77, %s80
      %p89 = scmp.eq.s32.totalorder %s32, 1
      %p90 = por %p88, %p89
      %p91 = scmp.ne.s32.totalorder %s80, %s81
      %p92 = scmp.eq.s32.totalorder %s32, 0
      %p93 = por %p91, %p92
      %p94 = scmp.ne.s32.totalorder %s80, %s81
      %p95 = scmp.eq.s32.totalorder %s33, 1
      %p96 = por %p94, %p95
      %p98 = scmp.ne.s32.totalorder %s81, %s97
      %p99 = scmp.eq.s32.totalorder %s33, 0
      %p100 = por %p98, %p99
      %s102 = sadd.s32 %s101, 1
      %p105 = scmp.eq.s32.totalorder %s27, 1
      %p106 = scmp.ne.s32.totalorder %s101, %s103
      %p107 = scmp.eq.s32.totalorder %s27, 0
      %p108 = por %p106, %p107
      %p109 = scmp.ne.s32.totalorder %s101, %s103
      %p110 = scmp.eq.s32.totalorder %s32, 1
      %p111 = por %p109, %p110
      %p112 = scmp.ne.s32.totalorder %s103, %s104
      %p113 = scmp.eq.s32.totalorder %s32, 0
      %p114 = por %p112, %p113
      %p115 = scmp.ne.s32.totalorder %s103, %s104
      %p116 = scmp.eq.s32.totalorder %s33, 1
      %p117 = por %p115, %p116
      %p119 = scmp.ne.s32.totalorder %s104, %s118
      %p120 = scmp.eq.s32.totalorder %s33, 0
      %p121 = por %p119, %p120
      %s123 = sadd.s32 %s122, 1
      %p126 = scmp.eq.s32.totalorder %s27, 1
      %p127 = scmp.ne.s32.totalorder %s122, %s124
      %p128 = scmp.eq.s32.totalorder %s27, 0
      %p129 = por %p127, %p128
      %p130 = scmp.ne.s32.totalorder %s122, %s124
      %p131 = scmp.eq.s32.totalorder %s32, 1
      %p132 = por %p130, %p131
      %p133 = scmp.ne.s32.totalorder %s124, %s125
      %p134 = scmp.eq.s32.totalorder %s32, 0
      %p135 = por %p133, %p134
      %p136 = scmp.ne.s32.totalorder %s124, %s125
      %p137 = scmp.eq.s32.totalorder %s33, 1
      %p138 = por %p136, %p137
      %p140 = scmp.ne.s32.totalorder %s125, %s139
      %p141 = scmp.eq.s32.totalorder %s33, 0
      %p142 = por %p140, %p141
      %s144 = sadd.s32 %s143, 1
      %p147 = scmp.eq.s32.totalorder %s27, 1
      %p148 = scmp.ne.s32.totalorder %s143, %s145
      %p149 = scmp.eq.s32.totalorder %s27, 0
      %p150 = por %p148, %p149
      %p151 = scmp.ne.s32.totalorder %s143, %s145
      %p152 = scmp.eq.s32.totalorder %s32, 1
      %p153 = por %p151, %p152
      %p154 = scmp.ne.s32.totalorder %s145, %s146
      %p155 = scmp.eq.s32.totalorder %s32, 0
      %p156 = por %p154, %p155
      %p157 = scmp.ne.s32.totalorder %s145, %s146
      %p158 = scmp.eq.s32.totalorder %s33, 1
      %p159 = por %p157, %p158
      %p161 = scmp.ne.s32.totalorder %s146, %s160
      %p162 = scmp.eq.s32.totalorder %s33, 0
      %p163 = por %p161, %p162
      %s165 = sadd.s32 %s164, 1
      %p168 = scmp.eq.s32.totalorder %s27, 1
      %p169 = scmp.ne.s32.totalorder %s164, %s166
      %p170 = scmp.eq.s32.totalorder %s27, 0
      %p171 = por %p169, %p170
      %p172 = scmp.ne.s32.totalorder %s164, %s166
      %p173 = scmp.eq.s32.totalorder %s32, 1
      %p174 = por %p172, %p173
      %p175 = scmp.ne.s32.totalorder %s166, %s167
      %p176 = scmp.eq.s32.totalorder %s32, 0
      %p177 = por %p175, %p176
      %p178 = scmp.ne.s32.totalorder %s166, %s167
      %p179 = scmp.eq.s32.totalorder %s33, 1
      %p180 = por %p178, %p179
      %p182 = scmp.ne.s32.totalorder %s167, %s181
      %p183 = scmp.eq.s32.totalorder %s33, 0
      %p184 = por %p182, %p183
      %s186 = sadd.s32 %s185, 1
      %p189 = scmp.eq.s32.totalorder %s27, 1
      %p190 = scmp.ne.s32.totalorder %s185, %s187
      %p191 = scmp.eq.s32.totalorder %s27, 0
      %p192 = por %p190, %p191
      %p193 = scmp.ne.s32.totalorder %s185, %s187
      %p194 = scmp.eq.s32.totalorder %s32, 1
      %p195 = por %p193, %p194
      %p196 = scmp.ne.s32.totalorder %s187, %s188
      %p197 = scmp.eq.s32.totalorder %s32, 0
      %p198 = por %p196, %p197
      %p199 = scmp.ne.s32.totalorder %s187, %s188
      %p200 = scmp.eq.s32.totalorder %s33, 1
      %p201 = por %p199, %p200
      %p203 = scmp.ne.s32.totalorder %s188, %s202
      %p204 = scmp.eq.s32.totalorder %s33, 0
      %p205 = por %p203, %p204
      %s207 = sadd.s32 %s206, 1
      %p210 = scmp.eq.s32.totalorder %s27, 1
      %p211 = scmp.ne.s32.totalorder %s206, %s208
      %p212 = scmp.eq.s32.totalorder %s27, 0
      %p213 = por %p211, %p212
      %p214 = scmp.ne.s32.totalorder %s206, %s208
      %p215 = scmp.eq.s32.totalorder %s32, 1
      %p216 = por %p214, %p215
      %p217 = scmp.ne.s32.totalorder %s208, %s209
      %p218 = scmp.eq.s32.totalorder %s32, 0
      %p219 = por %p217, %p218
      %p220 = scmp.ne.s32.totalorder %s208, %s209
      %p221 = scmp.eq.s32.totalorder %s33, 1
      %p222 = por %p220, %p221
      %p224 = scmp.ne.s32.totalorder %s209, %s223
      %p225 = scmp.eq.s32.totalorder %s33, 0
      %p226 = por %p224, %p225
      %s228 = sadd.s32 %s227, 1
      %p231 = scmp.eq.s32.totalorder %s27, 1
      %p232 = scmp.ne.s32.totalorder %s227, %s229
      %p233 = scmp.eq.s32.totalorder %s27, 0
      %p234 = por %p232, %p233
      %p235 = scmp.ne.s32.totalorder %s227, %s229
      %p236 = scmp.eq.s32.totalorder %s32, 1
      %p237 = por %p235, %p236
      %p238 = scmp.ne.s32.totalorder %s229, %s230
      %p239 = scmp.eq.s32.totalorder %s32, 0
      %p240 = por %p238, %p239
      %p241 = scmp.ne.s32.totalorder %s229, %s230
      %p242 = scmp.eq.s32.totalorder %s33, 1
      %p243 = por %p241, %p242
      %p245 = scmp.ne.s32.totalorder %s230, %s244
      %p246 = scmp.eq.s32.totalorder %s33, 0
      %p247 = por %p245, %p246
      %s249 = sadd.s32 %s248, 1
      %p252 = scmp.eq.s32.totalorder %s27, 1
      %p253 = scmp.ne.s32.totalorder %s248, %s250
      %p254 = scmp.eq.s32.totalorder %s27, 0
      %p255 = por %p253, %p254
      %p256 = scmp.ne.s32.totalorder %s248, %s250
      %p257 = scmp.eq.s32.totalorder %s32, 1
      %p258 = por %p256, %p257
      %p259 = scmp.ne.s32.totalorder %s250, %s251
      %p260 = scmp.eq.s32.totalorder %s32, 0
      %p261 = por %p259, %p260
      %p262 = scmp.ne.s32.totalorder %s250, %s251
      %p263 = scmp.eq.s32.totalorder %s33, 1
      %p264 = por %p262, %p263
      %p266 = scmp.ne.s32.totalorder %s251, %s265
      %p267 = scmp.eq.s32.totalorder %s33, 0
      %p268 = por %p266, %p267
      %s270 = sadd.s32 %s269, 1
      %p273 = scmp.eq.s32.totalorder %s27, 1
      %p274 = scmp.ne.s32.totalorder %s269, %s271
      %p275 = scmp.eq.s32.totalorder %s27, 0
      %p276 = por %p274, %p275
      %p277 = scmp.ne.s32.totalorder %s269, %s271
      %p278 = scmp.eq.s32.totalorder %s32, 1
      %p279 = por %p277, %p278
      %p280 = scmp.ne.s32.totalorder %s271, %s272
      %p281 = scmp.eq.s32.totalorder %s32, 0
      %p282 = por %p280, %p281
      %p283 = scmp.ne.s32.totalorder %s271, %s272
      %p284 = scmp.eq.s32.totalorder %s33, 1
      %p285 = por %p283, %p284
      %p287 = scmp.ne.s32.totalorder %s272, %s286
      %p288 = scmp.eq.s32.totalorder %s33, 0
      %p289 = por %p287, %p288
      %s291 = sadd.s32 %s290, 1
      %p294 = scmp.eq.s32.totalorder %s27, 1
      %p295 = scmp.ne.s32.totalorder %s290, %s292
      %p296 = scmp.eq.s32.totalorder %s27, 0
      %p297 = por %p295, %p296
      %p298 = scmp.ne.s32.totalorder %s290, %s292
      %p299 = scmp.eq.s32.totalorder %s32, 1
      %p300 = por %p298, %p299
      %p301 = scmp.ne.s32.totalorder %s292, %s293
      %p302 = scmp.eq.s32.totalorder %s32, 0
      %p303 = por %p301, %p302
      %p304 = scmp.ne.s32.totalorder %s292, %s293
      %p305 = scmp.eq.s32.totalorder %s33, 1
      %p306 = por %p304, %p305
      %p308 = scmp.ne.s32.totalorder %s293, %s307
      %p309 = scmp.eq.s32.totalorder %s33, 0
      %p310 = por %p308, %p309
      %s312 = sadd.s32 %s311, 1
      %p315 = scmp.eq.s32.totalorder %s27, 1
      %p316 = scmp.ne.s32.totalorder %s311, %s313
      %p317 = scmp.eq.s32.totalorder %s27, 0
      %p318 = por %p316, %p317
      %p319 = scmp.ne.s32.totalorder %s311, %s313
      %p320 = scmp.eq.s32.totalorder %s32, 1
      %p321 = por %p319, %p320
      %p322 = scmp.ne.s32.totalorder %s313, %s314
      %p323 = scmp.eq.s32.totalorder %s32, 0
      %p324 = por %p322, %p323
      %p325 = scmp.ne.s32.totalorder %s313, %s314
      %p326 = scmp.eq.s32.totalorder %s33, 1
      %p327 = por %p325, %p326
      %p329 = scmp.ne.s32.totalorder %s314, %s328
      %p330 = scmp.eq.s32.totalorder %s33, 0
      %p331 = por %p329, %p330
      %s333 = sadd.s32 %s332, 1
      %p336 = scmp.eq.s32.totalorder %s27, 1
      %p337 = scmp.ne.s32.totalorder %s332, %s334
      %p338 = scmp.eq.s32.totalorder %s27, 0
      %p339 = por %p337, %p338
      %p340 = scmp.ne.s32.totalorder %s332, %s334
      %p341 = scmp.eq.s32.totalorder %s32, 1
      %p342 = por %p340, %p341
      %p343 = scmp.ne.s32.totalorder %s334, %s335
      %p344 = scmp.eq.s32.totalorder %s32, 0
      %p345 = por %p343, %p344
      %p346 = scmp.ne.s32.totalorder %s334, %s335
      %p347 = scmp.eq.s32.totalorder %s33, 1
      %p348 = por %p346, %p347
      %p350 = scmp.ne.s32.totalorder %s335, %s349
      %p351 = scmp.eq.s32.totalorder %s33, 0
      %p352 = por %p350, %p351
      %s354 = sadd.s32 %s353, 1
      %p357 = scmp.eq.s32.totalorder %s27, 1
      %p358 = scmp.ne.s32.totalorder %s353, %s355
      %p359 = scmp.eq.s32.totalorder %s27, 0
      %p360 = por %p358, %p359
      %p361 = scmp.ne.s32.totalorder %s353, %s355
      %p362 = scmp.eq.s32.totalorder %s32, 1
      %p363 = por %p361, %p362
      %p364 = scmp.ne.s32.totalorder %s355, %s356
      %p365 = scmp.eq.s32.totalorder %s32, 0
      %p366 = por %p364, %p365
      %p367 = scmp.ne.s32.totalorder %s355, %s356
      %p368 = scmp.eq.s32.totalorder %s33, 1
      %p369 = por %p367, %p368
      %p371 = scmp.ne.s32.totalorder %s356, %s370
      %p372 = scmp.eq.s32.totalorder %s33, 0
      %p373 = por %p371, %p372
      %s375 = sadd.s32 %s374, 1
      %p378 = scmp.eq.s32.totalorder %s27, 1
      %p379 = scmp.ne.s32.totalorder %s374, %s376
      %p380 = scmp.eq.s32.totalorder %s27, 0
      %p381 = por %p379, %p380
      %p382 = scmp.ne.s32.totalorder %s374, %s376
      %p383 = scmp.eq.s32.totalorder %s32, 1
      %p384 = por %p382, %p383
      %p385 = scmp.ne.s32.totalorder %s376, %s377
      %p386 = scmp.eq.s32.totalorder %s32, 0
      %p387 = por %p385, %p386
      %p388 = scmp.ne.s32.totalorder %s376, %s377
      %p389 = scmp.eq.s32.totalorder %s33, 1
      %p390 = por %p388, %p389
      %p392 = scmp.ne.s32.totalorder %s377, %s391
      %p393 = scmp.eq.s32.totalorder %s33, 0
      %p394 = por %p392, %p393
      %s396 = sadd.s32 %s395, 1
      %p399 = scmp.eq.s32.totalorder %s27, 1
      %p400 = scmp.ne.s32.totalorder %s395, %s397
      %p401 = scmp.eq.s32.totalorder %s27, 0
      %p402 = por %p400, %p401
      %p403 = scmp.ne.s32.totalorder %s395, %s397
      %p404 = scmp.eq.s32.totalorder %s32, 1
      %p405 = por %p403, %p404
      %p406 = scmp.ne.s32.totalorder %s397, %s398
      %p407 = scmp.eq.s32.totalorder %s32, 0
      %p408 = por %p406, %p407
      %p409 = scmp.ne.s32.totalorder %s397, %s398
      %p410 = scmp.eq.s32.totalorder %s33, 1
      %p411 = por %p409, %p410
      %p413 = scmp.ne.s32.totalorder %s398, %s412
      %p414 = scmp.eq.s32.totalorder %s33, 0
      %p415 = por %p413, %p414
      %s417 = sadd.s32 %s416, 1
      %p420 = scmp.eq.s32.totalorder %s27, 1
      %p421 = scmp.ne.s32.totalorder %s416, %s418
      %p422 = scmp.eq.s32.totalorder %s27, 0
      %p423 = por %p421, %p422
      %p424 = scmp.ne.s32.totalorder %s416, %s418
      %p425 = scmp.eq.s32.totalorder %s32, 1
      %p426 = por %p424, %p425
      %p427 = scmp.ne.s32.totalorder %s418, %s419
      %p428 = scmp.eq.s32.totalorder %s32, 0
      %p429 = por %p427, %p428
      %p430 = scmp.ne.s32.totalorder %s418, %s419
      %p431 = scmp.eq.s32.totalorder %s33, 1
      %p432 = por %p430, %p431
      %p434 = scmp.ne.s32.totalorder %s419, %s433
      %p435 = scmp.eq.s32.totalorder %s33, 0
      %p436 = por %p434, %p435
      %s437 = ssub.s32 %s34, %s46
      %s438 = ssub.s32 %s35, %s42
      %s439 = sor.u32 %s437, %s438
      %p440 = scmp.eq.s32.totalorder %s439, 0
      %s442 = sadd.s32 %s441, 1
      %s443 = scalar_select %p440, %s441, %s442
      %p446 = pneg %p440
      %p447 = scmp.eq.s32.totalorder %s27, 1
      %p448 = por %p446, %p447
      %p449 = scmp.ne.s32.totalorder %s441, %s444
      %p450 = scmp.eq.s32.totalorder %s27, 0
      %p451 = por %p449, %p450
      %p452 = scmp.ne.s32.totalorder %s441, %s444
      %p453 = scmp.eq.s32.totalorder %s32, 1
      %p454 = por %p452, %p453
      %p455 = scmp.ne.s32.totalorder %s444, %s445
      %p456 = scmp.eq.s32.totalorder %s32, 0
      %p457 = por %p455, %p456
      %p458 = scmp.ne.s32.totalorder %s444, %s445
      %p459 = scmp.eq.s32.totalorder %s33, 1
      %p460 = por %p458, %p459
      %p462 = scmp.ne.s32.totalorder %s445, %s461
      %p463 = scmp.eq.s32.totalorder %s33, 0
      %p464 = por %p462, %p463
      %p465 = scmp.le.s32.totalorder 1, %s27
      %p466 = scmp.lt.s32.totalorder %s27, 3
      %p467 = pnand %p465, %p466
      %p468 = pneg %p467
      // Predicated region
      $region9: #{tpu_custom_call.1} parent=5 // pred_check
        _
      $region10: #{tpu_custom_call.1} parent=5 // pred_check_branch
        %470 = sbr.rel (%p467) target = $region12
      $region11: #{tpu_custom_call.1} parent=5 // pred_region
        %s471 = ssub.s32 %s27, 1
        // Predicated region
        $region13: #{tpu_custom_call.1} parent=11 // pred_check
          %p472 = pneg %p114
        $region14: #{tpu_custom_call.1} parent=11 // pred_check_branch
          %474 = sbr.rel (%p472) target = $region16
        $region15: #{tpu_custom_call.1} parent=11 // pred_region
          _
        $region16: #{tpu_custom_call.1} parent=11 // pred_fallthru
          _
        // Predicated region
        $region17: #{tpu_custom_call.1} parent=11 // pred_check
          %p475 = pneg %p135
        $region18: #{tpu_custom_call.1} parent=11 // pred_check_branch
          %477 = sbr.rel (%p475) target = $region20
        $region19: #{tpu_custom_call.1} parent=11 // pred_region
          _
        $region20: #{tpu_custom_call.1} parent=11 // pred_fallthru
          _
        // Predicated region
        $region21: #{tpu_custom_call.1} parent=11 // pred_check
          %p478 = pneg %p156
        $region22: #{tpu_custom_call.1} parent=11 // pred_check_branch
          %480 = sbr.rel (%p478) target = $region24
        $region23: #{tpu_custom_call.1} parent=11 // pred_region
          _
        $region24: #{tpu_custom_call.1} parent=11 // pred_fallthru
          _
        // Predicated region
        $region25: #{tpu_custom_call.1} parent=11 // pred_check
          %p481 = pneg %p177
        $region26: #{tpu_custom_call.1} parent=11 // pred_check_branch
          %483 = sbr.rel (%p481) target = $region28
        $region27: #{tpu_custom_call.1} parent=11 // pred_region
          _
        $region28: #{tpu_custom_call.1} parent=11 // pred_fallthru
          _
        // Predicated region
        $region29: #{tpu_custom_call.1} parent=11 // pred_check
          %p484 = pneg %p198
        $region30: #{tpu_custom_call.1} parent=11 // pred_check_branch
          %486 = sbr.rel (%p484) target = $region32
        $region31: #{tpu_custom_call.1} parent=11 // pred_region
          _
        $region32: #{tpu_custom_call.1} parent=11 // pred_fallthru
          _
        // Predicated region
        $region33: #{tpu_custom_call.1} parent=11 // pred_check
          %p487 = pneg %p219
        $region34: #{tpu_custom_call.1} parent=11 // pred_check_branch
          %489 = sbr.rel (%p487) target = $region36
        $region35: #{tpu_custom_call.1} parent=11 // pred_region
          _
        $region36: #{tpu_custom_call.1} parent=11 // pred_fallthru
          _
        // Predicated region
        $region37: #{tpu_custom_call.1} parent=11 // pred_check
          %p490 = pneg %p240
        $region38: #{tpu_custom_call.1} parent=11 // pred_check_branch
          %492 = sbr.rel (%p490) target = $region40
        $region39: #{tpu_custom_call.1} parent=11 // pred_region
          _
        $region40: #{tpu_custom_call.1} parent=11 // pred_fallthru
          _
        // Predicated region
        $region41: #{tpu_custom_call.1} parent=11 // pred_check
          %p493 = pneg %p261
        $region42: #{tpu_custom_call.1} parent=11 // pred_check_branch
          %495 = sbr.rel (%p493) target = $region44
        $region43: #{tpu_custom_call.1} parent=11 // pred_region
          _
        $region44: #{tpu_custom_call.1} parent=11 // pred_fallthru
          _
        // Predicated region
        $region45: #{tpu_custom_call.1} parent=11 // pred_check
          %p496 = pneg %p282
        $region46: #{tpu_custom_call.1} parent=11 // pred_check_branch
          %498 = sbr.rel (%p496) target = $region48
        $region47: #{tpu_custom_call.1} parent=11 // pred_region
          _
        $region48: #{tpu_custom_call.1} parent=11 // pred_fallthru
          _
        // Predicated region
        $region49: #{tpu_custom_call.1} parent=11 // pred_check
          %p499 = pneg %p303
        $region50: #{tpu_custom_call.1} parent=11 // pred_check_branch
          %501 = sbr.rel (%p499) target = $region52
        $region51: #{tpu_custom_call.1} parent=11 // pred_region
          _
        $region52: #{tpu_custom_call.1} parent=11 // pred_fallthru
          _
        // Predicated region
        $region53: #{tpu_custom_call.1} parent=11 // pred_check
          %p502 = pneg %p324
        $region54: #{tpu_custom_call.1} parent=11 // pred_check_branch
          %504 = sbr.rel (%p502) target = $region56
        $region55: #{tpu_custom_call.1} parent=11 // pred_region
          _
        $region56: #{tpu_custom_call.1} parent=11 // pred_fallthru
          _
        // Predicated region
        $region57: #{tpu_custom_call.1} parent=11 // pred_check
          %p505 = pneg %p345
        $region58: #{tpu_custom_call.1} parent=11 // pred_check_branch
          %507 = sbr.rel (%p505) target = $region60
        $region59: #{tpu_custom_call.1} parent=11 // pred_region
          _
        $region60: #{tpu_custom_call.1} parent=11 // pred_fallthru
          _
        // Predicated region
        $region61: #{tpu_custom_call.1} parent=11 // pred_check
          %p508 = pneg %p366
        $region62: #{tpu_custom_call.1} parent=11 // pred_check_branch
          %510 = sbr.rel (%p508) target = $region64
        $region63: #{tpu_custom_call.1} parent=11 // pred_region
          _
        $region64: #{tpu_custom_call.1} parent=11 // pred_fallthru
          _
        // Predicated region
        $region65: #{tpu_custom_call.1} parent=11 // pred_check
          %p511 = pneg %p387
        $region66: #{tpu_custom_call.1} parent=11 // pred_check_branch
          %513 = sbr.rel (%p511) target = $region68
        $region67: #{tpu_custom_call.1} parent=11 // pred_region
          _
        $region68: #{tpu_custom_call.1} parent=11 // pred_fallthru
          _
        // Predicated region
        $region69: #{tpu_custom_call.1} parent=11 // pred_check
          %p514 = pneg %p408
        $region70: #{tpu_custom_call.1} parent=11 // pred_check_branch
          %516 = sbr.rel (%p514) target = $region72
        $region71: #{tpu_custom_call.1} parent=11 // pred_region
          _
        $region72: #{tpu_custom_call.1} parent=11 // pred_fallthru
          _
        // Predicated region
        $region73: #{tpu_custom_call.1} parent=11 // pred_check
          %p517 = pneg %p429
        $region74: #{tpu_custom_call.1} parent=11 // pred_check_branch
          %519 = sbr.rel (%p517) target = $region76
        $region75: #{tpu_custom_call.1} parent=11 // pred_region
          _
        $region76: #{tpu_custom_call.1} parent=11 // pred_fallthru
          _
      $region12: #{tpu_custom_call.1} parent=5 // pred_fallthru
        _
      %p520 = scmp.lt.s32.totalorder %s27, 2
      // Predicated region
      $region77: #{tpu_custom_call.1} parent=5 // pred_check
        %p521 = pneg %p520
      $region78: #{tpu_custom_call.1} parent=5 // pred_check_branch
        %523 = sbr.rel (%p521) target = $region80
      $region79: #{tpu_custom_call.1} parent=5 // pred_region
        // Predicated region
        $region81: #{tpu_custom_call.1} parent=79 // pred_check
          %p524 = pneg %p59
        $region82: #{tpu_custom_call.1} parent=79 // pred_check_branch
          %526 = sbr.rel (%p524) target = $region84
        $region83: #{tpu_custom_call.1} parent=79 // pred_region
          %p527 = scmp.lt.s32.totalorder %s34, 1
          %s528 = scalar_select %p527, %s34, 1
          %s529 = smul.addr %s528, 4
          %s530 = scalar_lea.vmem %s0, %s529
        $region84: #{tpu_custom_call.1} parent=79 // pred_fallthru
          _
        // Predicated region
        $region85: #{tpu_custom_call.1} parent=79 // pred_check
          %p531 = pneg %p87
        $region86: #{tpu_custom_call.1} parent=79 // pred_check_branch
          %533 = sbr.rel (%p531) target = $region88
        $region87: #{tpu_custom_call.1} parent=79 // pred_region
          %p534 = scmp.lt.s32.totalorder %s34, 1
          %s535 = scalar_select %p534, %s34, 1
          %p536 = scmp.lt.s32.totalorder %s35, 0
          %s537 = scalar_select %p536, %s35, 0
          %s538 = sadd.s32 %s537, %s535
          %s539 = smul.addr %s538, 8
          %s540 = scalar_lea.vmem %s1, %s539
        $region88: #{tpu_custom_call.1} parent=79 // pred_fallthru
          _
      $region80: #{tpu_custom_call.1} parent=5 // pred_fallthru
        _
      %p541 = scmp.le.s32.totalorder 1, %s27
      %p542 = scmp.lt.s32.totalorder %s27, 3
      %p543 = pnand %p541, %p542
      %p544 = pneg %p543
      // Predicated region
      $region89: #{tpu_custom_call.1} parent=5 // pred_check
        _
      $region90: #{tpu_custom_call.1} parent=5 // pred_check_branch
        %546 = sbr.rel (%p543) target = $region92
      $region91: #{tpu_custom_call.1} parent=5 // pred_region
        %s547 = ssub.s32 %s27, 1
        %p548 = scmp.lt.s32.totalorder %s36, 1
        %s549 = scalar_select %p548, %s36, 1
        %s550 = smul.addr %s549, 4
        %s551 = scalar_lea.vmem %s0, %s550
        %p552 = pneg %p65
        %p553 = pneg %p62
        %p554 = scmp.lt.s32.totalorder %s36, 1
        %s555 = scalar_select %p554, %s36, 1
        %p556 = scmp.lt.s32.totalorder %s37, 0
        %s557 = scalar_select %p556, %s37, 0
        %s558 = sadd.s32 %s557, %s555
        %s559 = smul.addr %s558, 8
        %s560 = scalar_lea.vmem %s1, %s559
        %p561 = pneg %p93
        %p562 = pneg %p90
        %p563 = pneg %p114
        %p564 = pneg %p111
        %p565 = pneg %p135
        %p566 = pneg %p132
        %p567 = pneg %p156
        %p568 = pneg %p153
        %p569 = pneg %p177
        %p570 = pneg %p174
        %p571 = pneg %p198
        %p572 = pneg %p195
        %p573 = pneg %p219
        %p574 = pneg %p216
        %p575 = pneg %p240
        %p576 = pneg %p237
        %p577 = pneg %p261
        %p578 = pneg %p258
        %p579 = pneg %p282
        %p580 = pneg %p279
        %p581 = pneg %p303
        %p582 = pneg %p300
        %p583 = pneg %p324
        %p584 = pneg %p321
        %p585 = pneg %p345
        %p586 = pneg %p342
        %p587 = pneg %p366
        %p588 = pneg %p363
        %p589 = pneg %p387
        %p590 = pneg %p384
        %p591 = pneg %p408
        %p592 = pneg %p405
        %p593 = pneg %p429
        %p594 = pneg %p426
        %p595 = pneg %p457
        %p596 = pneg %p454
        %s597 = sand.u32 %s444, 1
        %s598 = scalar_lea.sflag [#allocation7], %s597
        %s599 = sand.u32 %s444, 1
        %s600 = smul.addr %s599, 8
        %s601 = scalar_lea.vmem [#allocation6], %s600
        %p602 = scmp.lt.s32.totalorder %s36, 1
        %s603 = scalar_select %p602, %s36, 1
        %s604 = smul.addr %s603, 4
        %s605 = scalar_lea.vmem %s0, %s604
        %p606 = scmp.lt.s32.totalorder %s36, 1
        %s607 = scalar_select %p606, %s36, 1
        %p608 = scmp.lt.s32.totalorder %s37, 0
        %s609 = scalar_select %p608, %s37, 0
        %s610 = sadd.s32 %s609, %s607
        %s611 = smul.addr %s610, 8
        %s612 = scalar_lea.vmem %s1, %s611
        %p614 = scmp.eq.s32.totalorder %s37, 0
        // Predicated region
        $region93: #{tpu_custom_call.1} parent=91 // pred_check
          %p615 = pneg %p614
        $region94: #{tpu_custom_call.1} parent=91 // pred_check_branch
          %617 = sbr.rel (%p615) target = $region96
        $region95: #{tpu_custom_call.1} parent=91 // pred_region
          %v618 = vld [vmem:[%s605] sm:$0xf]
          %v619 = vld [vmem:[%s4] sm:$0xf]
          %v620 = vld [vmem:[%s4 + $0x4] sm:$0xf]
          %v621 = vld [vmem:[%s4 + $0x8] sm:$0xf]
          %v622 = vld [vmem:[%s4 + $0xc] sm:$0xf]
          %v623 = vld [vmem:[%s5] sm:$0x1]
          %v625 = vlaneseq
          %v626 = vshrl.u32 %v625, 7
          %v627 = vsub.s32 0, %v626
          %v628 = vrot.slane %v623, %v627
          %v634 = vunpack.c.l.b16 %v619
          %v635 = vunpack.c.l.b16 %v620
          %v636 = vunpack.c.l.b16 %v621
          %v637 = vunpack.c.l.b16 %v622
          %v638 = vpack.c.b16 %v635, %v634
          %v639 = vpack.c.b16 %v637, %v636
          %vm642 = vcmask 261120
          %v644 = vsel %vm642, %v618, 0
          %646 = vmatprep.subr.bf16.mxu0 0
          %647 = vmatpush1.bf16.msra.mxu0 %v638
          %648 = vmatprep.subr.bf16.mxu0 0
          %649 = vmatpush1.bf16.msra.mxu0 %v639
          %650 = vmatprep.subr.bf16.mxu0 0
          %651 = vmatpush1.bf16.msra.mxu0 0
          %652 = vmatprep.subr.bf16.mxu0 0
          %653 = vmatpush1.bf16.msra.mxu0 0
          %654 = vmatprep.subr.bf16.mxu0 0
          %655 = vmatpush1.bf16.msra.mxu0 0
          %656 = vmatprep.subr.bf16.mxu0 0
          %657 = vmatpush1.bf16.msra.mxu0 0
          %658 = vmatprep.subr.bf16.mxu0 0
          %659 = vmatpush1.bf16.msra.mxu0 0
          %660 = vmatprep.subr.bf16.mxu0 0
          %661 = vmatpush1.bf16.msra.mxu0 0
          %662 = vmatprep.subr.bf16.mxu0 0
          %663 = vmatpush1.bf16.msra.mxu0 0
          %664 = vmatprep.subr.bf16.mxu0 0
          %665 = vmatpush1.bf16.msra.mxu0 0
          %666 = vmatprep.subr.bf16.mxu0 0
          %667 = vmatpush1.bf16.msra.mxu0 0
          %668 = vmatprep.subr.bf16.mxu0 0
          %669 = vmatpush1.bf16.msra.mxu0 0
          %670 = vmatprep.subr.bf16.mxu0 0
          %671 = vmatpush1.bf16.msra.mxu0 0
          %672 = vmatprep.subr.bf16.mxu0 0
          %673 = vmatpush1.bf16.msra.mxu0 0
          %674 = vmatprep.subr.bf16.mxu0 0
          %675 = vmatpush1.bf16.msra.mxu0 0
          %676 = vmatprep.subr.bf16.mxu0 0
          %677 = vmatpush1.bf16.msra.mxu0 0
          %678 = vmatprep.mubr.bf16.mxu0 0
          %679 = vmatmul.mubr.bf16.gmra.mrb[0].mxu0 %v644
          %v680 = vpop.f32.mrb[0].mxu0
          %v681 = vadd.f32 %v628, %v680
          %v682 = vpop.f32.mrb[0].mxu0
          %v683 = vpop.f32.mrb[0].mxu0
          %v684 = vpop.f32.mrb[0].mxu0
          %685 = vdwg.mxu0
          %v686 = vld [vmem:[%s6] sm:$0xf]
          %v687 = vld [vmem:[%s6 + $0x4] sm:$0xf]
          %v688 = vld [vmem:[%s6 + $0x8] sm:$0xf]
          %v689 = vld [vmem:[%s6 + $0xc] sm:$0xf]
          %v690 = vld [vmem:[%s7] sm:$0x1]
          %v692 = vlaneseq
          %v693 = vshrl.u32 %v692, 7
          %v694 = vsub.s32 0, %v693
          %v695 = vrot.slane %v690, %v694
          %v701 = vunpack.c.l.b16 %v686
          %v702 = vunpack.c.l.b16 %v687
          %v703 = vunpack.c.l.b16 %v688
          %v704 = vunpack.c.l.b16 %v689
          %v705 = vpack.c.b16 %v702, %v701
          %v706 = vpack.c.b16 %v704, %v703
          %709 = vmatprep.subr.bf16.mxu0 0
          %710 = vmatpush1.bf16.msra.mxu0 %v705
          %711 = vmatprep.subr.bf16.mxu0 0
          %712 = vmatpush1.bf16.msra.mxu0 %v706
          %713 = vmatprep.subr.bf16.mxu0 0
          %714 = vmatpush1.bf16.msra.mxu0 0
          %715 = vmatprep.subr.bf16.mxu0 0
          %716 = vmatpush1.bf16.msra.mxu0 0
          %717 = vmatprep.subr.bf16.mxu0 0
          %718 = vmatpush1.bf16.msra.mxu0 0
          %719 = vmatprep.subr.bf16.mxu0 0
          %720 = vmatpush1.bf16.msra.mxu0 0
          %721 = vmatprep.subr.bf16.mxu0 0
          %722 = vmatpush1.bf16.msra.mxu0 0
          %723 = vmatprep.subr.bf16.mxu0 0
          %724 = vmatpush1.bf16.msra.mxu0 0
          %725 = vmatprep.subr.bf16.mxu0 0
          %726 = vmatpush1.bf16.msra.mxu0 0
          %727 = vmatprep.subr.bf16.mxu0 0
          %728 = vmatpush1.bf16.msra.mxu0 0
          %729 = vmatprep.subr.bf16.mxu0 0
          %730 = vmatpush1.bf16.msra.mxu0 0
          %731 = vmatprep.subr.bf16.mxu0 0
          %732 = vmatpush1.bf16.msra.mxu0 0
          %733 = vmatprep.subr.bf16.mxu0 0
          %734 = vmatpush1.bf16.msra.mxu0 0
          %735 = vmatprep.subr.bf16.mxu0 0
          %736 = vmatpush1.bf16.msra.mxu0 0
          %737 = vmatprep.subr.bf16.mxu0 0
          %738 = vmatpush1.bf16.msra.mxu0 0
          %739 = vmatprep.subr.bf16.mxu0 0
          %740 = vmatpush1.bf16.msra.mxu0 0
          %741 = vmatprep.mubr.bf16.mxu0 0
          %742 = vmatmul.mubr.bf16.gmra.mrb[0].mxu0 %v644
          %v743 = vpop.f32.mrb[0].mxu0
          %v744 = vadd.f32 %v695, %v743
          %v745 = vpop.f32.mrb[0].mxu0
          %v746 = vpop.f32.mrb[0].mxu0
          %v747 = vpop.f32.mrb[0].mxu0
          %748 = vdwg.mxu0
          %v749 = vpack.c.bf16 %v681, %v681
          %vm750 = vcmask 60416
          %751 = vst.msk [vmem:[#allocation2] sm:$0xf] %vm750, %v749
          %v752 = vpack.c.bf16 %v744, %v744
          %753 = vst.msk [vmem:[#allocation3] sm:$0xf] %vm750, %v752
          %s754 = scalar_lea.vmem %s4, 16
          %v755 = vld [vmem:[%s754] sm:$0xf]
          %v756 = vld [vmem:[%s754 + $0x4] sm:$0xf]
          %v757 = vld [vmem:[%s754 + $0x8] sm:$0xf]
          %v758 = vld [vmem:[%s754 + $0xc] sm:$0xf]
          %s759 = scalar_lea.vmem %s5, 1
          %v760 = vld [vmem:[%s759] sm:$0x1]
          %v762 = vlaneseq
          %v763 = vshrl.u32 %v762, 7
          %v764 = vsub.s32 0, %v763
          %v765 = vrot.slane %v760, %v764
          %v771 = vunpack.c.l.b16 %v755
          %v772 = vunpack.c.l.b16 %v756
          %v773 = vunpack.c.l.b16 %v757
          %v774 = vunpack.c.l.b16 %v758
          %v775 = vpack.c.b16 %v772, %v771
          %v776 = vpack.c.b16 %v774, %v773
          %779 = vmatprep.subr.bf16.mxu0 0
          %780 = vmatpush1.bf16.msra.mxu0 %v775
          %781 = vmatprep.subr.bf16.mxu0 0
          %782 = vmatpush1.bf16.msra.mxu0 %v776
          %783 = vmatprep.subr.bf16.mxu0 0
          %784 = vmatpush1.bf16.msra.mxu0 0
          %785 = vmatprep.subr.bf16.mxu0 0
          %786 = vmatpush1.bf16.msra.mxu0 0
          %787 = vmatprep.subr.bf16.mxu0 0
          %788 = vmatpush1.bf16.msra.mxu0 0
          %789 = vmatprep.subr.bf16.mxu0 0
          %790 = vmatpush1.bf16.msra.mxu0 0
          %791 = vmatprep.subr.bf16.mxu0 0
          %792 = vmatpush1.bf16.msra.mxu0 0
          %793 = vmatprep.subr.bf16.mxu0 0
          %794 = vmatpush1.bf16.msra.mxu0 0
          %795 = vmatprep.subr.bf16.mxu0 0
          %796 = vmatpush1.bf16.msra.mxu0 0
          %797 = vmatprep.subr.bf16.mxu0 0
          %798 = vmatpush1.bf16.msra.mxu0 0
          %799 = vmatprep.subr.bf16.mxu0 0
          %800 = vmatpush1.bf16.msra.mxu0 0
          %801 = vmatprep.subr.bf16.mxu0 0
          %802 = vmatpush1.bf16.msra.mxu0 0
          %803 = vmatprep.subr.bf16.mxu0 0
          %804 = vmatpush1.bf16.msra.mxu0 0
          %805 = vmatprep.subr.bf16.mxu0 0
          %806 = vmatpush1.bf16.msra.mxu0 0
          %807 = vmatprep.subr.bf16.mxu0 0
          %808 = vmatpush1.bf16.msra.mxu0 0
          %809 = vmatprep.subr.bf16.mxu0 0
          %810 = vmatpush1.bf16.msra.mxu0 0
          %811 = vmatprep.mubr.bf16.mxu0 0
          %812 = vmatmul.mubr.bf16.gmra.mrb[0].mxu0 %v644
          %v813 = vpop.f32.mrb[0].mxu0
          %v814 = vadd.f32 %v765, %v813
          %v815 = vpop.f32.mrb[0].mxu0
          %v816 = vpop.f32.mrb[0].mxu0
          %v817 = vpop.f32.mrb[0].mxu0
          %818 = vdwg.mxu0
          %s819 = scalar_lea.vmem %s6, 16
          %v820 = vld [vmem:[%s819] sm:$0xf]
          %v821 = vld [vmem:[%s819 + $0x4] sm:$0xf]
          %v822 = vld [vmem:[%s819 + $0x8] sm:$0xf]
          %v823 = vld [vmem:[%s819 + $0xc] sm:$0xf]
          %s824 = scalar_lea.vmem %s7, 1
          %v825 = vld [vmem:[%s824] sm:$0x1]
          %v827 = vlaneseq
          %v828 = vshrl.u32 %v827, 7
          %v829 = vsub.s32 0, %v828
          %v830 = vrot.slane %v825, %v829
          %v836 = vunpack.c.l.b16 %v820
          %v837 = vunpack.c.l.b16 %v821
          %v838 = vunpack.c.l.b16 %v822
          %v839 = vunpack.c.l.b16 %v823
          %v840 = vpack.c.b16 %v837, %v836
          %v841 = vpack.c.b16 %v839, %v838
          %844 = vmatprep.subr.bf16.mxu0 0
          %845 = vmatpush1.bf16.msra.mxu0 %v840
          %846 = vmatprep.subr.bf16.mxu0 0
          %847 = vmatpush1.bf16.msra.mxu0 %v841
          %848 = vmatprep.subr.bf16.mxu0 0
          %849 = vmatpush1.bf16.msra.mxu0 0
          %850 = vmatprep.subr.bf16.mxu0 0
          %851 = vmatpush1.bf16.msra.mxu0 0
          %852 = vmatprep.subr.bf16.mxu0 0
          %853 = vmatpush1.bf16.msra.mxu0 0
          %854 = vmatprep.subr.bf16.mxu0 0
          %855 = vmatpush1.bf16.msra.mxu0 0
          %856 = vmatprep.subr.bf16.mxu0 0
          %857 = vmatpush1.bf16.msra.mxu0 0
          %858 = vmatprep.subr.bf16.mxu0 0
          %859 = vmatpush1.bf16.msra.mxu0 0
          %860 = vmatprep.subr.bf16.mxu0 0
          %861 = vmatpush1.bf16.msra.mxu0 0
          %862 = vmatprep.subr.bf16.mxu0 0
          %863 = vmatpush1.bf16.msra.mxu0 0
          %864 = vmatprep.subr.bf16.mxu0 0
          %865 = vmatpush1.bf16.msra.mxu0 0
          %866 = vmatprep.subr.bf16.mxu0 0
          %867 = vmatpush1.bf16.msra.mxu0 0
          %868 = vmatprep.subr.bf16.mxu0 0
          %869 = vmatpush1.bf16.msra.mxu0 0
          %870 = vmatprep.subr.bf16.mxu0 0
          %871 = vmatpush1.bf16.msra.mxu0 0
          %872 = vmatprep.subr.bf16.mxu0 0
          %873 = vmatpush1.bf16.msra.mxu0 0
          %874 = vmatprep.subr.bf16.mxu0 0
          %875 = vmatpush1.bf16.msra.mxu0 0
          %876 = vmatprep.mubr.bf16.mxu0 0
          %877 = vmatmul.mubr.bf16.gmra.mrb[0].mxu0 %v644
          %v878 = vpop.f32.mrb[0].mxu0
          %v879 = vadd.f32 %v830, %v878
          %v880 = vpop.f32.mrb[0].mxu0
          %v881 = vpop.f32.mrb[0].mxu0
          %v882 = vpop.f32.mrb[0].mxu0
          %883 = vdwg.mxu0
          %v884 = vpack.c.bf16 %v814, %v814
          %s885 = scalar_lea.vmem [#allocation2], 4
          %886 = vst.msk [vmem:[%s885] sm:$0xf] %vm750, %v884
          %v887 = vpack.c.bf16 %v879, %v879
          %s888 = scalar_lea.vmem [#allocation3], 4
          %889 = vst.msk [vmem:[%s888] sm:$0xf] %vm750, %v887
          %s890 = scalar_lea.vmem %s4, 32
          %v891 = vld [vmem:[%s890] sm:$0xf]
          %v892 = vld [vmem:[%s890 + $0x4] sm:$0xf]
          %v893 = vld [vmem:[%s890 + $0x8] sm:$0xf]
          %v894 = vld [vmem:[%s890 + $0xc] sm:$0xf]
          %s895 = scalar_lea.vmem %s5, 2
          %v896 = vld [vmem:[%s895] sm:$0x1]
          %v898 = vlaneseq
          %v899 = vshrl.u32 %v898, 7
          %v900 = vsub.s32 0, %v899
          %v901 = vrot.slane %v896, %v900
          %v907 = vunpack.c.l.b16 %v891
          %v908 = vunpack.c.l.b16 %v892
          %v909 = vunpack.c.l.b16 %v893
          %v910 = vunpack.c.l.b16 %v894
          %v911 = vpack.c.b16 %v908, %v907
          %v912 = vpack.c.b16 %v910, %v909
          %915 = vmatprep.subr.bf16.mxu0 0
          %916 = vmatpush1.bf16.msra.mxu0 %v911
          %917 = vmatprep.subr.bf16.mxu0 0
          %918 = vmatpush1.bf16.msra.mxu0 %v912
          %919 = vmatprep.subr.bf16.mxu0 0
          %920 = vmatpush1.bf16.msra.mxu0 0
          %921 = vmatprep.subr.bf16.mxu0 0
          %922 = vmatpush1.bf16.msra.mxu0 0
          %923 = vmatprep.subr.bf16.mxu0 0
          %924 = vmatpush1.bf16.msra.mxu0 0
          %925 = vmatprep.subr.bf16.mxu0 0
          %926 = vmatpush1.bf16.msra.mxu0 0
          %927 = vmatprep.subr.bf16.mxu0 0
          %928 = vmatpush1.bf16.msra.mxu0 0
          %929 = vmatprep.subr.bf16.mxu0 0
          %930 = vmatpush1.bf16.msra.mxu0 0
          %931 = vmatprep.subr.bf16.mxu0 0
          %932 = vmatpush1.bf16.msra.mxu0 0
          %933 = vmatprep.subr.bf16.mxu0 0
          %934 = vmatpush1.bf16.msra.mxu0 0
          %935 = vmatprep.subr.bf16.mxu0 0
          %936 = vmatpush1.bf16.msra.mxu0 0
          %937 = vmatprep.subr.bf16.mxu0 0
          %938 = vmatpush1.bf16.msra.mxu0 0
          %939 = vmatprep.subr.bf16.mxu0 0
          %940 = vmatpush1.bf16.msra.mxu0 0
          %941 = vmatprep.subr.bf16.mxu0 0
          %942 = vmatpush1.bf16.msra.mxu0 0
          %943 = vmatprep.subr.bf16.mxu0 0
          %944 = vmatpush1.bf16.msra.mxu0 0
          %945 = vmatprep.subr.bf16.mxu0 0
          %946 = vmatpush1.bf16.msra.mxu0 0
          %947 = vmatprep.mubr.bf16.mxu0 0
          %948 = vmatmul.mubr.bf16.gmra.mrb[0].mxu0 %v644
          %v949 = vpop.f32.mrb[0].mxu0
          %v950 = vadd.f32 %v901, %v949
          %v951 = vpop.f32.mrb[0].mxu0
          %v952 = vpop.f32.mrb[0].mxu0
          %v953 = vpop.f32.mrb[0].mxu0
          %954 = vdwg.mxu0
          %s955 = scalar_lea.vmem %s6, 32
          %v956 = vld [vmem:[%s955] sm:$0xf]
          %v957 = vld [vmem:[%s955 + $0x4] sm:$0xf]
          %v958 = vld [vmem:[%s955 + $0x8] sm:$0xf]
          %v959 = vld [vmem:[%s955 + $0xc] sm:$0xf]
          %s960 = scalar_lea.vmem %s7, 2
          %v961 = vld [vmem:[%s960] sm:$0x1]
          %v963 = vlaneseq
          %v964 = vshrl.u32 %v963, 7
          %v965 = vsub.s32 0, %v964
          %v966 = vrot.slane %v961, %v965
          %v972 = vunpack.c.l.b16 %v956
          %v973 = vunpack.c.l.b16 %v957
          %v974 = vunpack.c.l.b16 %v958
          %v975 = vunpack.c.l.b16 %v959
          %v976 = vpack.c.b16 %v973, %v972
          %v977 = vpack.c.b16 %v975, %v974
          %980 = vmatprep.subr.bf16.mxu0 0
          %981 = vmatpush1.bf16.msra.mxu0 %v976
          %982 = vmatprep.subr.bf16.mxu0 0
          %983 = vmatpush1.bf16.msra.mxu0 %v977
          %984 = vmatprep.subr.bf16.mxu0 0
          %985 = vmatpush1.bf16.msra.mxu0 0
          %986 = vmatprep.subr.bf16.mxu0 0
          %987 = vmatpush1.bf16.msra.mxu0 0
          %988 = vmatprep.subr.bf16.mxu0 0
          %989 = vmatpush1.bf16.msra.mxu0 0
          %990 = vmatprep.subr.bf16.mxu0 0
          %991 = vmatpush1.bf16.msra.mxu0 0
          %992 = vmatprep.subr.bf16.mxu0 0
          %993 = vmatpush1.bf16.msra.mxu0 0
          %994 = vmatprep.subr.bf16.mxu0 0
          %995 = vmatpush1.bf16.msra.mxu0 0
          %996 = vmatprep.subr.bf16.mxu0 0
          %997 = vmatpush1.bf16.msra.mxu0 0
          %998 = vmatprep.subr.bf16.mxu0 0
          %999 = vmatpush1.bf16.msra.mxu0 0
          %1000 = vmatprep.subr.bf16.mxu0 0
          %1001 = vmatpush1.bf16.msra.mxu0 0
          %1002 = vmatprep.subr.bf16.mxu0 0
          %1003 = vmatpush1.bf16.msra.mxu0 0
          %1004 = vmatprep.subr.bf16.mxu0 0
          %1005 = vmatpush1.bf16.msra.mxu0 0
          %1006 = vmatprep.subr.bf16.mxu0 0
          %1007 = vmatpush1.bf16.msra.mxu0 0
          %1008 = vmatprep.subr.bf16.mxu0 0
          %1009 = vmatpush1.bf16.msra.mxu0 0
          %1010 = vmatprep.subr.bf16.mxu0 0
          %1011 = vmatpush1.bf16.msra.mxu0 0
          %1012 = vmatprep.mubr.bf16.mxu0 0
          %1013 = vmatmul.mubr.bf16.gmra.mrb[0].mxu0 %v644
          %v1014 = vpop.f32.mrb[0].mxu0
          %v1015 = vadd.f32 %v966, %v1014
          %v1016 = vpop.f32.mrb[0].mxu0
          %v1017 = vpop.f32.mrb[0].mxu0
          %v1018 = vpop.f32.mrb[0].mxu0
          %1019 = vdwg.mxu0
          %v1020 = vpack.c.bf16 %v950, %v950
          %s1021 = scalar_lea.vmem [#allocation2], 8
          %1022 = vst.msk [vmem:[%s1021] sm:$0xf] %vm750, %v1020
          %v1023 = vpack.c.bf16 %v1015, %v1015
          %s1024 = scalar_lea.vmem [#allocation3], 8
          %1025 = vst.msk [vmem:[%s1024] sm:$0xf] %vm750, %v1023
          %s1026 = scalar_lea.vmem %s4, 48
          %v1027 = vld [vmem:[%s1026] sm:$0xf]
          %v1028 = vld [vmem:[%s1026 + $0x4] sm:$0xf]
          %v1029 = vld [vmem:[%s1026 + $0x8] sm:$0xf]
          %v1030 = vld [vmem:[%s1026 + $0xc] sm:$0xf]
          %s1031 = scalar_lea.vmem %s5, 3
          %v1032 = vld [vmem:[%s1031] sm:$0x1]
          %v1034 = vlaneseq
          %v1035 = vshrl.u32 %v1034, 7
          %v1036 = vsub.s32 0, %v1035
          %v1037 = vrot.slane %v1032, %v1036
          %v1043 = vunpack.c.l.b16 %v1027
          %v1044 = vunpack.c.l.b16 %v1028
          %v1045 = vunpack.c.l.b16 %v1029
          %v1046 = vunpack.c.l.b16 %v1030
          %v1047 = vpack.c.b16 %v1044, %v1043
          %v1048 = vpack.c.b16 %v1046, %v1045
          %1051 = vmatprep.subr.bf16.mxu0 0
          %1052 = vmatpush1.bf16.msra.mxu0 %v1047
          %1053 = vmatprep.subr.bf16.mxu0 0
          %1054 = vmatpush1.bf16.msra.mxu0 %v1048
          %1055 = vmatprep.subr.bf16.mxu0 0
          %1056 = vmatpush1.bf16.msra.mxu0 0
          %1057 = vmatprep.subr.bf16.mxu0 0
          %1058 = vmatpush1.bf16.msra.mxu0 0
          %1059 = vmatprep.subr.bf16.mxu0 0
          %1060 = vmatpush1.bf16.msra.mxu0 0
          %1061 = vmatprep.subr.bf16.mxu0 0
          %1062 = vmatpush1.bf16.msra.mxu0 0
          %1063 = vmatprep.subr.bf16.mxu0 0
          %1064 = vmatpush1.bf16.msra.mxu0 0
          %1065 = vmatprep.subr.bf16.mxu0 0
          %1066 = vmatpush1.bf16.msra.mxu0 0
          %1067 = vmatprep.subr.bf16.mxu0 0
          %1068 = vmatpush1.bf16.msra.mxu0 0
          %1069 = vmatprep.subr.bf16.mxu0 0
          %1070 = vmatpush1.bf16.msra.mxu0 0
          %1071 = vmatprep.subr.bf16.mxu0 0
          %1072 = vmatpush1.bf16.msra.mxu0 0
          %1073 = vmatprep.subr.bf16.mxu0 0
          %1074 = vmatpush1.bf16.msra.mxu0 0
          %1075 = vmatprep.subr.bf16.mxu0 0
          %1076 = vmatpush1.bf16.msra.mxu0 0
          %1077 = vmatprep.subr.bf16.mxu0 0
          %1078 = vmatpush1.bf16.msra.mxu0 0
          %1079 = vmatprep.subr.bf16.mxu0 0
          %1080 = vmatpush1.bf16.msra.mxu0 0
          %1081 = vmatprep.subr.bf16.mxu0 0
          %1082 = vmatpush1.bf16.msra.mxu0 0
          %1083 = vmatprep.mubr.bf16.mxu0 0
          %1084 = vmatmul.mubr.bf16.gmra.mrb[0].mxu0 %v644
          %v1085 = vpop.f32.mrb[0].mxu0
          %v1086 = vadd.f32 %v1037, %v1085
          %v1087 = vpop.f32.mrb[0].mxu0
          %v1088 = vpop.f32.mrb[0].mxu0
          %v1089 = vpop.f32.mrb[0].mxu0
          %1090 = vdwg.mxu0
          %s1091 = scalar_lea.vmem %s6, 48
          %v1092 = vld [vmem:[%s1091] sm:$0xf]
          %v1093 = vld [vmem:[%s1091 + $0x4] sm:$0xf]
          %v1094 = vld [vmem:[%s1091 + $0x8] sm:$0xf]
          %v1095 = vld [vmem:[%s1091 + $0xc] sm:$0xf]
          %s1096 = scalar_lea.vmem %s7, 3
          %v1097 = vld [vmem:[%s1096] sm:$0x1]
          %v1099 = vlaneseq
          %v1100 = vshrl.u32 %v1099, 7
          %v1101 = vsub.s32 0, %v1100
          %v1102 = vrot.slane %v1097, %v1101
          %v1108 = vunpack.c.l.b16 %v1092
          %v1109 = vunpack.c.l.b16 %v1093
          %v1110 = vunpack.c.l.b16 %v1094
          %v1111 = vunpack.c.l.b16 %v1095
          %v1112 = vpack.c.b16 %v1109, %v1108
          %v1113 = vpack.c.b16 %v1111, %v1110
          %1116 = vmatprep.subr.bf16.mxu0 0
          %1117 = vmatpush1.bf16.msra.mxu0 %v1112
          %1118 = vmatprep.subr.bf16.mxu0 0
          %1119 = vmatpush1.bf16.msra.mxu0 %v1113
          %1120 = vmatprep.subr.bf16.mxu0 0
          %1121 = vmatpush1.bf16.msra.mxu0 0
          %1122 = vmatprep.subr.bf16.mxu0 0
          %1123 = vmatpush1.bf16.msra.mxu0 0
          %1124 = vmatprep.subr.bf16.mxu0 0
          %1125 = vmatpush1.bf16.msra.mxu0 0
          %1126 = vmatprep.subr.bf16.mxu0 0
          %1127 = vmatpush1.bf16.msra.mxu0 0
          %1128 = vmatprep.subr.bf16.mxu0 0
          %1129 = vmatpush1.bf16.msra.mxu0 0
          %1130 = vmatprep.subr.bf16.mxu0 0
          %1131 = vmatpush1.bf16.msra.mxu0 0
          %1132 = vmatprep.subr.bf16.mxu0 0
          %1133 = vmatpush1.bf16.msra.mxu0 0
          %1134 = vmatprep.subr.bf16.mxu0 0
          %1135 = vmatpush1.bf16.msra.mxu0 0
          %1136 = vmatprep.subr.bf16.mxu0 0
          %1137 = vmatpush1.bf16.msra.mxu0 0
          %1138 = vmatprep.subr.bf16.mxu0 0
          %1139 = vmatpush1.bf16.msra.mxu0 0
          %1140 = vmatprep.subr.bf16.mxu0 0
          %1141 = vmatpush1.bf16.msra.mxu0 0
          %1142 = vmatprep.subr.bf16.mxu0 0
          %1143 = vmatpush1.bf16.msra.mxu0 0
          %1144 = vmatprep.subr.bf16.mxu0 0
          %1145 = vmatpush1.bf16.msra.mxu0 0
          %1146 = vmatprep.subr.bf16.mxu0 0
          %1147 = vmatpush1.bf16.msra.mxu0 0
          %1148 = vmatprep.mubr.bf16.mxu0 0
          %1149 = vmatmul.mubr.bf16.gmra.mrb[0].mxu0 %v644
          %v1150 = vpop.f32.mrb[0].mxu0
          %v1151 = vadd.f32 %v1102, %v1150
          %v1152 = vpop.f32.mrb[0].mxu0
          %v1153 = vpop.f32.mrb[0].mxu0
          %v1154 = vpop.f32.mrb[0].mxu0
          %1155 = vdwg.mxu0
          %v1156 = vpack.c.bf16 %v1086, %v1086
          %s1157 = scalar_lea.vmem [#allocation2], 12
          %1158 = vst.msk [vmem:[%s1157] sm:$0xf] %vm750, %v1156
          %v1159 = vpack.c.bf16 %v1151, %v1151
          %s1160 = scalar_lea.vmem [#allocation3], 12
          %1161 = vst.msk [vmem:[%s1160] sm:$0xf] %vm750, %v1159
        $region96: #{tpu_custom_call.1} parent=91 // pred_fallthru
          _
        %s1162 = smul.u32 %s37, 8
        %s1163 = sshra.s32 %s1162, 3
        %s1164 = sand.u32 %s1162, 7
        %s1165 = smul.addr %s1163, 4
        %s1166 = scalar_lea.vmem %s605, %s1165
        %v1167 = vld [vmem:[%s1166] sm:$0xf]
        %v1168 = vld [vmem:[%s2] sm:$0xf]
        %v1169 = vld [vmem:[%s2 + $0x4] sm:$0xf]
        %v1170 = vld [vmem:[%s2 + $0x8] sm:$0xf]
        %v1171 = vld [vmem:[%s2 + $0xc] sm:$0xf]
        %v1172 = vld [vmem:[%s3] sm:$0x1]
        %v1174 = vlaneseq
        %v1175 = vshrl.u32 %v1174, 7
        %v1176 = vsub.s32 0, %v1175
        %v1177 = vrot.slane %v1172, %v1176
        %v1183 = vunpack.c.l.b16 %v1168
        %v1184 = vunpack.c.l.b16 %v1169
        %v1185 = vunpack.c.l.b16 %v1170
        %v1186 = vunpack.c.l.b16 %v1171
        %v1187 = vpack.c.b16 %v1184, %v1183
        %v1188 = vpack.c.b16 %v1186, %v1185
        %vm1191 = vcmask 261120
        %v1193 = vsel %vm1191, %v1167, 0
        %1195 = vmatprep.subr.bf16.mxu0 0
        %1196 = vmatpush1.bf16.msra.mxu0 %v1187
        %1197 = vmatprep.subr.bf16.mxu0 0
        %1198 = vmatpush1.bf16.msra.mxu0 %v1188
        %1199 = vmatprep.subr.bf16.mxu0 0
        %1200 = vmatpush1.bf16.msra.mxu0 0
        %1201 = vmatprep.subr.bf16.mxu0 0
        %1202 = vmatpush1.bf16.msra.mxu0 0
        %1203 = vmatprep.subr.bf16.mxu0 0
        %1204 = vmatpush1.bf16.msra.mxu0 0
        %1205 = vmatprep.subr.bf16.mxu0 0
        %1206 = vmatpush1.bf16.msra.mxu0 0
        %1207 = vmatprep.subr.bf16.mxu0 0
        %1208 = vmatpush1.bf16.msra.mxu0 0
        %1209 = vmatprep.subr.bf16.mxu0 0
        %1210 = vmatpush1.bf16.msra.mxu0 0
        %1211 = vmatprep.subr.bf16.mxu0 0
        %1212 = vmatpush1.bf16.msra.mxu0 0
        %1213 = vmatprep.subr.bf16.mxu0 0
        %1214 = vmatpush1.bf16.msra.mxu0 0
        %1215 = vmatprep.subr.bf16.mxu0 0
        %1216 = vmatpush1.bf16.msra.mxu0 0
        %1217 = vmatprep.subr.bf16.mxu0 0
        %1218 = vmatpush1.bf16.msra.mxu0 0
        %1219 = vmatprep.subr.bf16.mxu0 0
        %1220 = vmatpush1.bf16.msra.mxu0 0
        %1221 = vmatprep.subr.bf16.mxu0 0
        %1222 = vmatpush1.bf16.msra.mxu0 0
        %1223 = vmatprep.subr.bf16.mxu0 0
        %1224 = vmatpush1.bf16.msra.mxu0 0
        %1225 = vmatprep.subr.bf16.mxu0 0
        %1226 = vmatpush1.bf16.msra.mxu0 0
        %1227 = vmatprep.mubr.bf16.mxu0 0
        %1228 = vmatmul.mubr.bf16.gmra.mrb[0].mxu0 %v1193
        %v1229 = vpop.f32.mrb[0].mxu0
        %v1230 = vadd.f32 %v1177, %v1229
        %v1231 = vpop.f32.mrb[0].mxu0
        %v1232 = vpop.f32.mrb[0].mxu0
        %v1233 = vpop.f32.mrb[0].mxu0
        %1234 = vdwg.mxu0
        %v1235 = vmul.f32 %v1230, 0.35355338
        %v1236 = vpack.c.bf16 %v1235, %v1235
        %vm1237 = vcmask 60416
        %1238 = vst.msk [vmem:[#allocation4] sm:$0xf] %vm1237, %v1236
        %s1239 = scalar_lea.vmem %s2, 16
        %v1240 = vld [vmem:[%s1239] sm:$0xf]
        %v1241 = vld [vmem:[%s1239 + $0x4] sm:$0xf]
        %v1242 = vld [vmem:[%s1239 + $0x8] sm:$0xf]
        %v1243 = vld [vmem:[%s1239 + $0xc] sm:$0xf]
        %s1244 = scalar_lea.vmem %s3, 1
        %v1245 = vld [vmem:[%s1244] sm:$0x1]
        %v1247 = vlaneseq
        %v1248 = vshrl.u32 %v1247, 7
        %v1249 = vsub.s32 0, %v1248
        %v1250 = vrot.slane %v1245, %v1249
        %v1256 = vunpack.c.l.b16 %v1240
        %v1257 = vunpack.c.l.b16 %v1241
        %v1258 = vunpack.c.l.b16 %v1242
        %v1259 = vunpack.c.l.b16 %v1243
        %v1260 = vpack.c.b16 %v1257, %v1256
        %v1261 = vpack.c.b16 %v1259, %v1258
        %1264 = vmatprep.subr.bf16.mxu0 0
        %1265 = vmatpush1.bf16.msra.mxu0 %v1260
        %1266 = vmatprep.subr.bf16.mxu0 0
        %1267 = vmatpush1.bf16.msra.mxu0 %v1261
        %1268 = vmatprep.subr.bf16.mxu0 0
        %1269 = vmatpush1.bf16.msra.mxu0 0
        %1270 = vmatprep.subr.bf16.mxu0 0
        %1271 = vmatpush1.bf16.msra.mxu0 0
        %1272 = vmatprep.subr.bf16.mxu0 0
        %1273 = vmatpush1.bf16.msra.mxu0 0
        %1274 = vmatprep.subr.bf16.mxu0 0
        %1275 = vmatpush1.bf16.msra.mxu0 0
        %1276 = vmatprep.subr.bf16.mxu0 0
        %1277 = vmatpush1.bf16.msra.mxu0 0
        %1278 = vmatprep.subr.bf16.mxu0 0
        %1279 = vmatpush1.bf16.msra.mxu0 0
        %1280 = vmatprep.subr.bf16.mxu0 0
        %1281 = vmatpush1.bf16.msra.mxu0 0
        %1282 = vmatprep.subr.bf16.mxu0 0
        %1283 = vmatpush1.bf16.msra.mxu0 0
        %1284 = vmatprep.subr.bf16.mxu0 0
        %1285 = vmatpush1.bf16.msra.mxu0 0
        %1286 = vmatprep.subr.bf16.mxu0 0
        %1287 = vmatpush1.bf16.msra.mxu0 0
        %1288 = vmatprep.subr.bf16.mxu0 0
        %1289 = vmatpush1.bf16.msra.mxu0 0
        %1290 = vmatprep.subr.bf16.mxu0 0
        %1291 = vmatpush1.bf16.msra.mxu0 0
        %1292 = vmatprep.subr.bf16.mxu0 0
        %1293 = vmatpush1.bf16.msra.mxu0 0
        %1294 = vmatprep.subr.bf16.mxu0 0
        %1295 = vmatpush1.bf16.msra.mxu0 0
        %1296 = vmatprep.mubr.bf16.mxu0 0
        %1297 = vmatmul.mubr.bf16.gmra.mrb[0].mxu0 %v1193
        %v1298 = vpop.f32.mrb[0].mxu0
        %v1299 = vadd.f32 %v1250, %v1298
        %v1300 = vpop.f32.mrb[0].mxu0
        %v1301 = vpop.f32.mrb[0].mxu0
        %v1302 = vpop.f32.mrb[0].mxu0
        %1303 = vdwg.mxu0
        %v1304 = vmul.f32 %v1299, 0.35355338
        %v1305 = vpack.c.bf16 %v1304, %v1304
        %s1306 = scalar_lea.vmem [#allocation4], 4
        %1307 = vst.msk [vmem:[%s1306] sm:$0xf] %vm1237, %v1305
        %s1308 = scalar_lea.vmem %s2, 32
        %v1309 = vld [vmem:[%s1308] sm:$0xf]
        %v1310 = vld [vmem:[%s1308 + $0x4] sm:$0xf]
        %v1311 = vld [vmem:[%s1308 + $0x8] sm:$0xf]
        %v1312 = vld [vmem:[%s1308 + $0xc] sm:$0xf]
        %s1313 = scalar_lea.vmem %s3, 2
        %v1314 = vld [vmem:[%s1313] sm:$0x1]
        %v1316 = vlaneseq
        %v1317 = vshrl.u32 %v1316, 7
        %v1318 = vsub.s32 0, %v1317
        %v1319 = vrot.slane %v1314, %v1318
        %v1325 = vunpack.c.l.b16 %v1309
        %v1326 = vunpack.c.l.b16 %v1310
        %v1327 = vunpack.c.l.b16 %v1311
        %v1328 = vunpack.c.l.b16 %v1312
        %v1329 = vpack.c.b16 %v1326, %v1325
        %v1330 = vpack.c.b16 %v1328, %v1327
        %1333 = vmatprep.subr.bf16.mxu0 0
        %1334 = vmatpush1.bf16.msra.mxu0 %v1329
        %1335 = vmatprep.subr.bf16.mxu0 0
        %1336 = vmatpush1.bf16.msra.mxu0 %v1330
        %1337 = vmatprep.subr.bf16.mxu0 0
        %1338 = vmatpush1.bf16.msra.mxu0 0
        %1339 = vmatprep.subr.bf16.mxu0 0
        %1340 = vmatpush1.bf16.msra.mxu0 0
        %1341 = vmatprep.subr.bf16.mxu0 0
        %1342 = vmatpush1.bf16.msra.mxu0 0
        %1343 = vmatprep.subr.bf16.mxu0 0
        %1344 = vmatpush1.bf16.msra.mxu0 0
        %1345 = vmatprep.subr.bf16.mxu0 0
        %1346 = vmatpush1.bf16.msra.mxu0 0
        %1347 = vmatprep.subr.bf16.mxu0 0
        %1348 = vmatpush1.bf16.msra.mxu0 0
        %1349 = vmatprep.subr.bf16.mxu0 0
        %1350 = vmatpush1.bf16.msra.mxu0 0
        %1351 = vmatprep.subr.bf16.mxu0 0
        %1352 = vmatpush1.bf16.msra.mxu0 0
        %1353 = vmatprep.subr.bf16.mxu0 0
        %1354 = vmatpush1.bf16.msra.mxu0 0
        %1355 = vmatprep.subr.bf16.mxu0 0
        %1356 = vmatpush1.bf16.msra.mxu0 0
        %1357 = vmatprep.subr.bf16.mxu0 0
        %1358 = vmatpush1.bf16.msra.mxu0 0
        %1359 = vmatprep.subr.bf16.mxu0 0
        %1360 = vmatpush1.bf16.msra.mxu0 0
        %1361 = vmatprep.subr.bf16.mxu0 0
        %1362 = vmatpush1.bf16.msra.mxu0 0
        %1363 = vmatprep.subr.bf16.mxu0 0
        %1364 = vmatpush1.bf16.msra.mxu0 0
        %1365 = vmatprep.mubr.bf16.mxu0 0
        %1366 = vmatmul.mubr.bf16.gmra.mrb[0].mxu0 %v1193
        %v1367 = vpop.f32.mrb[0].mxu0
        %v1368 = vadd.f32 %v1319, %v1367
        %v1369 = vpop.f32.mrb[0].mxu0
        %v1370 = vpop.f32.mrb[0].mxu0
        %v1371 = vpop.f32.mrb[0].mxu0
        %1372 = vdwg.mxu0
        %v1373 = vmul.f32 %v1368, 0.35355338
        %v1374 = vpack.c.bf16 %v1373, %v1373
        %s1375 = scalar_lea.vmem [#allocation4], 8
        %1376 = vst.msk [vmem:[%s1375] sm:$0xf] %vm1237, %v1374
        %s1377 = scalar_lea.vmem %s2, 48
        %v1378 = vld [vmem:[%s1377] sm:$0xf]
        %v1379 = vld [vmem:[%s1377 + $0x4] sm:$0xf]
        %v1380 = vld [vmem:[%s1377 + $0x8] sm:$0xf]
        %v1381 = vld [vmem:[%s1377 + $0xc] sm:$0xf]
        %s1382 = scalar_lea.vmem %s3, 3
        %v1383 = vld [vmem:[%s1382] sm:$0x1]
        %v1385 = vlaneseq
        %v1386 = vshrl.u32 %v1385, 7
        %v1387 = vsub.s32 0, %v1386
        %v1388 = vrot.slane %v1383, %v1387
        %v1394 = vunpack.c.l.b16 %v1378
        %v1395 = vunpack.c.l.b16 %v1379
        %v1396 = vunpack.c.l.b16 %v1380
        %v1397 = vunpack.c.l.b16 %v1381
        %v1398 = vpack.c.b16 %v1395, %v1394
        %v1399 = vpack.c.b16 %v1397, %v1396
        %1402 = vmatprep.subr.bf16.mxu0 0
        %1403 = vmatpush1.bf16.msra.mxu0 %v1398
        %1404 = vmatprep.subr.bf16.mxu0 0
        %1405 = vmatpush1.bf16.msra.mxu0 %v1399
        %1406 = vmatprep.subr.bf16.mxu0 0
        %1407 = vmatpush1.bf16.msra.mxu0 0
        %1408 = vmatprep.subr.bf16.mxu0 0
        %1409 = vmatpush1.bf16.msra.mxu0 0
        %1410 = vmatprep.subr.bf16.mxu0 0
        %1411 = vmatpush1.bf16.msra.mxu0 0
        %1412 = vmatprep.subr.bf16.mxu0 0
        %1413 = vmatpush1.bf16.msra.mxu0 0
        %1414 = vmatprep.subr.bf16.mxu0 0
        %1415 = vmatpush1.bf16.msra.mxu0 0
        %1416 = vmatprep.subr.bf16.mxu0 0
        %1417 = vmatpush1.bf16.msra.mxu0 0
        %1418 = vmatprep.subr.bf16.mxu0 0
        %1419 = vmatpush1.bf16.msra.mxu0 0
        %1420 = vmatprep.subr.bf16.mxu0 0
        %1421 = vmatpush1.bf16.msra.mxu0 0
        %1422 = vmatprep.subr.bf16.mxu0 0
        %1423 = vmatpush1.bf16.msra.mxu0 0
        %1424 = vmatprep.subr.bf16.mxu0 0
        %1425 = vmatpush1.bf16.msra.mxu0 0
        %1426 = vmatprep.subr.bf16.mxu0 0
        %1427 = vmatpush1.bf16.msra.mxu0 0
        %1428 = vmatprep.subr.bf16.mxu0 0
        %1429 = vmatpush1.bf16.msra.mxu0 0
        %1430 = vmatprep.subr.bf16.mxu0 0
        %1431 = vmatpush1.bf16.msra.mxu0 0
        %1432 = vmatprep.subr.bf16.mxu0 0
        %1433 = vmatpush1.bf16.msra.mxu0 0
        %1434 = vmatprep.mubr.bf16.mxu0 0
        %1435 = vmatmul.mubr.bf16.gmra.mrb[0].mxu0 %v1193
        %v1436 = vpop.f32.mrb[0].mxu0
        %v1437 = vadd.f32 %v1388, %v1436
        %v1438 = vpop.f32.mrb[0].mxu0
        %v1439 = vpop.f32.mrb[0].mxu0
        %v1440 = vpop.f32.mrb[0].mxu0
        %1441 = vdwg.mxu0
        %v1442 = vmul.f32 %v1437, 0.35355338
        %v1443 = vpack.c.bf16 %v1442, %v1442
        %s1444 = scalar_lea.vmem [#allocation4], 12
        %1445 = vst.msk [vmem:[%s1444] sm:$0xf] %vm1237, %v1443
        %v1446 = vld [vmem:[#allocation4] sm:$0xf]
        %v1447 = vld [vmem:[#allocation4 + $0x4] sm:$0xf]
        %v1448 = vld [vmem:[#allocation4 + $0x8] sm:$0xf]
        %v1449 = vld [vmem:[#allocation4 + $0xc] sm:$0xf]
        %v1450 = vld [vmem:[#allocation2] sm:$0xf]
        %v1451 = vld [vmem:[#allocation2 + $0x4] sm:$0xf]
        %v1452 = vld [vmem:[#allocation2 + $0x8] sm:$0xf]
        %v1453 = vld [vmem:[#allocation2 + $0xc] sm:$0xf]
        %v1454 = vld [vmem:[#allocation3] sm:$0xf]
        %v1455 = vld [vmem:[#allocation3 + $0x4] sm:$0xf]
        %v1456 = vld [vmem:[#allocation3 + $0x8] sm:$0xf]
        %v1457 = vld [vmem:[#allocation3 + $0xc] sm:$0xf]
        %vm1458 = vcmask 64512
        %v1460 = vsel %vm1458, %v1446, 0
        %v1463 = vsel %vm1458, %v1450, 0
        %1465 = vmatprep.subr.bf16.mxu0 0
        %1466 = vmatpush1.bf16.xpose.msra.mxu0 %v1463
        %1467 = vmatprep.subr.bf16.mxu0 0
        %1468 = vmatpush1.bf16.xpose.msra.mxu0 0
        %1469 = vmatprep.subr.bf16.mxu0 0
        %1470 = vmatpush1.bf16.xpose.msra.mxu0 0
        %1471 = vmatprep.subr.bf16.mxu0 0
        %1472 = vmatpush1.bf16.xpose.msra.mxu0 0
        %1473 = vmatprep.subr.bf16.mxu0 0
        %1474 = vmatpush1.bf16.xpose.msra.mxu0 0
        %1475 = vmatprep.subr.bf16.mxu0 0
        %1476 = vmatpush1.bf16.xpose.msra.mxu0 0
        %1477 = vmatprep.subr.bf16.mxu0 0
        %1478 = vmatpush1.bf16.xpose.msra.mxu0 0
        %1479 = vmatprep.subr.bf16.mxu0 0
        %1480 = vmatpush1.bf16.xpose.msra.mxu0 0
        %1481 = vmatprep.subr.bf16.mxu0 0
        %1482 = vmatpush1.bf16.xpose.msra.mxu0 0
        %1483 = vmatprep.subr.bf16.mxu0 0
        %1484 = vmatpush1.bf16.xpose.msra.mxu0 0
        %1485 = vmatprep.subr.bf16.mxu0 0
        %1486 = vmatpush1.bf16.xpose.msra.mxu0 0
        %1487 = vmatprep.subr.bf16.mxu0 0
        %1488 = vmatpush1.bf16.xpose.msra.mxu0 0
        %1489 = vmatprep.subr.bf16.mxu0 0
        %1490 = vmatpush1.bf16.xpose.msra.mxu0 0
        %1491 = vmatprep.subr.bf16.mxu0 0
        %1492 = vmatpush1.bf16.xpose.msra.mxu0 0
        %1493 = vmatprep.subr.bf16.mxu0 0
        %1494 = vmatpush1.bf16.xpose.msra.mxu0 0
        %1495 = vmatprep.subr.bf16.mxu0 0
        %1496 = vmatpush1.bf16.xpose.msra.mxu0 0
        %1497 = vmatprep.mubr.bf16.mxu0 0
        %1498 = vmatmul.mubr.bf16.gmra.mrb[0].mxu0 %v1460
        %v1499 = vpop.f32.mrb[0].mxu0
        %v1500 = vadd.f32 0.0, %v1499
        %v1501 = vpop.f32.mrb[0].mxu0
        %v1502 = vpop.f32.mrb[0].mxu0
        %v1503 = vpop.f32.mrb[0].mxu0
        %1504 = vdwg.mxu0
        %v1506 = vsel %vm1458, %v1447, 0
        %v1509 = vsel %vm1458, %v1451, 0
        %1511 = vmatprep.subr.bf16.mxu0 0
        %1512 = vmatpush1.bf16.xpose.msra.mxu0 %v1509
        %1513 = vmatprep.subr.bf16.mxu0 0
        %1514 = vmatpush1.bf16.xpose.msra.mxu0 0
        %1515 = vmatprep.subr.bf16.mxu0 0
        %1516 = vmatpush1.bf16.xpose.msra.mxu0 0
        %1517 = vmatprep.subr.bf16.mxu0 0
        %1518 = vmatpush1.bf16.xpose.msra.mxu0 0
        %1519 = vmatprep.subr.bf16.mxu0 0
        %1520 = vmatpush1.bf16.xpose.msra.mxu0 0
        %1521 = vmatprep.subr.bf16.mxu0 0
        %1522 = vmatpush1.bf16.xpose.msra.mxu0 0
        %1523 = vmatprep.subr.bf16.mxu0 0
        %1524 = vmatpush1.bf16.xpose.msra.mxu0 0
        %1525 = vmatprep.subr.bf16.mxu0 0
        %1526 = vmatpush1.bf16.xpose.msra.mxu0 0
        %1527 = vmatprep.subr.bf16.mxu0 0
        %1528 = vmatpush1.bf16.xpose.msra.mxu0 0
        %1529 = vmatprep.subr.bf16.mxu0 0
        %1530 = vmatpush1.bf16.xpose.msra.mxu0 0
        %1531 = vmatprep.subr.bf16.mxu0 0
        %1532 = vmatpush1.bf16.xpose.msra.mxu0 0
        %1533 = vmatprep.subr.bf16.mxu0 0
        %1534 = vmatpush1.bf16.xpose.msra.mxu0 0
        %1535 = vmatprep.subr.bf16.mxu0 0
        %1536 = vmatpush1.bf16.xpose.msra.mxu0 0
        %1537 = vmatprep.subr.bf16.mxu0 0
        %1538 = vmatpush1.bf16.xpose.msra.mxu0 0
        %1539 = vmatprep.subr.bf16.mxu0 0
        %1540 = vmatpush1.bf16.xpose.msra.mxu0 0
        %1541 = vmatprep.subr.bf16.mxu0 0
        %1542 = vmatpush1.bf16.xpose.msra.mxu0 0
        %1543 = vmatprep.mubr.bf16.mxu0 0
        %1544 = vmatmul.mubr.bf16.gmra.mrb[0].mxu0 %v1506
        %v1545 = vpop.f32.mrb[0].mxu0
        %v1546 = vadd.f32 0.0, %v1545
        %v1547 = vpop.f32.mrb[0].mxu0
        %v1548 = vpop.f32.mrb[0].mxu0
        %v1549 = vpop.f32.mrb[0].mxu0
        %1550 = vdwg.mxu0
        %v1552 = vsel %vm1458, %v1448, 0
        %v1555 = vsel %vm1458, %v1452, 0
        %1557 = vmatprep.subr.bf16.mxu0 0
        %1558 = vmatpush1.bf16.xpose.msra.mxu0 %v1555
        %1559 = vmatprep.subr.bf16.mxu0 0
        %1560 = vmatpush1.bf16.xpose.msra.mxu0 0
        %1561 = vmatprep.subr.bf16.mxu0 0
        %1562 = vmatpush1.bf16.xpose.msra.mxu0 0
        %1563 = vmatprep.subr.bf16.mxu0 0
        %1564 = vmatpush1.bf16.xpose.msra.mxu0 0
        %1565 = vmatprep.subr.bf16.mxu0 0
        %1566 = vmatpush1.bf16.xpose.msra.mxu0 0
        %1567 = vmatprep.subr.bf16.mxu0 0
        %1568 = vmatpush1.bf16.xpose.msra.mxu0 0
        %1569 = vmatprep.subr.bf16.mxu0 0
        %1570 = vmatpush1.bf16.xpose.msra.mxu0 0
        %1571 = vmatprep.subr.bf16.mxu0 0
        %1572 = vmatpush1.bf16.xpose.msra.mxu0 0
        %1573 = vmatprep.subr.bf16.mxu0 0
        %1574 = vmatpush1.bf16.xpose.msra.mxu0 0
        %1575 = vmatprep.subr.bf16.mxu0 0
        %1576 = vmatpush1.bf16.xpose.msra.mxu0 0
        %1577 = vmatprep.subr.bf16.mxu0 0
        %1578 = vmatpush1.bf16.xpose.msra.mxu0 0
        %1579 = vmatprep.subr.bf16.mxu0 0
        %1580 = vmatpush1.bf16.xpose.msra.mxu0 0
        %1581 = vmatprep.subr.bf16.mxu0 0
        %1582 = vmatpush1.bf16.xpose.msra.mxu0 0
        %1583 = vmatprep.subr.bf16.mxu0 0
        %1584 = vmatpush1.bf16.xpose.msra.mxu0 0
        %1585 = vmatprep.subr.bf16.mxu0 0
        %1586 = vmatpush1.bf16.xpose.msra.mxu0 0
        %1587 = vmatprep.subr.bf16.mxu0 0
        %1588 = vmatpush1.bf16.xpose.msra.mxu0 0
        %1589 = vmatprep.mubr.bf16.mxu0 0
        %1590 = vmatmul.mubr.bf16.gmra.mrb[0].mxu0 %v1552
        %v1591 = vpop.f32.mrb[0].mxu0
        %v1592 = vadd.f32 0.0, %v1591
        %v1593 = vpop.f32.mrb[0].mxu0
        %v1594 = vpop.f32.mrb[0].mxu0
        %v1595 = vpop.f32.mrb[0].mxu0
        %1596 = vdwg.mxu0
        %v1598 = vsel %vm1458, %v1449, 0
        %v1601 = vsel %vm1458, %v1453, 0
        %1603 = vmatprep.subr.bf16.mxu0 0
        %1604 = vmatpush1.bf16.xpose.msra.mxu0 %v1601
        %1605 = vmatprep.subr.bf16.mxu0 0
        %1606 = vmatpush1.bf16.xpose.msra.mxu0 0
        %1607 = vmatprep.subr.bf16.mxu0 0
        %1608 = vmatpush1.bf16.xpose.msra.mxu0 0
        %1609 = vmatprep.subr.bf16.mxu0 0
        %1610 = vmatpush1.bf16.xpose.msra.mxu0 0
        %1611 = vmatprep.subr.bf16.mxu0 0
        %1612 = vmatpush1.bf16.xpose.msra.mxu0 0
        %1613 = vmatprep.subr.bf16.mxu0 0
        %1614 = vmatpush1.bf16.xpose.msra.mxu0 0
        %1615 = vmatprep.subr.bf16.mxu0 0
        %1616 = vmatpush1.bf16.xpose.msra.mxu0 0
        %1617 = vmatprep.subr.bf16.mxu0 0
        %1618 = vmatpush1.bf16.xpose.msra.mxu0 0
        %1619 = vmatprep.subr.bf16.mxu0 0
        %1620 = vmatpush1.bf16.xpose.msra.mxu0 0
        %1621 = vmatprep.subr.bf16.mxu0 0
        %1622 = vmatpush1.bf16.xpose.msra.mxu0 0
        %1623 = vmatprep.subr.bf16.mxu0 0
        %1624 = vmatpush1.bf16.xpose.msra.mxu0 0
        %1625 = vmatprep.subr.bf16.mxu0 0
        %1626 = vmatpush1.bf16.xpose.msra.mxu0 0
        %1627 = vmatprep.subr.bf16.mxu0 0
        %1628 = vmatpush1.bf16.xpose.msra.mxu0 0
        %1629 = vmatprep.subr.bf16.mxu0 0
        %1630 = vmatpush1.bf16.xpose.msra.mxu0 0
        %1631 = vmatprep.subr.bf16.mxu0 0
        %1632 = vmatpush1.bf16.xpose.msra.mxu0 0
        %1633 = vmatprep.subr.bf16.mxu0 0
        %1634 = vmatpush1.bf16.xpose.msra.mxu0 0
        %1635 = vmatprep.mubr.bf16.mxu0 0
        %1636 = vmatmul.mubr.bf16.gmra.mrb[0].mxu0 %v1598
        %v1637 = vpop.f32.mrb[0].mxu0
        %v1638 = vadd.f32 0.0, %v1637
        %v1639 = vpop.f32.mrb[0].mxu0
        %v1640 = vpop.f32.mrb[0].mxu0
        %v1641 = vpop.f32.mrb[0].mxu0
        %1642 = vdwg.mxu0
        %v1643 = vsel %vm1458, %v1500, -inf
        %1644 = vmax.xlane.f32.xlu0 %v1643
        %v1645 = vpop.xlane.xlu0 %1644
        %v1646 = vsel %vm1458, %v1546, -inf
        %1647 = vmax.xlane.f32.xlu0 %v1646
        %v1648 = vpop.xlane.xlu0 %1647
        %v1649 = vsel %vm1458, %v1592, -inf
        %1650 = vmax.xlane.f32.xlu0 %v1649
        %v1651 = vpop.xlane.xlu0 %1650
        %v1652 = vsel %vm1458, %v1638, -inf
        %1653 = vmax.xlane.f32.xlu0 %v1652
        %v1654 = vpop.xlane.xlu0 %1653
        %v1655 = vsub.f32 %v1500, %v1645
        %v1656 = vsub.f32 %v1546, %v1648
        %v1657 = vsub.f32 %v1592, %v1651
        %v1658 = vsub.f32 %v1638, %v1654
        %v1659 = vmul.f32 %v1655, 1.442695
        %v1660 = vpow.pop %v1659
        %v1661 = vmul.f32 %v1656, 1.442695
        %v1662 = vpow.pop %v1661
        %v1663 = vmul.f32 %v1657, 1.442695
        %v1664 = vpow.pop %v1663
        %v1665 = vmul.f32 %v1658, 1.442695
        %v1666 = vpow.pop %v1665
        %v1667 = vsel %vm1458, %v1660, 0.0
        %1668 = vadd.xlane.f32.xlu0 %v1667
        %v1669 = vpop.xlane.xlu0 %1668
        %v1670 = vsel %vm1458, %v1662, 0.0
        %1671 = vadd.xlane.f32.xlu0 %v1670
        %v1672 = vpop.xlane.xlu0 %1671
        %v1673 = vsel %vm1458, %v1664, 0.0
        %1674 = vadd.xlane.f32.xlu0 %v1673
        %v1675 = vpop.xlane.xlu0 %1674
        %v1676 = vsel %vm1458, %v1666, 0.0
        %1677 = vadd.xlane.f32.xlu0 %v1676
        %v1678 = vpop.xlane.xlu0 %1677
        %v1679 = vpack.c.bf16 %v1660, %v1660
        %v1680 = vpack.c.bf16 %v1662, %v1662
        %v1681 = vpack.c.bf16 %v1664, %v1664
        %v1682 = vpack.c.bf16 %v1666, %v1666
        %v1684 = vsel %vm1458, %v1679, 0
        %vm1686 = vcmask 1043456
        %v1688 = vsel %vm1686, %v1454, 0
        %1690 = vmatprep.subr.bf16.mxu0 0
        %1691 = vmatpush1.bf16.msra.mxu0 %v1688
        %1692 = vmatprep.subr.bf16.mxu0 0
        %1693 = vmatpush1.bf16.msra.mxu0 0
        %1694 = vmatprep.subr.bf16.mxu0 0
        %1695 = vmatpush1.bf16.msra.mxu0 0
        %1696 = vmatprep.subr.bf16.mxu0 0
        %1697 = vmatpush1.bf16.msra.mxu0 0
        %1698 = vmatprep.subr.bf16.mxu0 0
        %1699 = vmatpush1.bf16.msra.mxu0 0
        %1700 = vmatprep.subr.bf16.mxu0 0
        %1701 = vmatpush1.bf16.msra.mxu0 0
        %1702 = vmatprep.subr.bf16.mxu0 0
        %1703 = vmatpush1.bf16.msra.mxu0 0
        %1704 = vmatprep.subr.bf16.mxu0 0
        %1705 = vmatpush1.bf16.msra.mxu0 0
        %1706 = vmatprep.subr.bf16.mxu0 0
        %1707 = vmatpush1.bf16.msra.mxu0 0
        %1708 = vmatprep.subr.bf16.mxu0 0
        %1709 = vmatpush1.bf16.msra.mxu0 0
        %1710 = vmatprep.subr.bf16.mxu0 0
        %1711 = vmatpush1.bf16.msra.mxu0 0
        %1712 = vmatprep.subr.bf16.mxu0 0
        %1713 = vmatpush1.bf16.msra.mxu0 0
        %1714 = vmatprep.subr.bf16.mxu0 0
        %1715 = vmatpush1.bf16.msra.mxu0 0
        %1716 = vmatprep.subr.bf16.mxu0 0
        %1717 = vmatpush1.bf16.msra.mxu0 0
        %1718 = vmatprep.subr.bf16.mxu0 0
        %1719 = vmatpush1.bf16.msra.mxu0 0
        %1720 = vmatprep.subr.bf16.mxu0 0
        %1721 = vmatpush1.bf16.msra.mxu0 0
        %1722 = vmatprep.mubr.bf16.mxu0 0
        %1723 = vmatmul.mubr.bf16.gmra.mrb[0].mxu0 %v1684
        %v1724 = vpop.f32.mrb[0].mxu0
        %v1725 = vadd.f32 0.0, %v1724
        %v1726 = vpop.f32.mrb[0].mxu0
        %v1727 = vpop.f32.mrb[0].mxu0
        %v1728 = vpop.f32.mrb[0].mxu0
        %1729 = vdwg.mxu0
        %v1731 = vsel %vm1458, %v1680, 0
        %v1734 = vsel %vm1686, %v1455, 0
        %1736 = vmatprep.subr.bf16.mxu0 0
        %1737 = vmatpush1.bf16.msra.mxu0 %v1734
        %1738 = vmatprep.subr.bf16.mxu0 0
        %1739 = vmatpush1.bf16.msra.mxu0 0
        %1740 = vmatprep.subr.bf16.mxu0 0
        %1741 = vmatpush1.bf16.msra.mxu0 0
        %1742 = vmatprep.subr.bf16.mxu0 0
        %1743 = vmatpush1.bf16.msra.mxu0 0
        %1744 = vmatprep.subr.bf16.mxu0 0
        %1745 = vmatpush1.bf16.msra.mxu0 0
        %1746 = vmatprep.subr.bf16.mxu0 0
        %1747 = vmatpush1.bf16.msra.mxu0 0
        %1748 = vmatprep.subr.bf16.mxu0 0
        %1749 = vmatpush1.bf16.msra.mxu0 0
        %1750 = vmatprep.subr.bf16.mxu0 0
        %1751 = vmatpush1.bf16.msra.mxu0 0
        %1752 = vmatprep.subr.bf16.mxu0 0
        %1753 = vmatpush1.bf16.msra.mxu0 0
        %1754 = vmatprep.subr.bf16.mxu0 0
        %1755 = vmatpush1.bf16.msra.mxu0 0
        %1756 = vmatprep.subr.bf16.mxu0 0
        %1757 = vmatpush1.bf16.msra.mxu0 0
        %1758 = vmatprep.subr.bf16.mxu0 0
        %1759 = vmatpush1.bf16.msra.mxu0 0
        %1760 = vmatprep.subr.bf16.mxu0 0
        %1761 = vmatpush1.bf16.msra.mxu0 0
        %1762 = vmatprep.subr.bf16.mxu0 0
        %1763 = vmatpush1.bf16.msra.mxu0 0
        %1764 = vmatprep.subr.bf16.mxu0 0
        %1765 = vmatpush1.bf16.msra.mxu0 0
        %1766 = vmatprep.subr.bf16.mxu0 0
        %1767 = vmatpush1.bf16.msra.mxu0 0
        %1768 = vmatprep.mubr.bf16.mxu0 0
        %1769 = vmatmul.mubr.bf16.gmra.mrb[0].mxu0 %v1731
        %v1770 = vpop.f32.mrb[0].mxu0
        %v1771 = vadd.f32 0.0, %v1770
        %v1772 = vpop.f32.mrb[0].mxu0
        %v1773 = vpop.f32.mrb[0].mxu0
        %v1774 = vpop.f32.mrb[0].mxu0
        %1775 = vdwg.mxu0
        %v1777 = vsel %vm1458, %v1681, 0
        %v1780 = vsel %vm1686, %v1456, 0
        %1782 = vmatprep.subr.bf16.mxu0 0
        %1783 = vmatpush1.bf16.msra.mxu0 %v1780
        %1784 = vmatprep.subr.bf16.mxu0 0
        %1785 = vmatpush1.bf16.msra.mxu0 0
        %1786 = vmatprep.subr.bf16.mxu0 0
        %1787 = vmatpush1.bf16.msra.mxu0 0
        %1788 = vmatprep.subr.bf16.mxu0 0
        %1789 = vmatpush1.bf16.msra.mxu0 0
        %1790 = vmatprep.subr.bf16.mxu0 0
        %1791 = vmatpush1.bf16.msra.mxu0 0
        %1792 = vmatprep.subr.bf16.mxu0 0
        %1793 = vmatpush1.bf16.msra.mxu0 0
        %1794 = vmatprep.subr.bf16.mxu0 0
        %1795 = vmatpush1.bf16.msra.mxu0 0
        %1796 = vmatprep.subr.bf16.mxu0 0
        %1797 = vmatpush1.bf16.msra.mxu0 0
        %1798 = vmatprep.subr.bf16.mxu0 0
        %1799 = vmatpush1.bf16.msra.mxu0 0
        %1800 = vmatprep.subr.bf16.mxu0 0
        %1801 = vmatpush1.bf16.msra.mxu0 0
        %1802 = vmatprep.subr.bf16.mxu0 0
        %1803 = vmatpush1.bf16.msra.mxu0 0
        %1804 = vmatprep.subr.bf16.mxu0 0
        %1805 = vmatpush1.bf16.msra.mxu0 0
        %1806 = vmatprep.subr.bf16.mxu0 0
        %1807 = vmatpush1.bf16.msra.mxu0 0
        %1808 = vmatprep.subr.bf16.mxu0 0
        %1809 = vmatpush1.bf16.msra.mxu0 0
        %1810 = vmatprep.subr.bf16.mxu0 0
        %1811 = vmatpush1.bf16.msra.mxu0 0
        %1812 = vmatprep.subr.bf16.mxu0 0
        %1813 = vmatpush1.bf16.msra.mxu0 0
        %1814 = vmatprep.mubr.bf16.mxu0 0
        %1815 = vmatmul.mubr.bf16.gmra.mrb[0].mxu0 %v1777
        %v1816 = vpop.f32.mrb[0].mxu0
        %v1817 = vadd.f32 0.0, %v1816
        %v1818 = vpop.f32.mrb[0].mxu0
        %v1819 = vpop.f32.mrb[0].mxu0
        %v1820 = vpop.f32.mrb[0].mxu0
        %1821 = vdwg.mxu0
        %v1823 = vsel %vm1458, %v1682, 0
        %v1826 = vsel %vm1686, %v1457, 0
        %1828 = vmatprep.subr.bf16.mxu0 0
        %1829 = vmatpush1.bf16.msra.mxu0 %v1826
        %1830 = vmatprep.subr.bf16.mxu0 0
        %1831 = vmatpush1.bf16.msra.mxu0 0
        %1832 = vmatprep.subr.bf16.mxu0 0
        %1833 = vmatpush1.bf16.msra.mxu0 0
        %1834 = vmatprep.subr.bf16.mxu0 0
        %1835 = vmatpush1.bf16.msra.mxu0 0
        %1836 = vmatprep.subr.bf16.mxu0 0
        %1837 = vmatpush1.bf16.msra.mxu0 0
        %1838 = vmatprep.subr.bf16.mxu0 0
        %1839 = vmatpush1.bf16.msra.mxu0 0
        %1840 = vmatprep.subr.bf16.mxu0 0
        %1841 = vmatpush1.bf16.msra.mxu0 0
        %1842 = vmatprep.subr.bf16.mxu0 0
        %1843 = vmatpush1.bf16.msra.mxu0 0
        %1844 = vmatprep.subr.bf16.mxu0 0
        %1845 = vmatpush1.bf16.msra.mxu0 0
        %1846 = vmatprep.subr.bf16.mxu0 0
        %1847 = vmatpush1.bf16.msra.mxu0 0
        %1848 = vmatprep.subr.bf16.mxu0 0
        %1849 = vmatpush1.bf16.msra.mxu0 0
        %1850 = vmatprep.subr.bf16.mxu0 0
        %1851 = vmatpush1.bf16.msra.mxu0 0
        %1852 = vmatprep.subr.bf16.mxu0 0
        %1853 = vmatpush1.bf16.msra.mxu0 0
        %1854 = vmatprep.subr.bf16.mxu0 0
        %1855 = vmatpush1.bf16.msra.mxu0 0
        %1856 = vmatprep.subr.bf16.mxu0 0
        %1857 = vmatpush1.bf16.msra.mxu0 0
        %1858 = vmatprep.subr.bf16.mxu0 0
        %1859 = vmatpush1.bf16.msra.mxu0 0
        %1860 = vmatprep.mubr.bf16.mxu0 0
        %1861 = vmatmul.mubr.bf16.gmra.mrb[0].mxu0 %v1823
        %v1862 = vpop.f32.mrb[0].mxu0
        %v1863 = vadd.f32 0.0, %v1862
        %v1864 = vpop.f32.mrb[0].mxu0
        %v1865 = vpop.f32.mrb[0].mxu0
        %v1866 = vpop.f32.mrb[0].mxu0
        %1867 = vdwg.mxu0
        %v1868 = vrcp.pop %v1669
        %v1869 = vrcp.pop %v1672
        %v1870 = vrcp.pop %v1675
        %v1871 = vrcp.pop %v1678
        %v1872 = vmul.f32 %v1725, %v1868
        %v1873 = vpack.c.bf16 %v1872, %v1872
        %1874 = vst.msk [vmem:[#allocation5] sm:$0xf] %vm1237, %v1873
        %v1875 = vmul.f32 %v1771, %v1869
        %v1876 = vpack.c.bf16 %v1875, %v1875
        %v1878 = vunpack.c.l.b16 %v1876
        %v1879 = vpack.c.b16 %v1878, %v1878
        %1880 = vrot.lane.b32.xlu0 %v1879, 8
        %v1881 = vpop.permute.xlu0 %1880
        %vm1883 = vcmask 126016
        %1884 = vst.msk [vmem:[#allocation5] sm:$0xf] %vm1883, %v1881
        %v1885 = vmul.f32 %v1817, %v1870
        %v1886 = vpack.c.bf16 %v1885, %v1885
        %v1888 = vunpack.c.l.b16 %v1886
        %v1889 = vpack.c.b16 %v1888, %v1888
        %1890 = vrot.lane.b32.xlu0 %v1889, 16
        %v1891 = vpop.permute.xlu0 %1890
        %vm1893 = vcmask 191616
        %1894 = vst.msk [vmem:[#allocation5] sm:$0xf] %vm1893, %v1891
        %v1895 = vmul.f32 %v1863, %v1871
        %v1896 = vpack.c.bf16 %v1895, %v1895
        %v1898 = vunpack.c.l.b16 %v1896
        %v1899 = vpack.c.b16 %v1898, %v1898
        %1900 = vrot.lane.b32.xlu0 %v1899, 24
        %v1901 = vpop.permute.xlu0 %1900
        %vm1903 = vcmask 257216
        %1904 = vst.msk [vmem:[#allocation5] sm:$0xf] %vm1903, %v1901
        %v1905 = vld [vmem:[#allocation5] sm:$0xf]
        %v1906 = vld [vmem:[%s8] sm:$0xf]
        %v1907 = vld [vmem:[%s8 + $0x4] sm:$0xf]
        %v1908 = vld [vmem:[%s8 + $0x8] sm:$0xf]
        %v1909 = vld [vmem:[%s8 + $0xc] sm:$0xf]
        %v1910 = vld [vmem:[%s9] sm:$0x1]
        %v1912 = vlaneseq
        %v1913 = vshrl.u32 %v1912, 7
        %v1914 = vsub.s32 0, %v1913
        %v1915 = vrot.slane %v1910, %v1914
        %v1921 = vunpack.c.l.b16 %v1906
        %v1922 = vunpack.c.l.b16 %v1907
        %v1923 = vunpack.c.l.b16 %v1908
        %v1924 = vunpack.c.l.b16 %v1909
        %v1925 = vpack.c.b16 %v1922, %v1921
        %v1926 = vpack.c.b16 %v1924, %v1923
        %v1930 = vsel %vm1191, %v1905, 0
        %1932 = vmatprep.subr.bf16.mxu0 0
        %1933 = vmatpush1.bf16.msra.mxu0 %v1925
        %1934 = vmatprep.subr.bf16.mxu0 0
        %1935 = vmatpush1.bf16.msra.mxu0 %v1926
        %1936 = vmatprep.subr.bf16.mxu0 0
        %1937 = vmatpush1.bf16.msra.mxu0 0
        %1938 = vmatprep.subr.bf16.mxu0 0
        %1939 = vmatpush1.bf16.msra.mxu0 0
        %1940 = vmatprep.subr.bf16.mxu0 0
        %1941 = vmatpush1.bf16.msra.mxu0 0
        %1942 = vmatprep.subr.bf16.mxu0 0
        %1943 = vmatpush1.bf16.msra.mxu0 0
        %1944 = vmatprep.subr.bf16.mxu0 0
        %1945 = vmatpush1.bf16.msra.mxu0 0
        %1946 = vmatprep.subr.bf16.mxu0 0
        %1947 = vmatpush1.bf16.msra.mxu0 0
        %1948 = vmatprep.subr.bf16.mxu0 0
        %1949 = vmatpush1.bf16.msra.mxu0 0
        %1950 = vmatprep.subr.bf16.mxu0 0
        %1951 = vmatpush1.bf16.msra.mxu0 0
        %1952 = vmatprep.subr.bf16.mxu0 0
        %1953 = vmatpush1.bf16.msra.mxu0 0
        %1954 = vmatprep.subr.bf16.mxu0 0
        %1955 = vmatpush1.bf16.msra.mxu0 0
        %1956 = vmatprep.subr.bf16.mxu0 0
        %1957 = vmatpush1.bf16.msra.mxu0 0
        %1958 = vmatprep.subr.bf16.mxu0 0
        %1959 = vmatpush1.bf16.msra.mxu0 0
        %1960 = vmatprep.subr.bf16.mxu0 0
        %1961 = vmatpush1.bf16.msra.mxu0 0
        %1962 = vmatprep.subr.bf16.mxu0 0
        %1963 = vmatpush1.bf16.msra.mxu0 0
        %1964 = vmatprep.mubr.bf16.mxu0 0
        %1965 = vmatmul.mubr.bf16.gmra.mrb[0].mxu0 %v1930
        %v1966 = vpop.f32.mrb[0].mxu0
        %v1967 = vadd.f32 %v1915, %v1966
        %v1968 = vpop.f32.mrb[0].mxu0
        %v1969 = vpop.f32.mrb[0].mxu0
        %v1970 = vpop.f32.mrb[0].mxu0
        %1971 = vdwg.mxu0
        %v1972 = vld [vmem:[%s612] sm:$0xff]
        %v1973 = vadd.f32 %v1967, %v1972
        %v1974 = vld [vmem:[%s10] sm:$0x1]
        %v1975 = vld [vmem:[%s11] sm:$0x1]
        %v1976 = vsel %vm1191, %v1973, 0.0
        %1977 = vadd.xlane.f32.xlu0 %v1976
        %v1978 = vpop.xlane.xlu0 %1977
        %v1979 = vrcp.pop 32.0
        %v1980 = vmul.f32 %v1978, %v1979
        %v1981 = vsub.f32 %v1973, %v1980
        %v1982 = vmul.f32 %v1981, %v1981
        %v1983 = vsel %vm1191, %v1982, 0.0
        %1984 = vadd.xlane.f32.xlu0 %v1983
        %v1985 = vpop.xlane.xlu0 %1984
        %v1986 = vmul.f32 %v1985, %v1979
        %v1987 = vadd.f32 %v1986, 1e-05
        %v1988 = vrsqrt.pop %v1987
        %v1990 = vlaneseq
        %v1991 = vshrl.u32 %v1990, 7
        %v1992 = vsub.s32 0, %v1991
        %v1993 = vrot.slane %v1974, %v1992
        %v1995 = vmul.f32 %v1993, %v1988
        %v1996 = vmul.f32 %v1981, %v1995
        %v1998 = vlaneseq
        %v1999 = vshrl.u32 %v1998, 7
        %v2000 = vsub.s32 0, %v1999
        %v2001 = vrot.slane %v1975, %v2000
        %v2003 = vadd.f32 %v1996, %v2001
        %v2004 = vpack.c.bf16 %v2003, %v2003
        %v2005 = vld [vmem:[%s12] sm:$0xf]
        %v2006 = vld [vmem:[%s12 + $0x4] sm:$0xf]
        %v2007 = vld [vmem:[%s12 + $0x8] sm:$0xf]
        %v2008 = vld [vmem:[%s12 + $0xc] sm:$0xf]
        %v2009 = vld [vmem:[%s13] sm:$0x1]
        %v2011 = vlaneseq
        %v2012 = vshrl.u32 %v2011, 7
        %v2013 = vsub.s32 0, %v2012
        %v2014 = vrot.slane %v2009, %v2013
        %v2020 = vunpack.c.l.b16 %v2005
        %v2021 = vunpack.c.l.b16 %v2006
        %v2022 = vunpack.c.l.b16 %v2007
        %v2023 = vunpack.c.l.b16 %v2008
        %v2024 = vpack.c.b16 %v2021, %v2020
        %v2025 = vpack.c.b16 %v2023, %v2022
        %v2029 = vsel %vm1191, %v2004, 0
        %2031 = vmatprep.subr.bf16.mxu0 0
        %2032 = vmatpush1.bf16.msra.mxu0 %v2024
        %2033 = vmatprep.subr.bf16.mxu0 0
        %2034 = vmatpush1.bf16.msra.mxu0 %v2025
        %2035 = vmatprep.subr.bf16.mxu0 0
        %2036 = vmatpush1.bf16.msra.mxu0 0
        %2037 = vmatprep.subr.bf16.mxu0 0
        %2038 = vmatpush1.bf16.msra.mxu0 0
        %2039 = vmatprep.subr.bf16.mxu0 0
        %2040 = vmatpush1.bf16.msra.mxu0 0
        %2041 = vmatprep.subr.bf16.mxu0 0
        %2042 = vmatpush1.bf16.msra.mxu0 0
        %2043 = vmatprep.subr.bf16.mxu0 0
        %2044 = vmatpush1.bf16.msra.mxu0 0
        %2045 = vmatprep.subr.bf16.mxu0 0
        %2046 = vmatpush1.bf16.msra.mxu0 0
        %2047 = vmatprep.subr.bf16.mxu0 0
        %2048 = vmatpush1.bf16.msra.mxu0 0
        %2049 = vmatprep.subr.bf16.mxu0 0
        %2050 = vmatpush1.bf16.msra.mxu0 0
        %2051 = vmatprep.subr.bf16.mxu0 0
        %2052 = vmatpush1.bf16.msra.mxu0 0
        %2053 = vmatprep.subr.bf16.mxu0 0
        %2054 = vmatpush1.bf16.msra.mxu0 0
        %2055 = vmatprep.subr.bf16.mxu0 0
        %2056 = vmatpush1.bf16.msra.mxu0 0
        %2057 = vmatprep.subr.bf16.mxu0 0
        %2058 = vmatpush1.bf16.msra.mxu0 0
        %2059 = vmatprep.subr.bf16.mxu0 0
        %2060 = vmatpush1.bf16.msra.mxu0 0
        %2061 = vmatprep.subr.bf16.mxu0 0
        %2062 = vmatpush1.bf16.msra.mxu0 0
        %2063 = vmatprep.mubr.bf16.mxu0 0
        %2064 = vmatmul.mubr.bf16.gmra.mrb[0].mxu0 %v2029
        %v2065 = vpop.f32.mrb[0].mxu0
        %v2066 = vadd.f32 %v2014, %v2065
        %v2067 = vpop.f32.mrb[0].mxu0
        %v2068 = vpop.f32.mrb[0].mxu0
        %v2069 = vpop.f32.mrb[0].mxu0
        %2070 = vdwg.mxu0
        %v2071 = vmax.f32 %v2066, 0.0
        %v2072 = vpack.c.bf16 %v2071, %v2071
        %v2073 = vld [vmem:[%s14] sm:$0xf]
        %v2074 = vld [vmem:[%s14 + $0x4] sm:$0xf]
        %v2075 = vld [vmem:[%s14 + $0x8] sm:$0xf]
        %v2076 = vld [vmem:[%s14 + $0xc] sm:$0xf]
        %v2077 = vld [vmem:[%s14 + $0x10] sm:$0xf]
        %v2078 = vld [vmem:[%s14 + $0x14] sm:$0xf]
        %v2079 = vld [vmem:[%s14 + $0x18] sm:$0xf]
        %v2080 = vld [vmem:[%s14 + $0x1c] sm:$0xf]
        %v2081 = vld [vmem:[%s14 + $0x20] sm:$0xf]
        %v2082 = vld [vmem:[%s14 + $0x24] sm:$0xf]
        %v2083 = vld [vmem:[%s14 + $0x28] sm:$0xf]
        %v2084 = vld [vmem:[%s14 + $0x2c] sm:$0xf]
        %v2085 = vld [vmem:[%s14 + $0x30] sm:$0xf]
        %v2086 = vld [vmem:[%s14 + $0x34] sm:$0xf]
        %v2087 = vld [vmem:[%s14 + $0x38] sm:$0xf]
        %v2088 = vld [vmem:[%s14 + $0x3c] sm:$0xf]
        %v2089 = vld [vmem:[%s15] sm:$0x1]
        %v2091 = vlaneseq
        %v2092 = vshrl.u32 %v2091, 7
        %v2093 = vsub.s32 0, %v2092
        %v2094 = vrot.slane %v2089, %v2093
        %v2112 = vunpack.c.l.b16 %v2073
        %v2113 = vunpack.c.l.b16 %v2074
        %v2114 = vunpack.c.l.b16 %v2075
        %v2115 = vunpack.c.l.b16 %v2076
        %v2116 = vunpack.c.l.b16 %v2077
        %v2117 = vunpack.c.l.b16 %v2078
        %v2118 = vunpack.c.l.b16 %v2079
        %v2119 = vunpack.c.l.b16 %v2080
        %v2120 = vunpack.c.l.b16 %v2081
        %v2121 = vunpack.c.l.b16 %v2082
        %v2122 = vunpack.c.l.b16 %v2083
        %v2123 = vunpack.c.l.b16 %v2084
        %v2124 = vunpack.c.l.b16 %v2085
        %v2125 = vunpack.c.l.b16 %v2086
        %v2126 = vunpack.c.l.b16 %v2087
        %v2127 = vunpack.c.l.b16 %v2088
        %v2128 = vpack.c.b16 %v2113, %v2112
        %v2129 = vpack.c.b16 %v2115, %v2114
        %v2130 = vpack.c.b16 %v2117, %v2116
        %v2131 = vpack.c.b16 %v2119, %v2118
        %v2132 = vpack.c.b16 %v2121, %v2120
        %v2133 = vpack.c.b16 %v2123, %v2122
        %v2134 = vpack.c.b16 %v2125, %v2124
        %v2135 = vpack.c.b16 %v2127, %v2126
        %2144 = vmatprep.subr.bf16.mxu0 0
        %2145 = vmatpush1.bf16.msra.mxu0 %v2128
        %2146 = vmatprep.subr.bf16.mxu0 0
        %2147 = vmatpush1.bf16.msra.mxu0 %v2129
        %2148 = vmatprep.subr.bf16.mxu0 0
        %2149 = vmatpush1.bf16.msra.mxu0 %v2130
        %2150 = vmatprep.subr.bf16.mxu0 0
        %2151 = vmatpush1.bf16.msra.mxu0 %v2131
        %2152 = vmatprep.subr.bf16.mxu0 0
        %2153 = vmatpush1.bf16.msra.mxu0 %v2132
        %2154 = vmatprep.subr.bf16.mxu0 0
        %2155 = vmatpush1.bf16.msra.mxu0 %v2133
        %2156 = vmatprep.subr.bf16.mxu0 0
        %2157 = vmatpush1.bf16.msra.mxu0 %v2134
        %2158 = vmatprep.subr.bf16.mxu0 0
        %2159 = vmatpush1.bf16.msra.mxu0 %v2135
        %2160 = vmatprep.subr.bf16.mxu0 0
        %2161 = vmatpush1.bf16.msra.mxu0 0
        %2162 = vmatprep.subr.bf16.mxu0 0
        %2163 = vmatpush1.bf16.msra.mxu0 0
        %2164 = vmatprep.subr.bf16.mxu0 0
        %2165 = vmatpush1.bf16.msra.mxu0 0
        %2166 = vmatprep.subr.bf16.mxu0 0
        %2167 = vmatpush1.bf16.msra.mxu0 0
        %2168 = vmatprep.subr.bf16.mxu0 0
        %2169 = vmatpush1.bf16.msra.mxu0 0
        %2170 = vmatprep.subr.bf16.mxu0 0
        %2171 = vmatpush1.bf16.msra.mxu0 0
        %2172 = vmatprep.subr.bf16.mxu0 0
        %2173 = vmatpush1.bf16.msra.mxu0 0
        %2174 = vmatprep.subr.bf16.mxu0 0
        %2175 = vmatpush1.bf16.msra.mxu0 0
        %2176 = vmatprep.mubr.bf16.mxu0 0
        %2177 = vmatmul.mubr.bf16.gmra.mrb[0].mxu0 %v2072
        %v2178 = vpop.f32.mrb[0].mxu0
        %v2179 = vadd.f32 %v2094, %v2178
        %v2180 = vpop.f32.mrb[0].mxu0
        %v2181 = vpop.f32.mrb[0].mxu0
        %v2182 = vpop.f32.mrb[0].mxu0
        %2183 = vdwg.mxu0
        %v2184 = vadd.f32 %v2179, %v2003
        %v2185 = vld [vmem:[%s16] sm:$0x1]
        %v2186 = vld [vmem:[%s17] sm:$0x1]
        %v2187 = vsel %vm1191, %v2184, 0.0
        %2188 = vadd.xlane.f32.xlu0 %v2187
        %v2189 = vpop.xlane.xlu0 %2188
        %v2190 = vmul.f32 %v2189, %v1979
        %v2191 = vsub.f32 %v2184, %v2190
        %v2192 = vmul.f32 %v2191, %v2191
        %v2193 = vsel %vm1191, %v2192, 0.0
        %2194 = vadd.xlane.f32.xlu0 %v2193
        %v2195 = vpop.xlane.xlu0 %2194
        %v2196 = vmul.f32 %v2195, %v1979
        %v2197 = vadd.f32 %v2196, 1e-05
        %v2198 = vrsqrt.pop %v2197
        %v2200 = vlaneseq
        %v2201 = vshrl.u32 %v2200, 7
        %v2202 = vsub.s32 0, %v2201
        %v2203 = vrot.slane %v2185, %v2202
        %v2205 = vmul.f32 %v2203, %v2198
        %v2206 = vmul.f32 %v2191, %v2205
        %v2208 = vlaneseq
        %v2209 = vshrl.u32 %v2208, 7
        %v2210 = vsub.s32 0, %v2209
        %v2211 = vrot.slane %v2186, %v2210
        %v2213 = vadd.f32 %v2206, %v2211
        %2214 = vst.msk [vmem:[%s601] sm:$0xff] %vm1191, %v2213
        %s2215 = sand.u32 %s444, 1
        %s2216 = scalar_lea.sflag [#allocation7], %s2215
        %s2217 = sand.u32 %s444, 1
        %s2218 = smul.addr %s2217, 8
        %s2219 = scalar_lea.vmem [#allocation6], %s2218
        // Predicated region
        $region97: #{tpu_custom_call.1} parent=91 // pred_check
          %p2220 = pneg %p454
        $region98: #{tpu_custom_call.1} parent=91 // pred_check_branch
          %2222 = sbr.rel (%p2220) target = $region100
        $region99: #{tpu_custom_call.1} parent=91 // pred_region
          %s2224 = ssub.s32 128, 128
          %2225 = vsyncadd %s2216, %s2224
          %s2226 = sadd.s32 %s37, %s36
          %s2227 = smul.addr %s2226, 128
          %s2228 = scalar_lea.hbm %s18, %s2227
          %s2230 = sshll.u32 %s2219, 4
          %s2231 = int_to_ptr.vmem [resolvable:$true] %s2230
          %2233 = dma.vmem_to_hbm [thread:$0]  %s2231, 128, %s2228, %s2216
        $region100: #{tpu_custom_call.1} parent=91 // pred_fallthru
          _
      $region92: #{tpu_custom_call.1} parent=5 // pred_fallthru
        _
      %p2234 = scmp.le.s32.totalorder 2, %s27
      // Predicated region
      $region101: #{tpu_custom_call.1} parent=5 // pred_check
        %p2235 = pneg %p2234
      $region102: #{tpu_custom_call.1} parent=5 // pred_check_branch
        %2237 = sbr.rel (%p2235) target = $region104
      $region103: #{tpu_custom_call.1} parent=5 // pred_region
        %s2238 = ssub.s32 %s27, 2
        // Predicated region
        $region105: #{tpu_custom_call.1} parent=103 // pred_check
          %p2239 = pneg %p460
        $region106: #{tpu_custom_call.1} parent=103 // pred_check_branch
          %2241 = sbr.rel (%p2239) target = $region108
        $region107: #{tpu_custom_call.1} parent=103 // pred_region
          %s2242 = sand.u32 %s445, 1
          %s2243 = scalar_lea.sflag [#allocation7], %s2242
          %s2244 = sand.u32 %s445, 1
          %s2245 = smul.addr %s2244, 8
          %s2246 = scalar_lea.vmem [#allocation6], %s2245
          %2247 = dma.done %s2243, 128
        $region108: #{tpu_custom_call.1} parent=103 // pred_fallthru
          _
      $region104: #{tpu_custom_call.1} parent=5 // pred_fallthru
        _
    $region6: #{tpu_custom_call.1} parent=1 // loop_footer
      %s31 = sadd.s32 1, %s27
    $region7: #{tpu_custom_call.1} parent=1 // loop_footer_branch
      %26 = sbr.rel target = $region3
    $region8: #{tpu_custom_call.1} parent=1 // loop_exit
      _
    %2248 = vsyncpa [#allocation7], 1
    %s2249 = scalar_lea.sflag [#allocation7], 1
    %2250 = vsyncpa %s2249, 1

// kernel: tpu_custom_call.1
$region0: #{tpu_custom_call.1}
  #allocation0 [shape = 'u32[]', space=smem, size = 0x4, offset = 0x4, fixed_abs, tag = 'smem constant byte address 0x4 - core index']
  #allocation1 [shape = 'u32[144,128]{1,0:T(1,128)}', space=vmem, size = 0x12000, scoped, tag = 'internal scratch']
  #allocation2 [shape = 'bf16[4,8,8]{2,1,0:T(8,128)(2,1)}', space=vmem, size = 0x2000, scoped, tag = 'scratch operand']
  #allocation3 [shape = 'bf16[4,8,8]{2,1,0:T(8,128)(2,1)}', space=vmem, size = 0x2000, scoped, tag = 'scratch operand']
  #allocation4 [shape = 'bf16[4,8,8]{2,1,0:T(8,128)(2,1)}', space=vmem, size = 0x2000, scoped, tag = 'scratch operand']
  #allocation5 [shape = 'bf16[8,32]{1,0:T(8,128)(2,1)}', space=vmem, size = 0x800, scoped, tag = 'scratch operand']
  %s0 = inlined_call_operand.vmem [shape: bf16[2,8,32], index: 0, kind: input, shape index: {}]
  %s1 = inlined_call_operand.vmem [shape: f32[2,8,32], index: 1, kind: input, shape index: {}]
  %s2 = inlined_call_operand.vmem [shape: bf16[4,32,8], index: 2, kind: input, shape index: {}]
  %s3 = inlined_call_operand.vmem [shape: f32[4,1,8], index: 3, kind: input, shape index: {}]
  %s4 = inlined_call_operand.vmem [shape: bf16[4,32,8], index: 4, kind: input, shape index: {}]
  %s5 = inlined_call_operand.vmem [shape: f32[4,1,8], index: 5, kind: input, shape index: {}]
  %s6 = inlined_call_operand.vmem [shape: bf16[4,32,8], index: 6, kind: input, shape index: {}]
  %s7 = inlined_call_operand.vmem [shape: f32[4,1,8], index: 7, kind: input, shape index: {}]
  %s8 = inlined_call_operand.vmem [shape: bf16[32,32], index: 8, kind: input, shape index: {}]
  %s9 = inlined_call_operand.vmem [shape: f32[1,32], index: 9, kind: input, shape index: {}]
  %s10 = inlined_call_operand.vmem [shape: f32[1,32], index: 10, kind: input, shape index: {}]
  %s11 = inlined_call_operand.vmem [shape: f32[1,32], index: 11, kind: input, shape index: {}]
  %s12 = inlined_call_operand.vmem [shape: bf16[32,128], index: 12, kind: input, shape index: {}]
  %s13 = inlined_call_operand.vmem [shape: f32[1,128], index: 13, kind: input, shape index: {}]
  %s14 = inlined_call_operand.vmem [shape: bf16[128,32], index: 14, kind: input, shape index: {}]
  %s15 = inlined_call_operand.vmem [shape: f32[1,32], index: 15, kind: input, shape index: {}]
  %s16 = inlined_call_operand.vmem [shape: f32[1,32], index: 16, kind: input, shape index: {}]
  %s17 = inlined_call_operand.vmem [shape: f32[1,32], index: 17, kind: input, shape index: {}]
  %s18 = inlined_call_operand.hbm [shape: f32[2,8,32], index: 18, kind: output, shape index: {}]
  %s19 = sld [smem:[#allocation0]]
  $region109: #{tpu_custom_call.1} parent=0
    _
  %s21 = ssub.s32 1, %s19
  %s22 = scalar_select 0, %s21, %s19
  $region1: #{tpu_custom_call.1} parent=0
    #allocation6 [shape = 'u8[8192]{0}', space=vmem, size = 0x2000, scoped, tag = 'output window, operand 0']
    #allocation7 [shape = 's32[2]{0}', space=sflag, size = 0x8, scoped, tag = 'scoped memory for tpu_custom_call.1']
    %23 = vsyncpa [#allocation7], 0
    %s24 = scalar_lea.sflag [#allocation7], 1
    %25 = vsyncpa %s24, 0
    loop: start=0, step=1, limit=4
    $region2: #{tpu_custom_call.1} parent=1 // loop_pre_header
      _
    $region3: #{tpu_custom_call.1} parent=1 // loop_header
      %s27 = sphi 0, %s31
      %p28 = scmp.ge.s32.totalorder %s27, 4
      %s34 = sphi 0, %s46
      %s35 = sphi 0, %s42
      %s36 = sphi 0, %s34
      %s37 = sphi 0, %s35
      %s38 = sphi 0, %s36
      %s39 = sphi 0, %s37
      %s49 = sphi 0, %s51
      %s52 = sphi 0, %s49
      %s53 = sphi 0, %s52
      %s69 = sphi 0, %s53
      %s77 = sphi 0, %s79
      %s80 = sphi 0, %s77
      %s81 = sphi 0, %s80
      %s97 = sphi 0, %s81
      %s101 = sphi 0, %s101
      %s103 = sphi 0, %s101
      %s104 = sphi 0, %s103
      %s118 = sphi 0, %s104
      %s122 = sphi 0, %s122
      %s124 = sphi 0, %s122
      %s125 = sphi 0, %s124
      %s139 = sphi 0, %s125
      %s143 = sphi 0, %s143
      %s145 = sphi 0, %s143
      %s146 = sphi 0, %s145
      %s160 = sphi 0, %s146
      %s164 = sphi 0, %s164
      %s166 = sphi 0, %s164
      %s167 = sphi 0, %s166
      %s181 = sphi 0, %s167
      %s185 = sphi 0, %s185
      %s187 = sphi 0, %s185
      %s188 = sphi 0, %s187
      %s202 = sphi 0, %s188
      %s206 = sphi 0, %s206
      %s208 = sphi 0, %s206
      %s209 = sphi 0, %s208
      %s223 = sphi 0, %s209
      %s227 = sphi 0, %s227
      %s229 = sphi 0, %s227
      %s230 = sphi 0, %s229
      %s244 = sphi 0, %s230
      %s248 = sphi 0, %s248
      %s250 = sphi 0, %s248
      %s251 = sphi 0, %s250
      %s265 = sphi 0, %s251
      %s269 = sphi 0, %s269
      %s271 = sphi 0, %s269
      %s272 = sphi 0, %s271
      %s286 = sphi 0, %s272
      %s290 = sphi 0, %s290
      %s292 = sphi 0, %s290
      %s293 = sphi 0, %s292
      %s307 = sphi 0, %s293
      %s311 = sphi 0, %s311
      %s313 = sphi 0, %s311
      %s314 = sphi 0, %s313
      %s328 = sphi 0, %s314
      %s332 = sphi 0, %s332
      %s334 = sphi 0, %s332
      %s335 = sphi 0, %s334
      %s349 = sphi 0, %s335
      %s353 = sphi 0, %s353
      %s355 = sphi 0, %s353
      %s356 = sphi 0, %s355
      %s370 = sphi 0, %s356
      %s374 = sphi 0, %s374
      %s376 = sphi 0, %s374
      %s377 = sphi 0, %s376
      %s391 = sphi 0, %s377
      %s395 = sphi 0, %s395
      %s397 = sphi 0, %s395
      %s398 = sphi 0, %s397
      %s412 = sphi 0, %s398
      %s416 = sphi 0, %s416
      %s418 = sphi 0, %s416
      %s419 = sphi 0, %s418
      %s433 = sphi 0, %s419
      %s441 = sphi 0, %s443
      %s444 = sphi 0, %s441
      %s445 = sphi 0, %s444
      %s461 = sphi 0, %s445
    $region4: #{tpu_custom_call.1} parent=1 // loop_header_branch
      %30 = sbr.rel (%p28) target = $region8
    $region5: #{tpu_custom_call.1} parent=1 // loop_body
      %s32 = ssub.s32 %s27, 1
      %s33 = ssub.s32 %s27, 2
      %s40 = sadd.s32 1, %s35
      %p41 = scmp.ge.s32.totalorder %s40, 1
      %s42 = scalar_select %p41, 0, %s40
      %s43 = sadd.s32 1, %s34
      %s44 = scalar_select %p41, %s43, %s34
      %p45 = scmp.ge.s32.totalorder %s44, 2
      %s46 = scalar_select %p45, 0, %s44
      %s47 = ssub.s32 %s34, %s46
      %p48 = scmp.eq.s32.totalorder %s47, 0
      %s50 = sadd.s32 %s49, 1
      %s51 = scalar_select %p48, %s49, %s50
      %p54 = pneg %p48
      %p55 = scmp.eq.s32.totalorder %s27, 1
      %p56 = por %p54, %p55
      %p57 = scmp.ne.s32.totalorder %s49, %s52
      %p58 = scmp.eq.s32.totalorder %s27, 0
      %p59 = por %p57, %p58
      %p60 = scmp.ne.s32.totalorder %s49, %s52
      %p61 = scmp.eq.s32.totalorder %s32, 1
      %p62 = por %p60, %p61
      %p63 = scmp.ne.s32.totalorder %s52, %s53
      %p64 = scmp.eq.s32.totalorder %s32, 0
      %p65 = por %p63, %p64
      %p66 = scmp.ne.s32.totalorder %s52, %s53
      %p67 = scmp.eq.s32.totalorder %s33, 1
      %p68 = por %p66, %p67
      %p70 = scmp.ne.s32.totalorder %s53, %s69
      %p71 = scmp.eq.s32.totalorder %s33, 0
      %p72 = por %p70, %p71
      %s73 = ssub.s32 %s34, %s46
      %s74 = ssub.s32 %s35, %s42
      %s75 = sor.u32 %s73, %s74
      %p76 = scmp.eq.s32.totalorder %s75, 0
      %s78 = sadd.s32 %s77, 1
      %s79 = scalar_select %p76, %s77, %s78
      %p82 = pneg %p76
      %p83 = scmp.eq.s32.totalorder %s27, 1
      %p84 = por %p82, %p83
      %p85 = scmp.ne.s32.totalorder %s77, %s80
      %p86 = scmp.eq.s32.totalorder %s27, 0
      %p87 = por %p85, %p86
      %p88 = scmp.ne.s32.totalorder %s77, %s80
      %p89 = scmp.eq.s32.totalorder %s32, 1
      %p90 = por %p88, %p89
      %p91 = scmp.ne.s32.totalorder %s80, %s81
      %p92 = scmp.eq.s32.totalorder %s32, 0
      %p93 = por %p91, %p92
      %p94 = scmp.ne.s32.totalorder %s80, %s81
      %p95 = scmp.eq.s32.totalorder %s33, 1
      %p96 = por %p94, %p95
      %p98 = scmp.ne.s32.totalorder %s81, %s97
      %p99 = scmp.eq.s32.totalorder %s33, 0
      %p100 = por %p98, %p99
      %s102 = sadd.s32 %s101, 1
      %p105 = scmp.eq.s32.totalorder %s27, 1
      %p106 = scmp.ne.s32.totalorder %s101, %s103
      %p107 = scmp.eq.s32.totalorder %s27, 0
      %p108 = por %p106, %p107
      %p109 = scmp.ne.s32.totalorder %s101, %s103
      %p110 = scmp.eq.s32.totalorder %s32, 1
      %p111 = por %p109, %p110
      %p112 = scmp.ne.s32.totalorder %s103, %s104
      %p113 = scmp.eq.s32.totalorder %s32, 0
      %p114 = por %p112, %p113
      %p115 = scmp.ne.s32.totalorder %s103, %s104
      %p116 = scmp.eq.s32.totalorder %s33, 1
      %p117 = por %p115, %p116
      %p119 = scmp.ne.s32.totalorder %s104, %s118
      %p120 = scmp.eq.s32.totalorder %s33, 0
      %p121 = por %p119, %p120
      %s123 = sadd.s32 %s122, 1
      %p126 = scmp.eq.s32.totalorder %s27, 1
      %p127 = scmp.ne.s32.totalorder %s122, %s124
      %p128 = scmp.eq.s32.totalorder %s27, 0
      %p129 = por %p127, %p128
      %p130 = scmp.ne.s32.totalorder %s122, %s124
      %p131 = scmp.eq.s32.totalorder %s32, 1
      %p132 = por %p130, %p131
      %p133 = scmp.ne.s32.totalorder %s124, %s125
      %p134 = scmp.eq.s32.totalorder %s32, 0
      %p135 = por %p133, %p134
      %p136 = scmp.ne.s32.totalorder %s124, %s125
      %p137 = scmp.eq.s32.totalorder %s33, 1
      %p138 = por %p136, %p137
      %p140 = scmp.ne.s32.totalorder %s125, %s139
      %p141 = scmp.eq.s32.totalorder %s33, 0
      %p142 = por %p140, %p141
      %s144 = sadd.s32 %s143, 1
      %p147 = scmp.eq.s32.totalorder %s27, 1
      %p148 = scmp.ne.s32.totalorder %s143, %s145
      %p149 = scmp.eq.s32.totalorder %s27, 0
      %p150 = por %p148, %p149
      %p151 = scmp.ne.s32.totalorder %s143, %s145
      %p152 = scmp.eq.s32.totalorder %s32, 1
      %p153 = por %p151, %p152
      %p154 = scmp.ne.s32.totalorder %s145, %s146
      %p155 = scmp.eq.s32.totalorder %s32, 0
      %p156 = por %p154, %p155
      %p157 = scmp.ne.s32.totalorder %s145, %s146
      %p158 = scmp.eq.s32.totalorder %s33, 1
      %p159 = por %p157, %p158
      %p161 = scmp.ne.s32.totalorder %s146, %s160
      %p162 = scmp.eq.s32.totalorder %s33, 0
      %p163 = por %p161, %p162
      %s165 = sadd.s32 %s164, 1
      %p168 = scmp.eq.s32.totalorder %s27, 1
      %p169 = scmp.ne.s32.totalorder %s164, %s166
      %p170 = scmp.eq.s32.totalorder %s27, 0
      %p171 = por %p169, %p170
      %p172 = scmp.ne.s32.totalorder %s164, %s166
      %p173 = scmp.eq.s32.totalorder %s32, 1
      %p174 = por %p172, %p173
      %p175 = scmp.ne.s32.totalorder %s166, %s167
      %p176 = scmp.eq.s32.totalorder %s32, 0
      %p177 = por %p175, %p176
      %p178 = scmp.ne.s32.totalorder %s166, %s167
      %p179 = scmp.eq.s32.totalorder %s33, 1
      %p180 = por %p178, %p179
      %p182 = scmp.ne.s32.totalorder %s167, %s181
      %p183 = scmp.eq.s32.totalorder %s33, 0
      %p184 = por %p182, %p183
      %s186 = sadd.s32 %s185, 1
      %p189 = scmp.eq.s32.totalorder %s27, 1
      %p190 = scmp.ne.s32.totalorder %s185, %s187
      %p191 = scmp.eq.s32.totalorder %s27, 0
      %p192 = por %p190, %p191
      %p193 = scmp.ne.s32.totalorder %s185, %s187
      %p194 = scmp.eq.s32.totalorder %s32, 1
      %p195 = por %p193, %p194
      %p196 = scmp.ne.s32.totalorder %s187, %s188
      %p197 = scmp.eq.s32.totalorder %s32, 0
      %p198 = por %p196, %p197
      %p199 = scmp.ne.s32.totalorder %s187, %s188
      %p200 = scmp.eq.s32.totalorder %s33, 1
      %p201 = por %p199, %p200
      %p203 = scmp.ne.s32.totalorder %s188, %s202
      %p204 = scmp.eq.s32.totalorder %s33, 0
      %p205 = por %p203, %p204
      %s207 = sadd.s32 %s206, 1
      %p210 = scmp.eq.s32.totalorder %s27, 1
      %p211 = scmp.ne.s32.totalorder %s206, %s208
      %p212 = scmp.eq.s32.totalorder %s27, 0
      %p213 = por %p211, %p212
      %p214 = scmp.ne.s32.totalorder %s206, %s208
      %p215 = scmp.eq.s32.totalorder %s32, 1
      %p216 = por %p214, %p215
      %p217 = scmp.ne.s32.totalorder %s208, %s209
      %p218 = scmp.eq.s32.totalorder %s32, 0
      %p219 = por %p217, %p218
      %p220 = scmp.ne.s32.totalorder %s208, %s209
      %p221 = scmp.eq.s32.totalorder %s33, 1
      %p222 = por %p220, %p221
      %p224 = scmp.ne.s32.totalorder %s209, %s223
      %p225 = scmp.eq.s32.totalorder %s33, 0
      %p226 = por %p224, %p225
      %s228 = sadd.s32 %s227, 1
      %p231 = scmp.eq.s32.totalorder %s27, 1
      %p232 = scmp.ne.s32.totalorder %s227, %s229
      %p233 = scmp.eq.s32.totalorder %s27, 0
      %p234 = por %p232, %p233
      %p235 = scmp.ne.s32.totalorder %s227, %s229
      %p236 = scmp.eq.s32.totalorder %s32, 1
      %p237 = por %p235, %p236
      %p238 = scmp.ne.s32.totalorder %s229, %s230
      %p239 = scmp.eq.s32.totalorder %s32, 0
      %p240 = por %p238, %p239
      %p241 = scmp.ne.s32.totalorder %s229, %s230
      %p242 = scmp.eq.s32.totalorder %s33, 1
      %p243 = por %p241, %p242
      %p245 = scmp.ne.s32.totalorder %s230, %s244
      %p246 = scmp.eq.s32.totalorder %s33, 0
      %p247 = por %p245, %p246
      %s249 = sadd.s32 %s248, 1
      %p252 = scmp.eq.s32.totalorder %s27, 1
      %p253 = scmp.ne.s32.totalorder %s248, %s250
      %p254 = scmp.eq.s32.totalorder %s27, 0
      %p255 = por %p253, %p254
      %p256 = scmp.ne.s32.totalorder %s248, %s250
      %p257 = scmp.eq.s32.totalorder %s32, 1
      %p258 = por %p256, %p257
      %p259 = scmp.ne.s32.totalorder %s250, %s251
      %p260 = scmp.eq.s32.totalorder %s32, 0
      %p261 = por %p259, %p260
      %p262 = scmp.ne.s32.totalorder %s250, %s251
      %p263 = scmp.eq.s32.totalorder %s33, 1
      %p264 = por %p262, %p263
      %p266 = scmp.ne.s32.totalorder %s251, %s265
      %p267 = scmp.eq.s32.totalorder %s33, 0
      %p268 = por %p266, %p267
      %s270 = sadd.s32 %s269, 1
      %p273 = scmp.eq.s32.totalorder %s27, 1
      %p274 = scmp.ne.s32.totalorder %s269, %s271
      %p275 = scmp.eq.s32.totalorder %s27, 0
      %p276 = por %p274, %p275
      %p277 = scmp.ne.s32.totalorder %s269, %s271
      %p278 = scmp.eq.s32.totalorder %s32, 1
      %p279 = por %p277, %p278
      %p280 = scmp.ne.s32.totalorder %s271, %s272
      %p281 = scmp.eq.s32.totalorder %s32, 0
      %p282 = por %p280, %p281
      %p283 = scmp.ne.s32.totalorder %s271, %s272
      %p284 = scmp.eq.s32.totalorder %s33, 1
      %p285 = por %p283, %p284
      %p287 = scmp.ne.s32.totalorder %s272, %s286
      %p288 = scmp.eq.s32.totalorder %s33, 0
      %p289 = por %p287, %p288
      %s291 = sadd.s32 %s290, 1
      %p294 = scmp.eq.s32.totalorder %s27, 1
      %p295 = scmp.ne.s32.totalorder %s290, %s292
      %p296 = scmp.eq.s32.totalorder %s27, 0
      %p297 = por %p295, %p296
      %p298 = scmp.ne.s32.totalorder %s290, %s292
      %p299 = scmp.eq.s32.totalorder %s32, 1
      %p300 = por %p298, %p299
      %p301 = scmp.ne.s32.totalorder %s292, %s293
      %p302 = scmp.eq.s32.totalorder %s32, 0
      %p303 = por %p301, %p302
      %p304 = scmp.ne.s32.totalorder %s292, %s293
      %p305 = scmp.eq.s32.totalorder %s33, 1
      %p306 = por %p304, %p305
      %p308 = scmp.ne.s32.totalorder %s293, %s307
      %p309 = scmp.eq.s32.totalorder %s33, 0
      %p310 = por %p308, %p309
      %s312 = sadd.s32 %s311, 1
      %p315 = scmp.eq.s32.totalorder %s27, 1
      %p316 = scmp.ne.s32.totalorder %s311, %s313
      %p317 = scmp.eq.s32.totalorder %s27, 0
      %p318 = por %p316, %p317
      %p319 = scmp.ne.s32.totalorder %s311, %s313
      %p320 = scmp.eq.s32.totalorder %s32, 1
      %p321 = por %p319, %p320
      %p322 = scmp.ne.s32.totalorder %s313, %s314
      %p323 = scmp.eq.s32.totalorder %s32, 0
      %p324 = por %p322, %p323
      %p325 = scmp.ne.s32.totalorder %s313, %s314
      %p326 = scmp.eq.s32.totalorder %s33, 1
      %p327 = por %p325, %p326
      %p329 = scmp.ne.s32.totalorder %s314, %s328
      %p330 = scmp.eq.s32.totalorder %s33, 0
      %p331 = por %p329, %p330
      %s333 = sadd.s32 %s332, 1
      %p336 = scmp.eq.s32.totalorder %s27, 1
      %p337 = scmp.ne.s32.totalorder %s332, %s334
      %p338 = scmp.eq.s32.totalorder %s27, 0
      %p339 = por %p337, %p338
      %p340 = scmp.ne.s32.totalorder %s332, %s334
      %p341 = scmp.eq.s32.totalorder %s32, 1
      %p342 = por %p340, %p341
      %p343 = scmp.ne.s32.totalorder %s334, %s335
      %p344 = scmp.eq.s32.totalorder %s32, 0
      %p345 = por %p343, %p344
      %p346 = scmp.ne.s32.totalorder %s334, %s335
      %p347 = scmp.eq.s32.totalorder %s33, 1
      %p348 = por %p346, %p347
      %p350 = scmp.ne.s32.totalorder %s335, %s349
      %p351 = scmp.eq.s32.totalorder %s33, 0
      %p352 = por %p350, %p351
      %s354 = sadd.s32 %s353, 1
      %p357 = scmp.eq.s32.totalorder %s27, 1
      %p358 = scmp.ne.s32.totalorder %s353, %s355
      %p359 = scmp.eq.s32.totalorder %s27, 0
      %p360 = por %p358, %p359
      %p361 = scmp.ne.s32.totalorder %s353, %s355
      %p362 = scmp.eq.s32.totalorder %s32, 1
      %p363 = por %p361, %p362
      %p364 = scmp.ne.s32.totalorder %s355, %s356
      %p365 = scmp.eq.s32.totalorder %s32, 0
      %p366 = por %p364, %p365
      %p367 = scmp.ne.s32.totalorder %s355, %s356
      %p368 = scmp.eq.s32.totalorder %s33, 1
      %p369 = por %p367, %p368
      %p371 = scmp.ne.s32.totalorder %s356, %s370
      %p372 = scmp.eq.s32.totalorder %s33, 0
      %p373 = por %p371, %p372
      %s375 = sadd.s32 %s374, 1
      %p378 = scmp.eq.s32.totalorder %s27, 1
      %p379 = scmp.ne.s32.totalorder %s374, %s376
      %p380 = scmp.eq.s32.totalorder %s27, 0
      %p381 = por %p379, %p380
      %p382 = scmp.ne.s32.totalorder %s374, %s376
      %p383 = scmp.eq.s32.totalorder %s32, 1
      %p384 = por %p382, %p383
      %p385 = scmp.ne.s32.totalorder %s376, %s377
      %p386 = scmp.eq.s32.totalorder %s32, 0
      %p387 = por %p385, %p386
      %p388 = scmp.ne.s32.totalorder %s376, %s377
      %p389 = scmp.eq.s32.totalorder %s33, 1
      %p390 = por %p388, %p389
      %p392 = scmp.ne.s32.totalorder %s377, %s391
      %p393 = scmp.eq.s32.totalorder %s33, 0
      %p394 = por %p392, %p393
      %s396 = sadd.s32 %s395, 1
      %p399 = scmp.eq.s32.totalorder %s27, 1
      %p400 = scmp.ne.s32.totalorder %s395, %s397
      %p401 = scmp.eq.s32.totalorder %s27, 0
      %p402 = por %p400, %p401
      %p403 = scmp.ne.s32.totalorder %s395, %s397
      %p404 = scmp.eq.s32.totalorder %s32, 1
      %p405 = por %p403, %p404
      %p406 = scmp.ne.s32.totalorder %s397, %s398
      %p407 = scmp.eq.s32.totalorder %s32, 0
      %p408 = por %p406, %p407
      %p409 = scmp.ne.s32.totalorder %s397, %s398
      %p410 = scmp.eq.s32.totalorder %s33, 1
      %p411 = por %p409, %p410
      %p413 = scmp.ne.s32.totalorder %s398, %s412
      %p414 = scmp.eq.s32.totalorder %s33, 0
      %p415 = por %p413, %p414
      %s417 = sadd.s32 %s416, 1
      %p420 = scmp.eq.s32.totalorder %s27, 1
      %p421 = scmp.ne.s32.totalorder %s416, %s418
      %p422 = scmp.eq.s32.totalorder %s27, 0
      %p423 = por %p421, %p422
      %p424 = scmp.ne.s32.totalorder %s416, %s418
      %p425 = scmp.eq.s32.totalorder %s32, 1
      %p426 = por %p424, %p425
      %p427 = scmp.ne.s32.totalorder %s418, %s419
      %p428 = scmp.eq.s32.totalorder %s32, 0
      %p429 = por %p427, %p428
      %p430 = scmp.ne.s32.totalorder %s418, %s419
      %p431 = scmp.eq.s32.totalorder %s33, 1
      %p432 = por %p430, %p431
      %p434 = scmp.ne.s32.totalorder %s419, %s433
      %p435 = scmp.eq.s32.totalorder %s33, 0
      %p436 = por %p434, %p435
      %s437 = ssub.s32 %s34, %s46
      %s438 = ssub.s32 %s35, %s42
      %s439 = sor.u32 %s437, %s438
      %p440 = scmp.eq.s32.totalorder %s439, 0
      %s442 = sadd.s32 %s441, 1
      %s443 = scalar_select %p440, %s441, %s442
      %p446 = pneg %p440
      %p447 = scmp.eq.s32.totalorder %s27, 1
      %p448 = por %p446, %p447
      %p449 = scmp.ne.s32.totalorder %s441, %s444
      %p450 = scmp.eq.s32.totalorder %s27, 0
      %p451 = por %p449, %p450
      %p452 = scmp.ne.s32.totalorder %s441, %s444
      %p453 = scmp.eq.s32.totalorder %s32, 1
      %p454 = por %p452, %p453
      %p455 = scmp.ne.s32.totalorder %s444, %s445
      %p456 = scmp.eq.s32.totalorder %s32, 0
      %p457 = por %p455, %p456
      %p458 = scmp.ne.s32.totalorder %s444, %s445
      %p459 = scmp.eq.s32.totalorder %s33, 1
      %p460 = por %p458, %p459
      %p462 = scmp.ne.s32.totalorder %s445, %s461
      %p463 = scmp.eq.s32.totalorder %s33, 0
      %p464 = por %p462, %p463
      %p465 = scmp.le.s32.totalorder 1, %s27
      %p466 = scmp.lt.s32.totalorder %s27, 3
      %p467 = pnand %p465, %p466
      %p468 = pneg %p467
      // Predicated region
      $region9: #{tpu_custom_call.1} parent=5 // pred_check
        _
      $region10: #{tpu_custom_call.1} parent=5 // pred_check_branch
        %470 = sbr.rel (%p467) target = $region12
      $region11: #{tpu_custom_call.1} parent=5 // pred_region
        %s471 = ssub.s32 %s27, 1
        // Predicated region
        $region13: #{tpu_custom_call.1} parent=11 // pred_check
          %p472 = pneg %p114
        $region14: #{tpu_custom_call.1} parent=11 // pred_check_branch
          %474 = sbr.rel (%p472) target = $region16
        $region15: #{tpu_custom_call.1} parent=11 // pred_region
          _
        $region16: #{tpu_custom_call.1} parent=11 // pred_fallthru
          _
        // Predicated region
        $region17: #{tpu_custom_call.1} parent=11 // pred_check
          %p475 = pneg %p135
        $region18: #{tpu_custom_call.1} parent=11 // pred_check_branch
          %477 = sbr.rel (%p475) target = $region20
        $region19: #{tpu_custom_call.1} parent=11 // pred_region
          _
        $region20: #{tpu_custom_call.1} parent=11 // pred_fallthru
          _
        // Predicated region
        $region21: #{tpu_custom_call.1} parent=11 // pred_check
          %p478 = pneg %p156
        $region22: #{tpu_custom_call.1} parent=11 // pred_check_branch
          %480 = sbr.rel (%p478) target = $region24
        $region23: #{tpu_custom_call.1} parent=11 // pred_region
          _
        $region24: #{tpu_custom_call.1} parent=11 // pred_fallthru
          _
        // Predicated region
        $region25: #{tpu_custom_call.1} parent=11 // pred_check
          %p481 = pneg %p177
        $region26: #{tpu_custom_call.1} parent=11 // pred_check_branch
          %483 = sbr.rel (%p481) target = $region28
        $region27: #{tpu_custom_call.1} parent=11 // pred_region
          _
        $region28: #{tpu_custom_call.1} parent=11 // pred_fallthru
          _
        // Predicated region
        $region29: #{tpu_custom_call.1} parent=11 // pred_check
          %p484 = pneg %p198
        $region30: #{tpu_custom_call.1} parent=11 // pred_check_branch
          %486 = sbr.rel (%p484) target = $region32
        $region31: #{tpu_custom_call.1} parent=11 // pred_region
          _
        $region32: #{tpu_custom_call.1} parent=11 // pred_fallthru
          _
        // Predicated region
        $region33: #{tpu_custom_call.1} parent=11 // pred_check
          %p487 = pneg %p219
        $region34: #{tpu_custom_call.1} parent=11 // pred_check_branch
          %489 = sbr.rel (%p487) target = $region36
        $region35: #{tpu_custom_call.1} parent=11 // pred_region
          _
        $region36: #{tpu_custom_call.1} parent=11 // pred_fallthru
          _
        // Predicated region
        $region37: #{tpu_custom_call.1} parent=11 // pred_check
          %p490 = pneg %p240
        $region38: #{tpu_custom_call.1} parent=11 // pred_check_branch
          %492 = sbr.rel (%p490) target = $region40
        $region39: #{tpu_custom_call.1} parent=11 // pred_region
          _
        $region40: #{tpu_custom_call.1} parent=11 // pred_fallthru
          _
        // Predicated region
        $region41: #{tpu_custom_call.1} parent=11 // pred_check
          %p493 = pneg %p261
        $region42: #{tpu_custom_call.1} parent=11 // pred_check_branch
          %495 = sbr.rel (%p493) target = $region44
        $region43: #{tpu_custom_call.1} parent=11 // pred_region
          _
        $region44: #{tpu_custom_call.1} parent=11 // pred_fallthru
          _
        // Predicated region
        $region45: #{tpu_custom_call.1} parent=11 // pred_check
          %p496 = pneg %p282
        $region46: #{tpu_custom_call.1} parent=11 // pred_check_branch
          %498 = sbr.rel (%p496) target = $region48
        $region47: #{tpu_custom_call.1} parent=11 // pred_region
          _
        $region48: #{tpu_custom_call.1} parent=11 // pred_fallthru
          _
        // Predicated region
        $region49: #{tpu_custom_call.1} parent=11 // pred_check
          %p499 = pneg %p303
        $region50: #{tpu_custom_call.1} parent=11 // pred_check_branch
          %501 = sbr.rel (%p499) target = $region52
        $region51: #{tpu_custom_call.1} parent=11 // pred_region
          _
        $region52: #{tpu_custom_call.1} parent=11 // pred_fallthru
          _
        // Predicated region
        $region53: #{tpu_custom_call.1} parent=11 // pred_check
          %p502 = pneg %p324
        $region54: #{tpu_custom_call.1} parent=11 // pred_check_branch
          %504 = sbr.rel (%p502) target = $region56
        $region55: #{tpu_custom_call.1} parent=11 // pred_region
          _
        $region56: #{tpu_custom_call.1} parent=11 // pred_fallthru
          _
        // Predicated region
        $region57: #{tpu_custom_call.1} parent=11 // pred_check
          %p505 = pneg %p345
        $region58: #{tpu_custom_call.1} parent=11 // pred_check_branch
          %507 = sbr.rel (%p505) target = $region60
        $region59: #{tpu_custom_call.1} parent=11 // pred_region
          _
        $region60: #{tpu_custom_call.1} parent=11 // pred_fallthru
          _
        // Predicated region
        $region61: #{tpu_custom_call.1} parent=11 // pred_check
          %p508 = pneg %p366
        $region62: #{tpu_custom_call.1} parent=11 // pred_check_branch
          %510 = sbr.rel (%p508) target = $region64
        $region63: #{tpu_custom_call.1} parent=11 // pred_region
          _
        $region64: #{tpu_custom_call.1} parent=11 // pred_fallthru
          _
        // Predicated region
        $region65: #{tpu_custom_call.1} parent=11 // pred_check
          %p511 = pneg %p387
        $region66: #{tpu_custom_call.1} parent=11 // pred_check_branch
          %513 = sbr.rel (%p511) target = $region68
        $region67: #{tpu_custom_call.1} parent=11 // pred_region
          _
        $region68: #{tpu_custom_call.1} parent=11 // pred_fallthru
          _
        // Predicated region
        $region69: #{tpu_custom_call.1} parent=11 // pred_check
          %p514 = pneg %p408
        $region70: #{tpu_custom_call.1} parent=11 // pred_check_branch
          %516 = sbr.rel (%p514) target = $region72
        $region71: #{tpu_custom_call.1} parent=11 // pred_region
          _
        $region72: #{tpu_custom_call.1} parent=11 // pred_fallthru
          _
        // Predicated region
        $region73: #{tpu_custom_call.1} parent=11 // pred_check
          %p517 = pneg %p429
        $region74: #{tpu_custom_call.1} parent=11 // pred_check_branch
          %519 = sbr.rel (%p517) target = $region76
        $region75: #{tpu_custom_call.1} parent=11 // pred_region
          _
        $region76: #{tpu_custom_call.1} parent=11 // pred_fallthru
          _
      $region12: #{tpu_custom_call.1} parent=5 // pred_fallthru
        _
      %p520 = scmp.lt.s32.totalorder %s27, 2
      // Predicated region
      $region77: #{tpu_custom_call.1} parent=5 // pred_check
        %p521 = pneg %p520
      $region78: #{tpu_custom_call.1} parent=5 // pred_check_branch
        %523 = sbr.rel (%p521) target = $region80
      $region79: #{tpu_custom_call.1} parent=5 // pred_region
        // Predicated region
        $region81: #{tpu_custom_call.1} parent=79 // pred_check
          %p524 = pneg %p59
        $region82: #{tpu_custom_call.1} parent=79 // pred_check_branch
          %526 = sbr.rel (%p524) target = $region84
        $region83: #{tpu_custom_call.1} parent=79 // pred_region
          %p527 = scmp.lt.s32.totalorder %s34, 1
          %s528 = scalar_select %p527, %s34, 1
          %s529 = smul.addr %s528, 4
          %s530 = scalar_lea.vmem %s0, %s529
        $region84: #{tpu_custom_call.1} parent=79 // pred_fallthru
          _
        // Predicated region
        $region85: #{tpu_custom_call.1} parent=79 // pred_check
          %p531 = pneg %p87
        $region86: #{tpu_custom_call.1} parent=79 // pred_check_branch
          %533 = sbr.rel (%p531) target = $region88
        $region87: #{tpu_custom_call.1} parent=79 // pred_region
          %p534 = scmp.lt.s32.totalorder %s34, 1
          %s535 = scalar_select %p534, %s34, 1
          %p536 = scmp.lt.s32.totalorder %s35, 0
          %s537 = scalar_select %p536, %s35, 0
          %s538 = sadd.s32 %s537, %s535
          %s539 = smul.addr %s538, 8
          %s540 = scalar_lea.vmem %s1, %s539
        $region88: #{tpu_custom_call.1} parent=79 // pred_fallthru
          _
      $region80: #{tpu_custom_call.1} parent=5 // pred_fallthru
        _
      %p541 = scmp.le.s32.totalorder 1, %s27
      %p542 = scmp.lt.s32.totalorder %s27, 3
      %p543 = pnand %p541, %p542
      %p544 = pneg %p543
      // Predicated region
      $region89: #{tpu_custom_call.1} parent=5 // pred_check
        _
      $region90: #{tpu_custom_call.1} parent=5 // pred_check_branch
        %546 = sbr.rel (%p543) target = $region92
      $region91: #{tpu_custom_call.1} parent=5 // pred_region
        %s547 = ssub.s32 %s27, 1
        %p548 = scmp.lt.s32.totalorder %s36, 1
        %s549 = scalar_select %p548, %s36, 1
        %s550 = smul.addr %s549, 4
        %s551 = scalar_lea.vmem %s0, %s550
        %p552 = pneg %p65
        %p553 = pneg %p62
        %p554 = scmp.lt.s32.totalorder %s36, 1
        %s555 = scalar_select %p554, %s36, 1
        %p556 = scmp.lt.s32.totalorder %s37, 0
        %s557 = scalar_select %p556, %s37, 0
        %s558 = sadd.s32 %s557, %s555
        %s559 = smul.addr %s558, 8
        %s560 = scalar_lea.vmem %s1, %s559
        %p561 = pneg %p93
        %p562 = pneg %p90
        %p563 = pneg %p114
        %p564 = pneg %p111
        %p565 = pneg %p135
        %p566 = pneg %p132
        %p567 = pneg %p156
        %p568 = pneg %p153
        %p569 = pneg %p177
        %p570 = pneg %p174
        %p571 = pneg %p198
        %p572 = pneg %p195
        %p573 = pneg %p219
        %p574 = pneg %p216
        %p575 = pneg %p240
        %p576 = pneg %p237
        %p577 = pneg %p261
        %p578 = pneg %p258
        %p579 = pneg %p282
        %p580 = pneg %p279
        %p581 = pneg %p303
        %p582 = pneg %p300
        %p583 = pneg %p324
        %p584 = pneg %p321
        %p585 = pneg %p345
        %p586 = pneg %p342
        %p587 = pneg %p366
        %p588 = pneg %p363
        %p589 = pneg %p387
        %p590 = pneg %p384
        %p591 = pneg %p408
        %p592 = pneg %p405
        %p593 = pneg %p429
        %p594 = pneg %p426
        %p595 = pneg %p457
        %p596 = pneg %p454
        %s597 = sand.u32 %s444, 1
        %s598 = scalar_lea.sflag [#allocation7], %s597
        %s599 = sand.u32 %s444, 1
        %s600 = smul.addr %s599, 8
        %s601 = scalar_lea.vmem [#allocation6], %s600
        %p602 = scmp.lt.s32.totalorder %s36, 1
        %s603 = scalar_select %p602, %s36, 1
        %s604 = smul.addr %s603, 4
        %s605 = scalar_lea.vmem %s0, %s604
        %p606 = scmp.lt.s32.totalorder %s36, 1
        %s607 = scalar_select %p606, %s36, 1
        %p608 = scmp.lt.s32.totalorder %s37, 0
        %s609 = scalar_select %p608, %s37, 0
        %s610 = sadd.s32 %s609, %s607
        %s611 = smul.addr %s610, 8
        %s612 = scalar_lea.vmem %s1, %s611
        %p614 = scmp.eq.s32.totalorder %s37, 0
        // Predicated region
        $region93: #{tpu_custom_call.1} parent=91 // pred_check
          %p615 = pneg %p614
        $region94: #{tpu_custom_call.1} parent=91 // pred_check_branch
          %617 = sbr.rel (%p615) target = $region96
        $region95: #{tpu_custom_call.1} parent=91 // pred_region
          %v618 = vld [vmem:[%s605] sm:$0xf]
          %v619 = vld [vmem:[%s4] sm:$0xf]
          %v620 = vld [vmem:[%s4 + $0x4] sm:$0xf]
          %v621 = vld [vmem:[%s4 + $0x8] sm:$0xf]
          %v622 = vld [vmem:[%s4 + $0xc] sm:$0xf]
          %v623 = vld [vmem:[%s5] sm:$0x1]
          %v625 = vlaneseq
          %v626 = vshrl.u32 %v625, 7
          %v627 = vsub.s32 0, %v626
          %v628 = vrot.slane %v623, %v627
          %v634 = vunpack.c.l.b16 %v619
          %v635 = vunpack.c.l.b16 %v620
          %v636 = vunpack.c.l.b16 %v621
          %v637 = vunpack.c.l.b16 %v622
          %v638 = vpack.c.b16 %v635, %v634
          %v639 = vpack.c.b16 %v637, %v636
          %vm642 = vcmask 261120
          %v644 = vsel %vm642, %v618, 0
          %646 = vmatprep.subr.bf16.mxu0 0
          %647 = vmatpush1.bf16.msra.mxu0 %v638
          %648 = vmatprep.subr.bf16.mxu0 0
          %649 = vmatpush1.bf16.msra.mxu0 %v639
          %650 = vmatprep.subr.bf16.mxu0 0
          %651 = vmatpush1.bf16.msra.mxu0 0
          %652 = vmatprep.subr.bf16.mxu0 0
          %653 = vmatpush1.bf16.msra.mxu0 0
          %654 = vmatprep.subr.bf16.mxu0 0
          %655 = vmatpush1.bf16.msra.mxu0 0
          %656 = vmatprep.subr.bf16.mxu0 0
          %657 = vmatpush1.bf16.msra.mxu0 0
          %658 = vmatprep.subr.bf16.mxu0 0
          %659 = vmatpush1.bf16.msra.mxu0 0
          %660 = vmatprep.subr.bf16.mxu0 0
          %661 = vmatpush1.bf16.msra.mxu0 0
          %662 = vmatprep.subr.bf16.mxu0 0
          %663 = vmatpush1.bf16.msra.mxu0 0
          %664 = vmatprep.subr.bf16.mxu0 0
          %665 = vmatpush1.bf16.msra.mxu0 0
          %666 = vmatprep.subr.bf16.mxu0 0
          %667 = vmatpush1.bf16.msra.mxu0 0
          %668 = vmatprep.subr.bf16.mxu0 0
          %669 = vmatpush1.bf16.msra.mxu0 0
          %670 = vmatprep.subr.bf16.mxu0 0
          %671 = vmatpush1.bf16.msra.mxu0 0
          %672 = vmatprep.subr.bf16.mxu0 0
          %673 = vmatpush1.bf16.msra.mxu0 0
          %674 = vmatprep.subr.bf16.mxu0 0
          %675 = vmatpush1.bf16.msra.mxu0 0
          %676 = vmatprep.subr.bf16.mxu0 0
          %677 = vmatpush1.bf16.msra.mxu0 0
          %678 = vmatprep.mubr.bf16.mxu0 0
          %679 = vmatmul.mubr.bf16.gmra.mrb[0].mxu0 %v644
          %v680 = vpop.f32.mrb[0].mxu0
          %v681 = vadd.f32 %v628, %v680
          %v682 = vpop.f32.mrb[0].mxu0
          %v683 = vpop.f32.mrb[0].mxu0
          %v684 = vpop.f32.mrb[0].mxu0
          %685 = vdwg.mxu0
          %v686 = vld [vmem:[%s6] sm:$0xf]
          %v687 = vld [vmem:[%s6 + $0x4] sm:$0xf]
          %v688 = vld [vmem:[%s6 + $0x8] sm:$0xf]
          %v689 = vld [vmem:[%s6 + $0xc] sm:$0xf]
          %v690 = vld [vmem:[%s7] sm:$0x1]
          %v692 = vlaneseq
          %v693 = vshrl.u32 %v692, 7
          %v694 = vsub.s32 0, %v693
          %v695 = vrot.slane %v690, %v694
          %v701 = vunpack.c.l.b16 %v686
          %v702 = vunpack.c.l.b16 %v687
          %v703 = vunpack.c.l.b16 %v688
          %v704 = vunpack.c.l.b16 %v689
          %v705 = vpack.c.b16 %v702, %v701
          %v706 = vpack.c.b16 %v704, %v703
          %709 = vmatprep.subr.bf16.mxu0 0
          %710 = vmatpush1.bf16.msra.mxu0 %v705
          %711 = vmatprep.subr.bf16.mxu0 0
          %712 = vmatpush1.bf16.msra.mxu0 %v706
          %713 = vmatprep.subr.bf16.mxu0 0
          %714 = vmatpush1.bf16.msra.mxu0 0
          %715 = vmatprep.subr.bf16.mxu0 0
          %716 = vmatpush1.bf16.msra.mxu0 0
          %717 = vmatprep.subr.bf16.mxu0 0
          %718 = vmatpush1.bf16.msra.mxu0 0
          %719 = vmatprep.subr.bf16.mxu0 0
          %720 = vmatpush1.bf16.msra.mxu0 0
          %721 = vmatprep.subr.bf16.mxu0 0
          %722 = vmatpush1.bf16.msra.mxu0 0
          %723 = vmatprep.subr.bf16.mxu0 0
          %724 = vmatpush1.bf16.msra.mxu0 0
          %725 = vmatprep.subr.bf16.mxu0 0
          %726 = vmatpush1.bf16.msra.mxu0 0
          %727 = vmatprep.subr.bf16.mxu0 0
          %728 = vmatpush1.bf16.msra.mxu0 0
          %729 = vmatprep.subr.bf16.mxu0 0
          %730 = vmatpush1.bf16.msra.mxu0 0
          %731 = vmatprep.subr.bf16.mxu0 0
          %732 = vmatpush1.bf16.msra.mxu0 0
          %733 = vmatprep.subr.bf16.mxu0 0
          %734 = vmatpush1.bf16.msra.mxu0 0
          %735 = vmatprep.subr.bf16.mxu0 0
          %736 = vmatpush1.bf16.msra.mxu0 0
          %737 = vmatprep.subr.bf16.mxu0 0
          %738 = vmatpush1.bf16.msra.mxu0 0
          %739 = vmatprep.subr.bf16.mxu0 0
          %740 = vmatpush1.bf16.msra.mxu0 0
          %741 = vmatprep.mubr.bf16.mxu0 0
          %742 = vmatmul.mubr.bf16.gmra.mrb[0].mxu0 %v644
          %v743 = vpop.f32.mrb[0].mxu0
          %v744 = vadd.f32 %v695, %v743
          %v745 = vpop.f32.mrb[0].mxu0
          %v746 = vpop.f32.mrb[0].mxu0
          %v747 = vpop.f32.mrb[0].mxu0
          %748 = vdwg.mxu0
          %v749 = vpack.c.bf16 %v681, %v681
          %vm750 = vcmask 60416
          %751 = vst.msk [vmem:[#allocation2] sm:$0xf] %vm750, %v749
          %v752 = vpack.c.bf16 %v744, %v744
          %753 = vst.msk [vmem:[#allocation3] sm:$0xf] %vm750, %v752
          %s754 = scalar_lea.vmem %s4, 16
          %v755 = vld [vmem:[%s754] sm:$0xf]
          %v756 = vld [vmem:[%s754 + $0x4] sm:$0xf]
          %v757 = vld [vmem:[%s754 + $0x8] sm:$0xf]
          %v758 = vld [vmem:[%s754 + $0xc] sm:$0xf]
          %s759 = scalar_lea.vmem %s5, 1
          %v760 = vld [vmem:[%s759] sm:$0x1]
          %v762 = vlaneseq
          %v763 = vshrl.u32 %v762, 7
          %v764 = vsub.s32 0, %v763
          %v765 = vrot.slane %v760, %v764
          %v771 = vunpack.c.l.b16 %v755
          %v772 = vunpack.c.l.b16 %v756
          %v773 = vunpack.c.l.b16 %v757
          %v774 = vunpack.c.l.b16 %v758
          %v775 = vpack.c.b16 %v772, %v771
          %v776 = vpack.c.b16 %v774, %v773
          %779 = vmatprep.subr.bf16.mxu0 0
          %780 = vmatpush1.bf16.msra.mxu0 %v775
          %781 = vmatprep.subr.bf16.mxu0 0
          %782 = vmatpush1.bf16.msra.mxu0 %v776
          %783 = vmatprep.subr.bf16.mxu0 0
          %784 = vmatpush1.bf16.msra.mxu0 0
          %785 = vmatprep.subr.bf16.mxu0 0
          %786 = vmatpush1.bf16.msra.mxu0 0
          %787 = vmatprep.subr.bf16.mxu0 0
          %788 = vmatpush1.bf16.msra.mxu0 0
          %789 = vmatprep.subr.bf16.mxu0 0
          %790 = vmatpush1.bf16.msra.mxu0 0
          %791 = vmatprep.subr.bf16.mxu0 0
          %792 = vmatpush1.bf16.msra.mxu0 0
          %793 = vmatprep.subr.bf16.mxu0 0
          %794 = vmatpush1.bf16.msra.mxu0 0
          %795 = vmatprep.subr.bf16.mxu0 0
          %796 = vmatpush1.bf16.msra.mxu0 0
          %797 = vmatprep.subr.bf16.mxu0 0
          %798 = vmatpush1.bf16.msra.mxu0 0
          %799 = vmatprep.subr.bf16.mxu0 0
          %800 = vmatpush1.bf16.msra.mxu0 0
          %801 = vmatprep.subr.bf16.mxu0 0
          %802 = vmatpush1.bf16.msra.mxu0 0
          %803 = vmatprep.subr.bf16.mxu0 0
          %804 = vmatpush1.bf16.msra.mxu0 0
          %805 = vmatprep.subr.bf16.mxu0 0
          %806 = vmatpush1.bf16.msra.mxu0 0
          %807 = vmatprep.subr.bf16.mxu0 0
          %808 = vmatpush1.bf16.msra.mxu0 0
          %809 = vmatprep.subr.bf16.mxu0 0
          %810 = vmatpush1.bf16.msra.mxu0 0
          %811 = vmatprep.mubr.bf16.mxu0 0
          %812 = vmatmul.mubr.bf16.gmra.mrb[0].mxu0 %v644
          %v813 = vpop.f32.mrb[0].mxu0
          %v814 = vadd.f32 %v765, %v813
          %v815 = vpop.f32.mrb[0].mxu0
          %v816 = vpop.f32.mrb[0].mxu0
          %v817 = vpop.f32.mrb[0].mxu0
          %818 = vdwg.mxu0
          %s819 = scalar_lea.vmem %s6, 16
          %v820 = vld [vmem:[%s819] sm:$0xf]
          %v821 = vld [vmem:[%s819 + $0x4] sm:$0xf]
          %v822 = vld [vmem:[%s819 + $0x8] sm:$0xf]
          %v823 = vld [vmem:[%s819 + $0xc] sm:$0xf]
          %s824 = scalar_lea.vmem %s7, 1
          %v825 = vld [vmem:[%s824] sm:$0x1]
          %v827 = vlaneseq
          %v828 = vshrl.u32 %v827, 7
          %v829 = vsub.s32 0, %v828
          %v830 = vrot.slane %v825, %v829
          %v836 = vunpack.c.l.b16 %v820
          %v837 = vunpack.c.l.b16 %v821
          %v838 = vunpack.c.l.b16 %v822
          %v839 = vunpack.c.l.b16 %v823
          %v840 = vpack.c.b16 %v837, %v836
          %v841 = vpack.c.b16 %v839, %v838
          %844 = vmatprep.subr.bf16.mxu0 0
          %845 = vmatpush1.bf16.msra.mxu0 %v840
          %846 = vmatprep.subr.bf16.mxu0 0
          %847 = vmatpush1.bf16.msra.mxu0 %v841
          %848 = vmatprep.subr.bf16.mxu0 0
          %849 = vmatpush1.bf16.msra.mxu0 0
          %850 = vmatprep.subr.bf16.mxu0 0
          %851 = vmatpush1.bf16.msra.mxu0 0
          %852 = vmatprep.subr.bf16.mxu0 0
          %853 = vmatpush1.bf16.msra.mxu0 0
          %854 = vmatprep.subr.bf16.mxu0 0
          %855 = vmatpush1.bf16.msra.mxu0 0
          %856 = vmatprep.subr.bf16.mxu0 0
          %857 = vmatpush1.bf16.msra.mxu0 0
          %858 = vmatprep.subr.bf16.mxu0 0
          %859 = vmatpush1.bf16.msra.mxu0 0
          %860 = vmatprep.subr.bf16.mxu0 0
          %861 = vmatpush1.bf16.msra.mxu0 0
          %862 = vmatprep.subr.bf16.mxu0 0
          %863 = vmatpush1.bf16.msra.mxu0 0
          %864 = vmatprep.subr.bf16.mxu0 0
          %865 = vmatpush1.bf16.msra.mxu0 0
          %866 = vmatprep.subr.bf16.mxu0 0
          %867 = vmatpush1.bf16.msra.mxu0 0
          %868 = vmatprep.subr.bf16.mxu0 0
          %869 = vmatpush1.bf16.msra.mxu0 0
          %870 = vmatprep.subr.bf16.mxu0 0
          %871 = vmatpush1.bf16.msra.mxu0 0
          %872 = vmatprep.subr.bf16.mxu0 0
          %873 = vmatpush1.bf16.msra.mxu0 0
          %874 = vmatprep.subr.bf16.mxu0 0
          %875 = vmatpush1.bf16.msra.mxu0 0
          %876 = vmatprep.mubr.bf16.mxu0 0
          %877 = vmatmul.mubr.bf16.gmra.mrb[0].mxu0 %v644
          %v878 = vpop.f32.mrb[0].mxu0
          %v879 = vadd.f32 %v830, %v878
          %v880 = vpop.f32.mrb[0].mxu0
          %v881 = vpop.f32.mrb[0].mxu0
          %v882 = vpop.f32.mrb[0].mxu0
          %883 = vdwg.mxu0
          %v884 = vpack.c.bf16 %v814, %v814
          %s885 = scalar_lea.vmem [#allocation2], 4
          %886 = vst.msk [vmem:[%s885] sm:$0xf] %vm750, %v884
          %v887 = vpack.c.bf16 %v879, %v879
          %s888 = scalar_lea.vmem [#allocation3], 4
          %889 = vst.msk [vmem:[%s888] sm:$0xf] %vm750, %v887
          %s890 = scalar_lea.vmem %s4, 32
          %v891 = vld [vmem:[%s890] sm:$0xf]
          %v892 = vld [vmem:[%s890 + $0x4] sm:$0xf]
          %v893 = vld [vmem:[%s890 + $0x8] sm:$0xf]
          %v894 = vld [vmem:[%s890 + $0xc] sm:$0xf]
          %s895 = scalar_lea.vmem %s5, 2
          %v896 = vld [vmem:[%s895] sm:$0x1]
          %v898 = vlaneseq
          %v899 = vshrl.u32 %v898, 7
          %v900 = vsub.s32 0, %v899
          %v901 = vrot.slane %v896, %v900
          %v907 = vunpack.c.l.b16 %v891
          %v908 = vunpack.c.l.b16 %v892
          %v909 = vunpack.c.l.b16 %v893
          %v910 = vunpack.c.l.b16 %v894
          %v911 = vpack.c.b16 %v908, %v907
          %v912 = vpack.c.b16 %v910, %v909
          %915 = vmatprep.subr.bf16.mxu0 0
          %916 = vmatpush1.bf16.msra.mxu0 %v911
          %917 = vmatprep.subr.bf16.mxu0 0
          %918 = vmatpush1.bf16.msra.mxu0 %v912
          %919 = vmatprep.subr.bf16.mxu0 0
          %920 = vmatpush1.bf16.msra.mxu0 0
          %921 = vmatprep.subr.bf16.mxu0 0
          %922 = vmatpush1.bf16.msra.mxu0 0
          %923 = vmatprep.subr.bf16.mxu0 0
          %924 = vmatpush1.bf16.msra.mxu0 0
          %925 = vmatprep.subr.bf16.mxu0 0
          %926 = vmatpush1.bf16.msra.mxu0 0
          %927 = vmatprep.subr.bf16.mxu0 0
          %928 = vmatpush1.bf16.msra.mxu0 0
          %929 = vmatprep.subr.bf16.mxu0 0
          %930 = vmatpush1.bf16.msra.mxu0 0
          %931 = vmatprep.subr.bf16.mxu0 0
          %932 = vmatpush1.bf16.msra.mxu0 0
          %933 = vmatprep.subr.bf16.mxu0 0
          %934 = vmatpush1.bf16.msra.mxu0 0
          %935 = vmatprep.subr.bf16.mxu0 0
          %936 = vmatpush1.bf16.msra.mxu0 0
          %937 = vmatprep.subr.bf16.mxu0 0
          %938 = vmatpush1.bf16.msra.mxu0 0
          %939 = vmatprep.subr.bf16.mxu0 0
          %940 = vmatpush1.bf16.msra.mxu0 0
          %941 = vmatprep.subr.bf16.mxu0 0
          %942 = vmatpush1.bf16.msra.mxu0 0
          %943 = vmatprep.subr.bf16.mxu0 0
          %944 = vmatpush1.bf16.msra.mxu0 0
          %945 = vmatprep.subr.bf16.mxu0 0
          %946 = vmatpush1.bf16.msra.mxu0 0
          %947 = vmatprep.mubr.bf16.mxu0 0
          %948 = vmatmul.mubr.bf16.gmra.mrb[0].mxu0 %v644
          %v949 = vpop.f32.mrb[0].mxu0
          %v950 = vadd.f32 %v901, %v949
          %v951 = vpop.f32.mrb[0].mxu0
          %v952 = vpop.f32.mrb[0].mxu0
          %v953 = vpop.f32.mrb[0].mxu0
          %954 = vdwg.mxu0
          %s955 = scalar_lea.vmem %s6, 32
          %v956 = vld [vmem:[%s955] sm:$0xf]
          %v957 = vld [vmem:[%s955 + $0x4] sm:$0xf]
          %v958 = vld [vmem:[%s955 + $0x8] sm:$0xf]
          %v959 = vld [vmem:[%s955 + $0xc] sm:$0xf]
          %s960 = scalar_lea.vmem %s7, 2
          %v961 = vld [vmem:[%s960] sm:$0x1]
          %v963 = vlaneseq
          %v964 = vshrl.u32 %v963, 7
          %v965 = vsub.s32 0, %v964
          %v966 = vrot.slane %v961, %v965
          %v972 = vunpack.c.l.b16 %v956
          %v973 = vunpack.c.l.b16 %v957
          %v974 = vunpack.c.l.b16 %v958
          %v975 = vunpack.c.l.b16 %v959
          %v976 = vpack.c.b16 %v973, %v972
          %v977 = vpack.c.b16 %v975, %v974
          %980 = vmatprep.subr.bf16.mxu0 0
          %981 = vmatpush1.bf16.msra.mxu0 %v976
          %982 = vmatprep.subr.bf16.mxu0 0
          %983 = vmatpush1.bf16.msra.mxu0 %v977
          %984 = vmatprep.subr.bf16.mxu0 0
          %985 = vmatpush1.bf16.msra.mxu0 0
          %986 = vmatprep.subr.bf16.mxu0 0
          %987 = vmatpush1.bf16.msra.mxu0 0
          %988 = vmatprep.subr.bf16.mxu0 0
          %989 = vmatpush1.bf16.msra.mxu0 0
          %990 = vmatprep.subr.bf16.mxu0 0
          %991 = vmatpush1.bf16.msra.mxu0 0
          %992 = vmatprep.subr.bf16.mxu0 0
          %993 = vmatpush1.bf16.msra.mxu0 0
          %994 = vmatprep.subr.bf16.mxu0 0
          %995 = vmatpush1.bf16.msra.mxu0 0
          %996 = vmatprep.subr.bf16.mxu0 0
          %997 = vmatpush1.bf16.msra.mxu0 0
          %998 = vmatprep.subr.bf16.mxu0 0
          %999 = vmatpush1.bf16.msra.mxu0 0
          %1000 = vmatprep.subr.bf16.mxu0 0
          %1001 = vmatpush1.bf16.msra.mxu0 0
          %1002 = vmatprep.subr.bf16.mxu0 0
          %1003 = vmatpush1.bf16.msra.mxu0 0
          %1004 = vmatprep.subr.bf16.mxu0 0
          %1005 = vmatpush1.bf16.msra.mxu0 0
          %1006 = vmatprep.subr.bf16.mxu0 0
          %1007 = vmatpush1.bf16.msra.mxu0 0
          %1008 = vmatprep.subr.bf16.mxu0 0
          %1009 = vmatpush1.bf16.msra.mxu0 0
          %1010 = vmatprep.subr.bf16.mxu0 0
          %1011 = vmatpush1.bf16.msra.mxu0 0
          %1012 = vmatprep.mubr.bf16.mxu0 0
          %1013 = vmatmul.mubr.bf16.gmra.mrb[0].mxu0 %v644
          %v1014 = vpop.f32.mrb[0].mxu0
          %v1015 = vadd.f32 %v966, %v1014
          %v1016 = vpop.f32.mrb[0].mxu0
          %v1017 = vpop.f32.mrb[0].mxu0
          %v1018 = vpop.f32.mrb[0].mxu0
          %1019 = vdwg.mxu0
          %v1020 = vpack.c.bf16 %v950, %v950
          %s1021 = scalar_lea.vmem [#allocation2], 8
          %1022 = vst.msk [vmem:[%s1021] sm:$0xf] %vm750, %v1020
          %v1023 = vpack.c.bf16 %v1015, %v1015
          %s1024 = scalar_lea.vmem [#allocation3], 8
          %1025 = vst.msk [vmem:[%s1024] sm:$0xf] %vm750, %v1023
          %s1026 = scalar_lea.vmem %s4, 48
          %v1027 = vld [vmem:[%s1026] sm:$0xf]
          %v1028 = vld [vmem:[%s1026 + $0x4] sm:$0xf]
          %v1029 = vld [vmem:[%s1026 + $0x8] sm:$0xf]
          %v1030 = vld [vmem:[%s1026 + $0xc] sm:$0xf]
          %s1031 = scalar_lea.vmem %s5, 3
          %v1032 = vld [vmem:[%s1031] sm:$0x1]
          %v1034 = vlaneseq
          %v1035 = vshrl.u32 %v1034, 7
          %v1036 = vsub.s32 0, %v1035
          %v1037 = vrot.slane %v1032, %v1036
          %v1043 = vunpack.c.l.b16 %v1027
          %v1044 = vunpack.c.l.b16 %v1028
          %v1045 = vunpack.c.l.b16 %v1029
          %v1046 = vunpack.c.l.b16 %v1030
          %v1047 = vpack.c.b16 %v1044, %v1043
          %v1048 = vpack.c.b16 %v1046, %v1045
          %1051 = vmatprep.subr.bf16.mxu0 0
          %1052 = vmatpush1.bf16.msra.mxu0 %v1047
          %1053 = vmatprep.subr.bf16.mxu0 0
          %1054 = vmatpush1.bf16.msra.mxu0 %v1048
          %1055 = vmatprep.subr.bf16.mxu0 0
          %1056 = vmatpush1.bf16.msra.mxu0 0
          %1057 = vmatprep.subr.bf16.mxu0 0
          %1058 = vmatpush1.bf16.msra.mxu0 0
          %1059 = vmatprep.subr.bf16.mxu0 0
          %1060 = vmatpush1.bf16.msra.mxu0 0
          %1061 = vmatprep.subr.bf16.mxu0 0
          %1062 = vmatpush1.bf16.msra.mxu0 0
          %1063 = vmatprep.subr.bf16.mxu0 0
          %1064 = vmatpush1.bf16.msra.mxu0 0
          %1065 = vmatprep.subr.bf16.mxu0 0
          %1066 = vmatpush1.bf16.msra.mxu0 0
          %1067 = vmatprep.subr.bf16.mxu0 0
          %1068 = vmatpush1.bf16.msra.mxu0 0
          %1069 = vmatprep.subr.bf16.mxu0 0
          %1070 = vmatpush1.bf16.msra.mxu0 0
          %1071 = vmatprep.subr.bf16.mxu0 0
          %1072 = vmatpush1.bf16.msra.mxu0 0
          %1073 = vmatprep.subr.bf16.mxu0 0
          %1074 = vmatpush1.bf16.msra.mxu0 0
          %1075 = vmatprep.subr.bf16.mxu0 0
          %1076 = vmatpush1.bf16.msra.mxu0 0
          %1077 = vmatprep.subr.bf16.mxu0 0
          %1078 = vmatpush1.bf16.msra.mxu0 0
          %1079 = vmatprep.subr.bf16.mxu0 0
          %1080 = vmatpush1.bf16.msra.mxu0 0
          %1081 = vmatprep.subr.bf16.mxu0 0
          %1082 = vmatpush1.bf16.msra.mxu0 0
          %1083 = vmatprep.mubr.bf16.mxu0 0
          %1084 = vmatmul.mubr.bf16.gmra.mrb[0].mxu0 %v644
          %v1085 = vpop.f32.mrb[0].mxu0
          %v1086 = vadd.f32 %v1037, %v1085
          %v1087 = vpop.f32.mrb[0].mxu0
          %v1088 = vpop.f32.mrb[0].mxu0
          %v1089 = vpop.f32.mrb[0].mxu0
          %1090 = vdwg.mxu0
          %s1091 = scalar_lea.vmem %s6, 48
          %v1092 = vld [vmem:[%s1091] sm:$0xf]
          %v1093 = vld [vmem:[%s1091 + $0x4] sm:$0xf]
          %v1094 = vld [vmem:[%s1091 + $0x8] sm:$0xf]
          %v1095 = vld [vmem:[%s1091 + $0xc] sm:$0xf]
          %s1096 = scalar_lea.vmem %s7, 3
          %v1097 = vld [vmem:[%s1096] sm:$0x1]
          %v1099 = vlaneseq
          %v1100 = vshrl.u32 %v1099, 7
          %v1101 = vsub.s32 0, %v1100
          %v1102 = vrot.slane %v1097, %v1101
          %v1108 = vunpack.c.l.b16 %v1092
          %v1109 = vunpack.c.l.b16 %v1093
          %v1110 = vunpack.c.l.b16 %v1094
          %v1111 = vunpack.c.l.b16 %v1095
          %v1112 = vpack.c.b16 %v1109, %v1108
          %v1113 = vpack.c.b16 %v1111, %v1110
          %1116 = vmatprep.subr.bf16.mxu0 0
          %1117 = vmatpush1.bf16.msra.mxu0 %v1112
          %1118 = vmatprep.subr.bf16.mxu0 0
          %1119 = vmatpush1.bf16.msra.mxu0 %v1113
          %1120 = vmatprep.subr.bf16.mxu0 0
          %1121 = vmatpush1.bf16.msra.mxu0 0
          %1122 = vmatprep.subr.bf16.mxu0 0
          %1123 = vmatpush1.bf16.msra.mxu0 0
          %1124 = vmatprep.subr.bf16.mxu0 0
          %1125 = vmatpush1.bf16.msra.mxu0 0
          %1126 = vmatprep.subr.bf16.mxu0 0
          %1127 = vmatpush1.bf16.msra.mxu0 0
          %1128 = vmatprep.subr.bf16.mxu0 0
          %1129 = vmatpush1.bf16.msra.mxu0 0
          %1130 = vmatprep.subr.bf16.mxu0 0
          %1131 = vmatpush1.bf16.msra.mxu0 0
          %1132 = vmatprep.subr.bf16.mxu0 0
          %1133 = vmatpush1.bf16.msra.mxu0 0
          %1134 = vmatprep.subr.bf16.mxu0 0
          %1135 = vmatpush1.bf16.msra.mxu0 0
          %1136 = vmatprep.subr.bf16.mxu0 0
          %1137 = vmatpush1.bf16.msra.mxu0 0
          %1138 = vmatprep.subr.bf16.mxu0 0
          %1139 = vmatpush1.bf16.msra.mxu0 0
          %1140 = vmatprep.subr.bf16.mxu0 0
          %1141 = vmatpush1.bf16.msra.mxu0 0
          %1142 = vmatprep.subr.bf16.mxu0 0
          %1143 = vmatpush1.bf16.msra.mxu0 0
          %1144 = vmatprep.subr.bf16.mxu0 0
          %1145 = vmatpush1.bf16.msra.mxu0 0
          %1146 = vmatprep.subr.bf16.mxu0 0
          %1147 = vmatpush1.bf16.msra.mxu0 0
          %1148 = vmatprep.mubr.bf16.mxu0 0
          %1149 = vmatmul.mubr.bf16.gmra.mrb[0].mxu0 %v644
          %v1150 = vpop.f32.mrb[0].mxu0
          %v1151 = vadd.f32 %v1102, %v1150
          %v1152 = vpop.f32.mrb[0].mxu0
          %v1153 = vpop.f32.mrb[0].mxu0
          %v1154 = vpop.f32.mrb[0].mxu0
          %1155 = vdwg.mxu0
          %v1156 = vpack.c.bf16 %v1086, %v1086
          %s1157 = scalar_lea.vmem [#allocation2], 12
          %1158 = vst.msk [vmem:[%s1157] sm:$0xf] %vm750, %v1156
          %v1159 = vpack.c.bf16 %v1151, %v1151
          %s1160 = scalar_lea.vmem [#allocation3], 12
          %1161 = vst.msk [vmem:[%s1160] sm:$0xf] %vm750, %v1159
        $region96: #{tpu_custom_call.1} parent=91 // pred_fallthru
          _
        %s1162 = smul.u32 %s37, 8
        %s1163 = sshra.s32 %s1162, 3
        %s1164 = sand.u32 %s1162, 7
        %s1165 = smul.addr %s1163, 4
        %s1166 = scalar_lea.vmem %s605, %s1165
        %v1167 = vld [vmem:[%s1166] sm:$0xf]
        %v1168 = vld [vmem:[%s2] sm:$0xf]
        %v1169 = vld [vmem:[%s2 + $0x4] sm:$0xf]
        %v1170 = vld [vmem:[%s2 + $0x8] sm:$0xf]
        %v1171 = vld [vmem:[%s2 + $0xc] sm:$0xf]
        %v1172 = vld [vmem:[%s3] sm:$0x1]
        %v1174 = vlaneseq
        %v1175 = vshrl.u32 %v1174, 7
        %v1176 = vsub.s32 0, %v1175
        %v1177 = vrot.slane %v1172, %v1176
        %v1183 = vunpack.c.l.b16 %v1168
        %v1184 = vunpack.c.l.b16 %v1169
        %v1185 = vunpack.c.l.b16 %v1170
        %v1186 = vunpack.c.l.b16 %v1171
        %v1187 = vpack.c.b16 %v1184, %v1183
        %v1188 = vpack.c.b16 %v1186, %v1185
        %vm1191 = vcmask 261120
        %v1193 = vsel %vm1191, %v1167, 0
        %1195 = vmatprep.subr.bf16.mxu0 0
        %1196 = vmatpush1.bf16.msra.mxu0 %v1187
        %1197 = vmatprep.subr.bf16.mxu0 0
        %1198 = vmatpush1.bf16.msra.mxu0 %v1188
        %1199 = vmatprep.subr.bf16.mxu0 0
        %1200 = vmatpush1.bf16.msra.mxu0 0
        %1201 = vmatprep.subr.bf16.mxu0 0
        %1202 = vmatpush1.bf16.msra.mxu0 0
        %1203 = vmatprep.subr.bf16.mxu0 0
        %1204 = vmatpush1.bf16.msra.mxu0 0
        %1205 = vmatprep.subr.bf16.mxu0 0
        %1206 = vmatpush1.bf16.msra.mxu0 0
        %1207 = vmatprep.subr.bf16.mxu0 0
        %1208 = vmatpush1.bf16.msra.mxu0 0
        %1209 = vmatprep.subr.bf16.mxu0 0
        %1210 = vmatpush1.bf16.msra.mxu0 0
        %1211 = vmatprep.subr.bf16.mxu0 0
        %1212 = vmatpush1.bf16.msra.mxu0 0
        %1213 = vmatprep.subr.bf16.mxu0 0
        %1214 = vmatpush1.bf16.msra.mxu0 0
        %1215 = vmatprep.subr.bf16.mxu0 0
        %1216 = vmatpush1.bf16.msra.mxu0 0
        %1217 = vmatprep.subr.bf16.mxu0 0
        %1218 = vmatpush1.bf16.msra.mxu0 0
        %1219 = vmatprep.subr.bf16.mxu0 0
        %1220 = vmatpush1.bf16.msra.mxu0 0
        %1221 = vmatprep.subr.bf16.mxu0 0
        %1222 = vmatpush1.bf16.msra.mxu0 0
        %1223 = vmatprep.subr.bf16.mxu0 0
        %1224 = vmatpush1.bf16.msra.mxu0 0
        %1225 = vmatprep.subr.bf16.mxu0 0
        %1226 = vmatpush1.bf16.msra.mxu0 0
        %1227 = vmatprep.mubr.bf16.mxu0 0
        %1228 = vmatmul.mubr.bf16.gmra.mrb[0].mxu0 %v1193
        %v1229 = vpop.f32.mrb[0].mxu0
        %v1230 = vadd.f32 %v1177, %v1229
        %v1231 = vpop.f32.mrb[0].mxu0
        %v1232 = vpop.f32.mrb[0].mxu0
        %v1233 = vpop.f32.mrb[0].mxu0
        %1234 = vdwg.mxu0
        %v1235 = vmul.f32 %v1230, 0.35355338
        %v1236 = vpack.c.bf16 %v1235, %v1235
        %vm1237 = vcmask 60416
        %1238 = vst.msk [vmem:[#allocation4] sm:$0xf] %vm1237, %v1236
        %s1239 = scalar_lea.vmem %s2, 16
        %v1240 = vld [vmem:[%s1239] sm:$0xf]
        %v1241 = vld [vmem:[%s1239 + $0x4] sm:$0xf]
        %v1242 = vld [vmem:[%s1239 + $0x8] sm:$0xf]
        %v1243 = vld [vmem:[%s1239 + $0xc] sm:$0xf]
        %s1244 = scalar_lea.vmem %s3, 1
        %v1245 = vld [vmem:[%s1244] sm:$0x1]
        %v1247 = vlaneseq
        %v1248 = vshrl.u32 %v1247, 7
        %v1249 = vsub.s32 0, %v1248
        %v1250 = vrot.slane %v1245, %v1249
        %v1256 = vunpack.c.l.b16 %v1240
        %v1257 = vunpack.c.l.b16 %v1241
        %v1258 = vunpack.c.l.b16 %v1242
        %v1259 = vunpack.c.l.b16 %v1243
        %v1260 = vpack.c.b16 %v1257, %v1256
        %v1261 = vpack.c.b16 %v1259, %v1258
        %1264 = vmatprep.subr.bf16.mxu0 0
        %1265 = vmatpush1.bf16.msra.mxu0 %v1260
        %1266 = vmatprep.subr.bf16.mxu0 0
        %1267 = vmatpush1.bf16.msra.mxu0 %v1261
        %1268 = vmatprep.subr.bf16.mxu0 0
        %1269 = vmatpush1.bf16.msra.mxu0 0
        %1270 = vmatprep.subr.bf16.mxu0 0
        %1271 = vmatpush1.bf16.msra.mxu0 0
        %1272 = vmatprep.subr.bf16.mxu0 0
        %1273 = vmatpush1.bf16.msra.mxu0 0
        %1274 = vmatprep.subr.bf16.mxu0 0
        %1275 = vmatpush1.bf16.msra.mxu0 0
        %1276 = vmatprep.subr.bf16.mxu0 0
        %1277 = vmatpush1.bf16.msra.mxu0 0
        %1278 = vmatprep.subr.bf16.mxu0 0
        %1279 = vmatpush1.bf16.msra.mxu0 0
        %1280 = vmatprep.subr.bf16.mxu0 0
        %1281 = vmatpush1.bf16.msra.mxu0 0
        %1282 = vmatprep.subr.bf16.mxu0 0
        %1283 = vmatpush1.bf16.msra.mxu0 0
        %1284 = vmatprep.subr.bf16.mxu0 0
        %1285 = vmatpush1.bf16.msra.mxu0 0
        %1286 = vmatprep.subr.bf16.mxu0 0
        %1287 = vmatpush1.bf16.msra.mxu0 0
        %1288 = vmatprep.subr.bf16.mxu0 0
        %1289 = vmatpush1.bf16.msra.mxu0 0
        %1290 = vmatprep.subr.bf16.mxu0 0
        %1291 = vmatpush1.bf16.msra.mxu0 0
        %1292 = vmatprep.subr.bf16.mxu0 0
        %1293 = vmatpush1.bf16.msra.mxu0 0
        %1294 = vmatprep.subr.bf16.mxu0 0
        %1295 = vmatpush1.bf16.msra.mxu0 0
        %1296 = vmatprep.mubr.bf16.mxu0 0
        %1297 = vmatmul.mubr.bf16.gmra.mrb[0].mxu0 %v1193
        %v1298 = vpop.f32.mrb[0].mxu0
        %v1299 = vadd.f32 %v1250, %v1298
        %v1300 = vpop.f32.mrb[0].mxu0
        %v1301 = vpop.f32.mrb[0].mxu0
        %v1302 = vpop.f32.mrb[0].mxu0
        %1303 = vdwg.mxu0
        %v1304 = vmul.f32 %v1299, 0.35355338
        %v1305 = vpack.c.bf16 %v1304, %v1304
        %s1306 = scalar_lea.vmem [#allocation4], 4
        %1307 = vst.msk [vmem:[%s1306] sm:$0xf] %vm1237, %v1305
        %s1308 = scalar_lea.vmem %s2, 32
        %v1309 = vld [vmem:[%s1308] sm:$0xf]
        %v1310 = vld [vmem:[%s1308 + $0x4] sm:$0xf]
        %v1311 = vld [vmem:[%s1308 + $0x8] sm:$0xf]
        %v1312 = vld [vmem:[%s1308 + $0xc] sm:$0xf]
        %s1313 = scalar_lea.vmem %s3, 2
        %v1314 = vld [vmem:[%s1313] sm:$0x1]
        %v1316 = vlaneseq
        %v1317 = vshrl.u32 %v1316, 7
        %v1318 = vsub.s32 0, %v1317
        %v1319 = vrot.slane %v1314, %v1318
        %v1325 = vunpack.c.l.b16 %v1309
        %v1326 = vunpack.c.l.b16 %v1310
        %v1327 = vunpack.c.l.b16 %v1311
        %v1328 = vunpack.c.l.b16 %v1312
        %v1329 = vpack.c.b16 %v1326, %v1325
        %v1330 = vpack.c.b16 %v1328, %v1327
        %1333 = vmatprep.subr.bf16.mxu0 0
        %1334 = vmatpush1.bf16.msra.mxu0 %v1329
        %1335 = vmatprep.subr.bf16.mxu0 0
        %1336 = vmatpush1.bf16.msra.mxu0 %v1330
        %1337 = vmatprep.subr.bf16.mxu0 0
        %1338 = vmatpush1.bf16.msra.mxu0 0
        %1339 = vmatprep.subr.bf16.mxu0 0
        %1340 = vmatpush1.bf16.msra.mxu0 0
        %1341 = vmatprep.subr.bf16.mxu0 0
        %1342 = vmatpush1.bf16.msra.mxu0 0
        %1343 = vmatprep.subr.bf16.mxu0 0
        %1344 = vmatpush1.bf16.msra.mxu0 0
        %1345 = vmatprep.subr.bf16.mxu0 0
        %1346 = vmatpush1.bf16.msra.mxu0 0
        %1347 = vmatprep.subr.bf16.mxu0 0
        %1348 = vmatpush1.bf16.msra.mxu0 0
        %1349 = vmatprep.subr.bf16.mxu0 0
        %1350 = vmatpush1.bf16.msra.mxu0 0
        %1351 = vmatprep.subr.bf16.mxu0 0
        %1352 = vmatpush1.bf16.msra.mxu0 0
        %1353 = vmatprep.subr.bf16.mxu0 0
        %1354 = vmatpush1.bf16.msra.mxu0 0
        %1355 = vmatprep.subr.bf16.mxu0 0
        %1356 = vmatpush1.bf16.msra.mxu0 0
        %1357 = vmatprep.subr.bf16.mxu0 0
        %1358 = vmatpush1.bf16.msra.mxu0 0
        %1359 = vmatprep.subr.bf16.mxu0 0
        %1360 = vmatpush1.bf16.msra.mxu0 0
        %1361 = vmatprep.subr.bf16.mxu0 0
        %1362 = vmatpush1.bf16.msra.mxu0 0
        %1363 = vmatprep.subr.bf16.mxu0 0
        %1364 = vmatpush1.bf16.msra.mxu0 0
        %1365 = vmatprep.mubr.bf16.mxu0 0
        %1366 = vmatmul.mubr.bf16.gmra.mrb[0].mxu0 %v1193
        %v1367 = vpop.f32.mrb[0].mxu0
        %v1368 = vadd.f32 %v1319, %v1367
        %v1369 = vpop.f32.mrb[0].mxu0
        %v1370 = vpop.f32.mrb[0].mxu0
        %v1371 = vpop.f32.mrb[0].mxu0
        %1372 = vdwg.mxu0
        %v1373 = vmul.f32 %v1368, 0.35355338
        %v1374 = vpack.c.bf16 %v1373, %v1373
        %s1375 = scalar_lea.vmem [#allocation4], 8
        %1376 = vst.msk [vmem:[%s1375] sm:$0xf] %vm1237, %v1374
        %s1377 = scalar_lea.vmem %s2, 48
        %v1378 = vld [vmem:[%s1377] sm:$0xf]
        %v1379 = vld [vmem:[%s1377 + $0x4] sm:$0xf]
        %v1380 = vld [vmem:[%s1377 + $0x8] sm:$0xf]
        %v1381 = vld [vmem:[%s1377 + $0xc] sm:$0xf]
        %s1382 = scalar_lea.vmem %s3, 3
        %v1383 = vld [vmem:[%s1382] sm:$0x1]
        %v1385 = vlaneseq
        %v1386 = vshrl.u32 %v1385, 7
        %v1387 = vsub.s32 0, %v1386
        %v1388 = vrot.slane %v1383, %v1387
        %v1394 = vunpack.c.l.b16 %v1378
        %v1395 = vunpack.c.l.b16 %v1379
        %v1396 = vunpack.c.l.b16 %v1380
        %v1397 = vunpack.c.l.b16 %v1381
        %v1398 = vpack.c.b16 %v1395, %v1394
        %v1399 = vpack.c.b16 %v1397, %v1396
        %1402 = vmatprep.subr.bf16.mxu0 0
        %1403 = vmatpush1.bf16.msra.mxu0 %v1398
        %1404 = vmatprep.subr.bf16.mxu0 0
        %1405 = vmatpush1.bf16.msra.mxu0 %v1399
        %1406 = vmatprep.subr.bf16.mxu0 0
        %1407 = vmatpush1.bf16.msra.mxu0 0
        %1408 = vmatprep.subr.bf16.mxu0 0
        %1409 = vmatpush1.bf16.msra.mxu0 0
        %1410 = vmatprep.subr.bf16.mxu0 0
        %1411 = vmatpush1.bf16.msra.mxu0 0
        %1412 = vmatprep.subr.bf16.mxu0 0
        %1413 = vmatpush1.bf16.msra.mxu0 0
        %1414 = vmatprep.subr.bf16.mxu0 0
        %1415 = vmatpush1.bf16.msra.mxu0 0
        %1416 = vmatprep.subr.bf16.mxu0 0
        %1417 = vmatpush1.bf16.msra.mxu0 0
        %1418 = vmatprep.subr.bf16.mxu0 0
        %1419 = vmatpush1.bf16.msra.mxu0 0
        %1420 = vmatprep.subr.bf16.mxu0 0
        %1421 = vmatpush1.bf16.msra.mxu0 0
        %1422 = vmatprep.subr.bf16.mxu0 0
        %1423 = vmatpush1.bf16.msra.mxu0 0
        %1424 = vmatprep.subr.bf16.mxu0 0
        %1425 = vmatpush1.bf16.msra.mxu0 0
        %1426 = vmatprep.subr.bf16.mxu0 0
        %1427 = vmatpush1.bf16.msra.mxu0 0
        %1428 = vmatprep.subr.bf16.mxu0 0
        %1429 = vmatpush1.bf16.msra.mxu0 0
        %1430 = vmatprep.subr.bf16.mxu0 0
        %1431 = vmatpush1.bf16.msra.mxu0 0
        %1432 = vmatprep.subr.bf16.mxu0 0
        %1433 = vmatpush1.bf16.msra.mxu0 0
        %1434 = vmatprep.mubr.bf16.mxu0 0
        %1435 = vmatmul.mubr.bf16.gmra.mrb[0].mxu0 %v1193
        %v1436 = vpop.f32.mrb[0].mxu0
        %v1437 = vadd.f32 %v1388, %v1436
        %v1438 = vpop.f32.mrb[0].mxu0
        %v1439 = vpop.f32.mrb[0].mxu0
        %v1440 = vpop.f32.mrb[0].mxu0
        %1441 = vdwg.mxu0
        %v1442 = vmul.f32 %v1437, 0.35355338
        %v1443 = vpack.c.bf16 %v1442, %v1442
        %s1444 = scalar_lea.vmem [#allocation4], 12
        %1445 = vst.msk [vmem:[%s1444] sm:$0xf] %vm1237, %v1443
        %v1446 = vld [vmem:[#allocation4] sm:$0xf]
        %v1447 = vld [vmem:[#allocation4 + $0x4] sm:$0xf]
        %v1448 = vld [vmem:[#allocation4 + $0x8] sm:$0xf]
        %v1449 = vld [vmem:[#allocation4 + $0xc] sm:$0xf]
        %v1450 = vld [vmem:[#allocation2] sm:$0xf]
        %v1451 = vld [vmem:[#allocation2 + $0x4] sm:$0xf]
        %v1452 = vld [vmem:[#allocation2 + $0x8] sm:$0xf]
        %v1453 = vld [vmem:[#allocation2 + $0xc] sm:$0xf]
        %v1454 = vld [vmem:[#allocation3] sm:$0xf]
        %v1455 = vld [vmem:[#allocation3 + $0x4] sm:$0xf]
        %v1456 = vld [vmem:[#allocation3 + $0x8] sm:$0xf]
        %v1457 = vld [vmem:[#allocation3 + $0xc] sm:$0xf]
        %vm1458 = vcmask 64512
        %v1460 = vsel %vm1458, %v1446, 0
        %v1463 = vsel %vm1458, %v1450, 0
        %1465 = vmatprep.subr.bf16.mxu0 0
        %1466 = vmatpush1.bf16.xpose.msra.mxu0 %v1463
        %1467 = vmatprep.subr.bf16.mxu0 0
        %1468 = vmatpush1.bf16.xpose.msra.mxu0 0
        %1469 = vmatprep.subr.bf16.mxu0 0
        %1470 = vmatpush1.bf16.xpose.msra.mxu0 0
        %1471 = vmatprep.subr.bf16.mxu0 0
        %1472 = vmatpush1.bf16.xpose.msra.mxu0 0
        %1473 = vmatprep.subr.bf16.mxu0 0
        %1474 = vmatpush1.bf16.xpose.msra.mxu0 0
        %1475 = vmatprep.subr.bf16.mxu0 0
        %1476 = vmatpush1.bf16.xpose.msra.mxu0 0
        %1477 = vmatprep.subr.bf16.mxu0 0
        %1478 = vmatpush1.bf16.xpose.msra.mxu0 0
        %1479 = vmatprep.subr.bf16.mxu0 0
        %1480 = vmatpush1.bf16.xpose.msra.mxu0 0
        %1481 = vmatprep.subr.bf16.mxu0 0
        %1482 = vmatpush1.bf16.xpose.msra.mxu0 0
        %1483 = vmatprep.subr.bf16.mxu0 0
        %1484 = vmatpush1.bf16.xpose.msra.mxu0 0
        %1485 = vmatprep.subr.bf16.mxu0 0
        %1486 = vmatpush1.bf16.xpose.msra.mxu0 0
        %1487 = vmatprep.subr.bf16.mxu0 0
        %1488 = vmatpush1.bf16.xpose.msra.mxu0 0
        %1489 = vmatprep.subr.bf16.mxu0 0
        %1490 = vmatpush1.bf16.xpose.msra.mxu0 0
        %1491 = vmatprep.subr.bf16.mxu0 0
        %1492 = vmatpush1.bf16.xpose.msra.mxu0 0
        %1493 = vmatprep.subr.bf16.mxu0 0
        %1494 = vmatpush1.bf16.xpose.msra.mxu0 0
        %1495 = vmatprep.subr.bf16.mxu0 0
        %1496 = vmatpush1.bf16.xpose.msra.mxu0 0
        %1497 = vmatprep.mubr.bf16.mxu0 0
        %1498 = vmatmul.mubr.bf16.gmra.mrb[0].mxu0 %v1460
        %v1499 = vpop.f32.mrb[0].mxu0
        %v1500 = vadd.f32 0.0, %v1499
        %v1501 = vpop.f32.mrb[0].mxu0
        %v1502 = vpop.f32.mrb[0].mxu0
        %v1503 = vpop.f32.mrb[0].mxu0
        %1504 = vdwg.mxu0
        %v1506 = vsel %vm1458, %v1447, 0
        %v1509 = vsel %vm1458, %v1451, 0
        %1511 = vmatprep.subr.bf16.mxu0 0
        %1512 = vmatpush1.bf16.xpose.msra.mxu0 %v1509
        %1513 = vmatprep.subr.bf16.mxu0 0
        %1514 = vmatpush1.bf16.xpose.msra.mxu0 0
        %1515 = vmatprep.subr.bf16.mxu0 0
        %1516 = vmatpush1.bf16.xpose.msra.mxu0 0
        %1517 = vmatprep.subr.bf16.mxu0 0
        %1518 = vmatpush1.bf16.xpose.msra.mxu0 0
        %1519 = vmatprep.subr.bf16.mxu0 0
        %1520 = vmatpush1.bf16.xpose.msra.mxu0 0
        %1521 = vmatprep.subr.bf16.mxu0 0
        %1522 = vmatpush1.bf16.xpose.msra.mxu0 0
        %1523 = vmatprep.subr.bf16.mxu0 0
        %1524 = vmatpush1.bf16.xpose.msra.mxu0 0
        %1525 = vmatprep.subr.bf16.mxu0 0
        %1526 = vmatpush1.bf16.xpose.msra.mxu0 0
        %1527 = vmatprep.subr.bf16.mxu0 0
        %1528 = vmatpush1.bf16.xpose.msra.mxu0 0
        %1529 = vmatprep.subr.bf16.mxu0 0
        %1530 = vmatpush1.bf16.xpose.msra.mxu0 0
        %1531 = vmatprep.subr.bf16.mxu0 0
        %1532 = vmatpush1.bf16.xpose.msra.mxu0 0
        %1533 = vmatprep.subr.bf16.mxu0 0
        %1534 = vmatpush1.bf16.xpose.msra.mxu0 0
        %1535 = vmatprep.subr.bf16.mxu0 0
        %1536 = vmatpush1.bf16.xpose.msra.mxu0 0
        %1537 = vmatprep.subr.bf16.mxu0 0
        %1538 = vmatpush1.bf16.xpose.msra.mxu0 0
        %1539 = vmatprep.subr.bf16.mxu0 0
        %1540 = vmatpush1.bf16.xpose.msra.mxu0 0
        %1541 = vmatprep.subr.bf16.mxu0 0
        %1542 = vmatpush1.bf16.xpose.msra.mxu0 0
        %1543 = vmatprep.mubr.bf16.mxu0 0
        %1544 = vmatmul.mubr.bf16.gmra.mrb[0].mxu0 %v1506
        %v1545 = vpop.f32.mrb[0].mxu0
        %v1546 = vadd.f32 0.0, %v1545
        %v1547 = vpop.f32.mrb[0].mxu0
        %v1548 = vpop.f32.mrb[0].mxu0
        %v1549 = vpop.f32.mrb[0].mxu0
        %1550 = vdwg.mxu0
        %v1552 = vsel %vm1458, %v1448, 0
        %v1555 = vsel %vm1458, %v1452, 0
        %1557 = vmatprep.subr.bf16.mxu0 0
        %1558 = vmatpush1.bf16.xpose.msra.mxu0 %v1555
        %1559 = vmatprep.subr.bf16.mxu0 0
        %1560 = vmatpush1.bf16.xpose.msra.mxu0 0
        %1561 = vmatprep.subr.bf16.mxu0 0
        %1562 = vmatpush1.bf16.xpose.msra.mxu0 0
        %1563 = vmatprep.subr.bf16.mxu0 0
        %1564 = vmatpush1.bf16.xpose.msra.mxu0 0
        %1565 = vmatprep.subr.bf16.mxu0 0
        %1566 = vmatpush1.bf16.xpose.msra.mxu0 0
        %1567 = vmatprep.subr.bf16.mxu0 0
        %1568 = vmatpush1.bf16.xpose.msra.mxu0 0
        %1569 = vmatprep.subr.bf16.mxu0 0
        %1570 = vmatpush1.bf16.xpose.msra.mxu0 0
        %1571 = vmatprep.subr.bf16.mxu0 0
        %1572 = vmatpush1.bf16.xpose.msra.mxu0 0
        %1573 = vmatprep.subr.bf16.mxu0 0
        %1574 = vmatpush1.bf16.xpose.msra.mxu0 0
        %1575 = vmatprep.subr.bf16.mxu0 0
        %1576 = vmatpush1.bf16.xpose.msra.mxu0 0
        %1577 = vmatprep.subr.bf16.mxu0 0
        %1578 = vmatpush1.bf16.xpose.msra.mxu0 0
        %1579 = vmatprep.subr.bf16.mxu0 0
        %1580 = vmatpush1.bf16.xpose.msra.mxu0 0
        %1581 = vmatprep.subr.bf16.mxu0 0
        %1582 = vmatpush1.bf16.xpose.msra.mxu0 0
        %1583 = vmatprep.subr.bf16.mxu0 0
        %1584 = vmatpush1.bf16.xpose.msra.mxu0 0
        %1585 = vmatprep.subr.bf16.mxu0 0
        %1586 = vmatpush1.bf16.xpose.msra.mxu0 0
        %1587 = vmatprep.subr.bf16.mxu0 0
        %1588 = vmatpush1.bf16.xpose.msra.mxu0 0
        %1589 = vmatprep.mubr.bf16.mxu0 0
        %1590 = vmatmul.mubr.bf16.gmra.mrb[0].mxu0 %v1552
        %v1591 = vpop.f32.mrb[0].mxu0
        %v1592 = vadd.f32 0.0, %v1591
        %v1593 = vpop.f32.mrb[0].mxu0
        %v1594 = vpop.f32.mrb[0].mxu0
        %v1595 = vpop.f32.mrb[0].mxu0
        %1596 = vdwg.mxu0
        %v1598 = vsel %vm1458, %v1449, 0
        %v1601 = vsel %vm1458, %v1453, 0
        %1603 = vmatprep.subr.bf16.mxu0 0
        %1604 = vmatpush1.bf16.xpose.msra.mxu0 %v1601
        %1605 = vmatprep.subr.bf16.mxu0 0
        %1606 = vmatpush1.bf16.xpose.msra.mxu0 0
        %1607 = vmatprep.subr.bf16.mxu0 0
        %1608 = vmatpush1.bf16.xpose.msra.mxu0 0
        %1609 = vmatprep.subr.bf16.mxu0 0
        %1610 = vmatpush1.bf16.xpose.msra.mxu0 0
        %1611 = vmatprep.subr.bf16.mxu0 0
        %1612 = vmatpush1.bf16.xpose.msra.mxu0 0
        %1613 = vmatprep.subr.bf16.mxu0 0
        %1614 = vmatpush1.bf16.xpose.msra.mxu0 0
        %1615 = vmatprep.subr.bf16.mxu0 0
        %1616 = vmatpush1.bf16.xpose.msra.mxu0 0
        %1617 = vmatprep.subr.bf16.mxu0 0
        %1618 = vmatpush1.bf16.xpose.msra.mxu0 0
        %1619 = vmatprep.subr.bf16.mxu0 0
        %1620 = vmatpush1.bf16.xpose.msra.mxu0 0
        %1621 = vmatprep.subr.bf16.mxu0 0
        %1622 = vmatpush1.bf16.xpose.msra.mxu0 0
        %1623 = vmatprep.subr.bf16.mxu0 0
        %1624 = vmatpush1.bf16.xpose.msra.mxu0 0
        %1625 = vmatprep.subr.bf16.mxu0 0
        %1626 = vmatpush1.bf16.xpose.msra.mxu0 0
        %1627 = vmatprep.subr.bf16.mxu0 0
        %1628 = vmatpush1.bf16.xpose.msra.mxu0 0
        %1629 = vmatprep.subr.bf16.mxu0 0
        %1630 = vmatpush1.bf16.xpose.msra.mxu0 0
        %1631 = vmatprep.subr.bf16.mxu0 0
        %1632 = vmatpush1.bf16.xpose.msra.mxu0 0
        %1633 = vmatprep.subr.bf16.mxu0 0
        %1634 = vmatpush1.bf16.xpose.msra.mxu0 0
        %1635 = vmatprep.mubr.bf16.mxu0 0
        %1636 = vmatmul.mubr.bf16.gmra.mrb[0].mxu0 %v1598
        %v1637 = vpop.f32.mrb[0].mxu0
        %v1638 = vadd.f32 0.0, %v1637
        %v1639 = vpop.f32.mrb[0].mxu0
        %v1640 = vpop.f32.mrb[0].mxu0
        %v1641 = vpop.f32.mrb[0].mxu0
        %1642 = vdwg.mxu0
        %v1643 = vsel %vm1458, %v1500, -inf
        %1644 = vmax.xlane.f32.xlu0 %v1643
        %v1645 = vpop.xlane.xlu0 %1644
        %v1646 = vsel %vm1458, %v1546, -inf
        %1647 = vmax.xlane.f32.xlu0 %v1646
        %v1648 = vpop.xlane.xlu0 %1647
        %v1649 = vsel %vm1458, %v1592, -inf
        %1650 = vmax.xlane.f32.xlu0 %v1649
        %v1651 = vpop.xlane.xlu0 %1650
        %v1652 = vsel %vm1458, %v1638, -inf
        %1653 = vmax.xlane.f32.xlu0 %v1652
        %v1654 = vpop.xlane.xlu0 %1653
        %v1655 = vsub.f32 %v1500, %v1645
        %v1656 = vsub.f32 %v1546, %v1648
        %v1657 = vsub.f32 %v1592, %v1651
        %v1658 = vsub.f32 %v1638, %v1654
        %v1659 = vmul.f32 %v1655, 1.442695
        %v1660 = vpow.pop %v1659
        %v1661 = vmul.f32 %v1656, 1.442695
        %v1662 = vpow.pop %v1661
        %v1663 = vmul.f32 %v1657, 1.442695
        %v1664 = vpow.pop %v1663
        %v1665 = vmul.f32 %v1658, 1.442695
        %v1666 = vpow.pop %v1665
        %v1667 = vsel %vm1458, %v1660, 0.0
        %1668 = vadd.xlane.f32.xlu0 %v1667
        %v1669 = vpop.xlane.xlu0 %1668
        %v1670 = vsel %vm1458, %v1662, 0.0
        %1671 = vadd.xlane.f32.xlu0 %v1670
        %v1672 = vpop.xlane.xlu0 %1671
        %v1673 = vsel %vm1458, %v1664, 0.0
        %1674 = vadd.xlane.f32.xlu0 %v1673
        %v1675 = vpop.xlane.xlu0 %1674
        %v1676 = vsel %vm1458, %v1666, 0.0
        %1677 = vadd.xlane.f32.xlu0 %v1676
        %v1678 = vpop.xlane.xlu0 %1677
        %v1679 = vpack.c.bf16 %v1660, %v1660
        %v1680 = vpack.c.bf16 %v1662, %v1662
        %v1681 = vpack.c.bf16 %v1664, %v1664
        %v1682 = vpack.c.bf16 %v1666, %v1666
        %v1684 = vsel %vm1458, %v1679, 0
        %vm1686 = vcmask 1043456
        %v1688 = vsel %vm1686, %v1454, 0
        %1690 = vmatprep.subr.bf16.mxu0 0
        %1691 = vmatpush1.bf16.msra.mxu0 %v1688
        %1692 = vmatprep.subr.bf16.mxu0 0
        %1693 = vmatpush1.bf16.msra.mxu0 0
        %1694 = vmatprep.subr.bf16.mxu0 0
        %1695 = vmatpush1.bf16.msra.mxu0 0
        %1696 = vmatprep.subr.bf16.mxu0 0
        %1697 = vmatpush1.bf16.msra.mxu0 0
        %1698 = vmatprep.subr.bf16.mxu0 0
        %1699 = vmatpush1.bf16.msra.mxu0 0
        %1700 = vmatprep.subr.bf16.mxu0 0
        %1701 = vmatpush1.bf16.msra.mxu0 0
        %1702 = vmatprep.subr.bf16.mxu0 0
        %1703 = vmatpush1.bf16.msra.mxu0 0
        %1704 = vmatprep.subr.bf16.mxu0 0
        %1705 = vmatpush1.bf16.msra.mxu0 0
        %1706 = vmatprep.subr.bf16.mxu0 0
        %1707 = vmatpush1.bf16.msra.mxu0 0
        %1708 = vmatprep.subr.bf16.mxu0 0
        %1709 = vmatpush1.bf16.msra.mxu0 0
        %1710 = vmatprep.subr.bf16.mxu0 0
        %1711 = vmatpush1.bf16.msra.mxu0 0
        %1712 = vmatprep.subr.bf16.mxu0 0
        %1713 = vmatpush1.bf16.msra.mxu0 0
        %1714 = vmatprep.subr.bf16.mxu0 0
        %1715 = vmatpush1.bf16.msra.mxu0 0
        %1716 = vmatprep.subr.bf16.mxu0 0
        %1717 = vmatpush1.bf16.msra.mxu0 0
        %1718 = vmatprep.subr.bf16.mxu0 0
        %1719 = vmatpush1.bf16.msra.mxu0 0
        %1720 = vmatprep.subr.bf16.mxu0 0
        %1721 = vmatpush1.bf16.msra.mxu0 0
        %1722 = vmatprep.mubr.bf16.mxu0 0
        %1723 = vmatmul.mubr.bf16.gmra.mrb[0].mxu0 %v1684
        %v1724 = vpop.f32.mrb[0].mxu0
        %v1725 = vadd.f32 0.0, %v1724
        %v1726 = vpop.f32.mrb[0].mxu0
        %v1727 = vpop.f32.mrb[0].mxu0
        %v1728 = vpop.f32.mrb[0].mxu0
        %1729 = vdwg.mxu0
        %v1731 = vsel %vm1458, %v1680, 0
        %v1734 = vsel %vm1686, %v1455, 0
        %1736 = vmatprep.subr.bf16.mxu0 0
        %1737 = vmatpush1.bf16.msra.mxu0 %v1734
        %1738 = vmatprep.subr.bf16.mxu0 0
        %1739 = vmatpush1.bf16.msra.mxu0 0
        %1740 = vmatprep.subr.bf16.mxu0 0
        %1741 = vmatpush1.bf16.msra.mxu0 0
        %1742 = vmatprep.subr.bf16.mxu0 0
        %1743 = vmatpush1.bf16.msra.mxu0 0
        %1744 = vmatprep.subr.bf16.mxu0 0
        %1745 = vmatpush1.bf16.msra.mxu0 0
        %1746 = vmatprep.subr.bf16.mxu0 0
        %1747 = vmatpush1.bf16.msra.mxu0 0
        %1748 = vmatprep.subr.bf16.mxu0 0
        %1749 = vmatpush1.bf16.msra.mxu0 0
        %1750 = vmatprep.subr.bf16.mxu0 0
        %1751 = vmatpush1.bf16.msra.mxu0 0
        %1752 = vmatprep.subr.bf16.mxu0 0
        %1753 = vmatpush1.bf16.msra.mxu0 0
        %1754 = vmatprep.subr.bf16.mxu0 0
        %1755 = vmatpush1.bf16.msra.mxu0 0
        %1756 = vmatprep.subr.bf16.mxu0 0
        %1757 = vmatpush1.bf16.msra.mxu0 0
        %1758 = vmatprep.subr.bf16.mxu0 0
        %1759 = vmatpush1.bf16.msra.mxu0 0
        %1760 = vmatprep.subr.bf16.mxu0 0
        %1761 = vmatpush1.bf16.msra.mxu0 0
        %1762 = vmatprep.subr.bf16.mxu0 0
        %1763 = vmatpush1.bf16.msra.mxu0 0
        %1764 = vmatprep.subr.bf16.mxu0 0
        %1765 = vmatpush1.bf16.msra.mxu0 0
        %1766 = vmatprep.subr.bf16.mxu0 0
        %1767 = vmatpush1.bf16.msra.mxu0 0
        %1768 = vmatprep.mubr.bf16.mxu0 0
        %1769 = vmatmul.mubr.bf16.gmra.mrb[0].mxu0 %v1731
        %v1770 = vpop.f32.mrb[0].mxu0
        %v1771 = vadd.f32 0.0, %v1770
        %v1772 = vpop.f32.mrb[0].mxu0
        %v1773 = vpop.f32.mrb[0].mxu0
        %v1774 = vpop.f32.mrb[0].mxu0
        %1775 = vdwg.mxu0
        %v1777 = vsel %vm1458, %v1681, 0
        %v1780 = vsel %vm1686, %v1456, 0
        %1782 = vmatprep.subr.bf16.mxu0 0
        %1783 = vmatpush1.bf16.msra.mxu0 %v1780
        %1784 = vmatprep.subr.bf16.mxu0 0
        %1785 = vmatpush1.bf16.msra.mxu0 0
        %1786 = vmatprep.subr.bf16.mxu0 0
        %1787 = vmatpush1.bf16.msra.mxu0 0
        %1788 = vmatprep.subr.bf16.mxu0 0
        %1789 = vmatpush1.bf16.msra.mxu0 0
        %1790 = vmatprep.subr.bf16.mxu0 0
        %1791 = vmatpush1.bf16.msra.mxu0 0
        %1792 = vmatprep.subr.bf16.mxu0 0
        %1793 = vmatpush1.bf16.msra.mxu0 0
        %1794 = vmatprep.subr.bf16.mxu0 0
        %1795 = vmatpush1.bf16.msra.mxu0 0
        %1796 = vmatprep.subr.bf16.mxu0 0
        %1797 = vmatpush1.bf16.msra.mxu0 0
        %1798 = vmatprep.subr.bf16.mxu0 0
        %1799 = vmatpush1.bf16.msra.mxu0 0
        %1800 = vmatprep.subr.bf16.mxu0 0
        %1801 = vmatpush1.bf16.msra.mxu0 0
        %1802 = vmatprep.subr.bf16.mxu0 0
        %1803 = vmatpush1.bf16.msra.mxu0 0
        %1804 = vmatprep.subr.bf16.mxu0 0
        %1805 = vmatpush1.bf16.msra.mxu0 0
        %1806 = vmatprep.subr.bf16.mxu0 0
        %1807 = vmatpush1.bf16.msra.mxu0 0
        %1808 = vmatprep.subr.bf16.mxu0 0
        %1809 = vmatpush1.bf16.msra.mxu0 0
        %1810 = vmatprep.subr.bf16.mxu0 0
        %1811 = vmatpush1.bf16.msra.mxu0 0
        %1812 = vmatprep.subr.bf16.mxu0 0
        %1813 = vmatpush1.bf16.msra.mxu0 0
        %1814 = vmatprep.mubr.bf16.mxu0 0
        %1815 = vmatmul.mubr.bf16.gmra.mrb[0].mxu0 %v1777
        %v1816 = vpop.f32.mrb[0].mxu0
        %v1817 = vadd.f32 0.0, %v1816
        %v1818 = vpop.f32.mrb[0].mxu0
        %v1819 = vpop.f32.mrb[0].mxu0
        %v1820 = vpop.f32.mrb[0].mxu0
        %1821 = vdwg.mxu0
        %v1823 = vsel %vm1458, %v1682, 0
        %v1826 = vsel %vm1686, %v1457, 0
        %1828 = vmatprep.subr.bf16.mxu0 0
        %1829 = vmatpush1.bf16.msra.mxu0 %v1826
        %1830 = vmatprep.subr.bf16.mxu0 0
        %1831 = vmatpush1.bf16.msra.mxu0 0
        %1832 = vmatprep.subr.bf16.mxu0 0
        %1833 = vmatpush1.bf16.msra.mxu0 0
        %1834 = vmatprep.subr.bf16.mxu0 0
        %1835 = vmatpush1.bf16.msra.mxu0 0
        %1836 = vmatprep.subr.bf16.mxu0 0
        %1837 = vmatpush1.bf16.msra.mxu0 0
        %1838 = vmatprep.subr.bf16.mxu0 0
        %1839 = vmatpush1.bf16.msra.mxu0 0
        %1840 = vmatprep.subr.bf16.mxu0 0
        %1841 = vmatpush1.bf16.msra.mxu0 0
        %1842 = vmatprep.subr.bf16.mxu0 0
        %1843 = vmatpush1.bf16.msra.mxu0 0
        %1844 = vmatprep.subr.bf16.mxu0 0
        %1845 = vmatpush1.bf16.msra.mxu0 0
        %1846 = vmatprep.subr.bf16.mxu0 0
        %1847 = vmatpush1.bf16.msra.mxu0 0
        %1848 = vmatprep.subr.bf16.mxu0 0
        %1849 = vmatpush1.bf16.msra.mxu0 0
        %1850 = vmatprep.subr.bf16.mxu0 0
        %1851 = vmatpush1.bf16.msra.mxu0 0
        %1852 = vmatprep.subr.bf16.mxu0 0
        %1853 = vmatpush1.bf16.msra.mxu0 0
        %1854 = vmatprep.subr.bf16.mxu0 0
        %1855 = vmatpush1.bf16.msra.mxu0 0
        %1856 = vmatprep.subr.bf16.mxu0 0
        %1857 = vmatpush1.bf16.msra.mxu0 0
        %1858 = vmatprep.subr.bf16.mxu0 0
        %1859 = vmatpush1.bf16.msra.mxu0 0
        %1860 = vmatprep.mubr.bf16.mxu0 0
        %1861 = vmatmul.mubr.bf16.gmra.mrb[0].mxu0 %v1823
        %v1862 = vpop.f32.mrb[0].mxu0
        %v1863 = vadd.f32 0.0, %v1862
        %v1864 = vpop.f32.mrb[0].mxu0
        %v1865 = vpop.f32.mrb[0].mxu0
        %v1866 = vpop.f32.mrb[0].mxu0
        %1867 = vdwg.mxu0
        %v1868 = vrcp.pop %v1669
        %v1869 = vrcp.pop %v1672
        %v1870 = vrcp.pop %v1675
        %v1871 = vrcp.pop %v1678
        %v1872 = vmul.f32 %v1725, %v1868
        %v1873 = vpack.c.bf16 %v1872, %v1872
        %1874 = vst.msk [vmem:[#allocation5] sm:$0xf] %vm1237, %v1873
        %v1875 = vmul.f32 %v1771, %v1869
        %v1876 = vpack.c.bf16 %v1875, %v1875
        %v1878 = vunpack.c.l.b16 %v1876
        %v1879 = vpack.c.b16 %v1878, %v1878
        %1880 = vrot.lane.b32.xlu0 %v1879, 8
        %v1881 = vpop.permute.xlu0 %1880
        %vm1883 = vcmask 126016
        %1884 = vst.msk [vmem:[#allocation5] sm:$0xf] %vm1883, %v1881
        %v1885 = vmul.f32 %v1817, %v1870
        %v1886 = vpack.c.bf16 %v1885, %v1885
        %v1888 = vunpack.c.l.b16 %v1886
        %v1889 = vpack.c.b16 %v1888, %v1888
        %1890 = vrot.lane.b32.xlu0 %v1889, 16
        %v1891 = vpop.permute.xlu0 %1890
        %vm1893 = vcmask 191616
        %1894 = vst.msk [vmem:[#allocation5] sm:$0xf] %vm1893, %v1891
        %v1895 = vmul.f32 %v1863, %v1871
        %v1896 = vpack.c.bf16 %v1895, %v1895
        %v1898 = vunpack.c.l.b16 %v1896
        %v1899 = vpack.c.b16 %v1898, %v1898
        %1900 = vrot.lane.b32.xlu0 %v1899, 24
        %v1901 = vpop.permute.xlu0 %1900
        %vm1903 = vcmask 257216
        %1904 = vst.msk [vmem:[#allocation5] sm:$0xf] %vm1903, %v1901
        %v1905 = vld [vmem:[#allocation5] sm:$0xf]
        %v1906 = vld [vmem:[%s8] sm:$0xf]
        %v1907 = vld [vmem:[%s8 + $0x4] sm:$0xf]
        %v1908 = vld [vmem:[%s8 + $0x8] sm:$0xf]
        %v1909 = vld [vmem:[%s8 + $0xc] sm:$0xf]
        %v1910 = vld [vmem:[%s9] sm:$0x1]
        %v1912 = vlaneseq
        %v1913 = vshrl.u32 %v1912, 7
        %v1914 = vsub.s32 0, %v1913
        %v1915 = vrot.slane %v1910, %v1914
        %v1921 = vunpack.c.l.b16 %v1906
        %v1922 = vunpack.c.l.b16 %v1907
        %v1923 = vunpack.c.l.b16 %v1908
        %v1924 = vunpack.c.l.b16 %v1909
        %v1925 = vpack.c.b16 %v1922, %v1921
        %v1926 = vpack.c.b16 %v1924, %v1923
        %v1930 = vsel %vm1191, %v1905, 0
        %1932 = vmatprep.subr.bf16.mxu0 0
        %1933 = vmatpush1.bf16.msra.mxu0 %v1925
        %1934 = vmatprep.subr.bf16.mxu0 0
        %1935 = vmatpush1.bf16.msra.mxu0 %v1926
        %1936 = vmatprep.subr.bf16.mxu0 0
        %1937 = vmatpush1.bf16.msra.mxu0 0
        %1938 = vmatprep.subr.bf16.mxu0 0
        %1939 = vmatpush1.bf16.msra.mxu0 0
        %1940 = vmatprep.subr.bf16.mxu0 0
        %1941 = vmatpush1.bf16.msra.mxu0 0
        %1942 = vmatprep.subr.bf16.mxu0 0
        %1943 = vmatpush1.bf16.msra.mxu0 0
        %1944 = vmatprep.subr.bf16.mxu0 0
        %1945 = vmatpush1.bf16.msra.mxu0 0
        %1946 = vmatprep.subr.bf16.mxu0 0
        %1947 = vmatpush1.bf16.msra.mxu0 0
        %1948 = vmatprep.subr.bf16.mxu0 0
        %1949 = vmatpush1.bf16.msra.mxu0 0
        %1950 = vmatprep.subr.bf16.mxu0 0
        %1951 = vmatpush1.bf16.msra.mxu0 0
        %1952 = vmatprep.subr.bf16.mxu0 0
        %1953 = vmatpush1.bf16.msra.mxu0 0
        %1954 = vmatprep.subr.bf16.mxu0 0
        %1955 = vmatpush1.bf16.msra.mxu0 0
        %1956 = vmatprep.subr.bf16.mxu0 0
        %1957 = vmatpush1.bf16.msra.mxu0 0
        %1958 = vmatprep.subr.bf16.mxu0 0
        %1959 = vmatpush1.bf16.msra.mxu0 0
        %1960 = vmatprep.subr.bf16.mxu0 0
        %1961 = vmatpush1.bf16.msra.mxu0 0
        %1962 = vmatprep.subr.bf16.mxu0 0
        %1963 = vmatpush1.bf16.msra.mxu0 0
        %1964 = vmatprep.mubr.bf16.mxu0 0
        %1965 = vmatmul.mubr.bf16.gmra.mrb[0].mxu0 %v1930
        %v1966 = vpop.f32.mrb[0].mxu0
        %v1967 = vadd.f32 %v1915, %v1966
        %v1968 = vpop.f32.mrb[0].mxu0
        %v1969 = vpop.f32.mrb[0].mxu0
        %v1970 = vpop.f32.mrb[0].mxu0
        %1971 = vdwg.mxu0
        %v1972 = vld [vmem:[%s612] sm:$0xff]
        %v1973 = vadd.f32 %v1967, %v1972
        %v1974 = vld [vmem:[%s10] sm:$0x1]
        %v1975 = vld [vmem:[%s11] sm:$0x1]
        %v1976 = vsel %vm1191, %v1973, 0.0
        %1977 = vadd.xlane.f32.xlu0 %v1976
        %v1978 = vpop.xlane.xlu0 %1977
        %v1979 = vrcp.pop 32.0
        %v1980 = vmul.f32 %v1978, %v1979
        %v1981 = vsub.f32 %v1973, %v1980
        %v1982 = vmul.f32 %v1981, %v1981
        %v1983 = vsel %vm1191, %v1982, 0.0
        %1984 = vadd.xlane.f32.xlu0 %v1983
        %v1985 = vpop.xlane.xlu0 %1984
        %v1986 = vmul.f32 %v1985, %v1979
        %v1987 = vadd.f32 %v1986, 1e-05
        %v1988 = vrsqrt.pop %v1987
        %v1990 = vlaneseq
        %v1991 = vshrl.u32 %v1990, 7
        %v1992 = vsub.s32 0, %v1991
        %v1993 = vrot.slane %v1974, %v1992
        %v1995 = vmul.f32 %v1993, %v1988
        %v1996 = vmul.f32 %v1981, %v1995
        %v1998 = vlaneseq
        %v1999 = vshrl.u32 %v1998, 7
        %v2000 = vsub.s32 0, %v1999
        %v2001 = vrot.slane %v1975, %v2000
        %v2003 = vadd.f32 %v1996, %v2001
        %v2004 = vpack.c.bf16 %v2003, %v2003
        %v2005 = vld [vmem:[%s12] sm:$0xf]
        %v2006 = vld [vmem:[%s12 + $0x4] sm:$0xf]
        %v2007 = vld [vmem:[%s12 + $0x8] sm:$0xf]
        %v2008 = vld [vmem:[%s12 + $0xc] sm:$0xf]
        %v2009 = vld [vmem:[%s13] sm:$0x1]
        %v2011 = vlaneseq
        %v2012 = vshrl.u32 %v2011, 7
        %v2013 = vsub.s32 0, %v2012
        %v2014 = vrot.slane %v2009, %v2013
        %v2020 = vunpack.c.l.b16 %v2005
        %v2021 = vunpack.c.l.b16 %v2006
        %v2022 = vunpack.c.l.b16 %v2007
        %v2023 = vunpack.c.l.b16 %v2008
        %v2024 = vpack.c.b16 %v2021, %v2020
        %v2025 = vpack.c.b16 %v2023, %v2022
        %v2029 = vsel %vm1191, %v2004, 0
        %2031 = vmatprep.subr.bf16.mxu0 0
        %2032 = vmatpush1.bf16.msra.mxu0 %v2024
        %2033 = vmatprep.subr.bf16.mxu0 0
        %2034 = vmatpush1.bf16.msra.mxu0 %v2025
        %2035 = vmatprep.subr.bf16.mxu0 0
        %2036 = vmatpush1.bf16.msra.mxu0 0
        %2037 = vmatprep.subr.bf16.mxu0 0
        %2038 = vmatpush1.bf16.msra.mxu0 0
        %2039 = vmatprep.subr.bf16.mxu0 0
        %2040 = vmatpush1.bf16.msra.mxu0 0
        %2041 = vmatprep.subr.bf16.mxu0 0
        %2042 = vmatpush1.bf16.msra.mxu0 0
        %2043 = vmatprep.subr.bf16.mxu0 0
        %2044 = vmatpush1.bf16.msra.mxu0 0
        %2045 = vmatprep.subr.bf16.mxu0 0
        %2046 = vmatpush1.bf16.msra.mxu0 0
        %2047 = vmatprep.subr.bf16.mxu0 0
        %2048 = vmatpush1.bf16.msra.mxu0 0
        %2049 = vmatprep.subr.bf16.mxu0 0
        %2050 = vmatpush1.bf16.msra.mxu0 0
        %2051 = vmatprep.subr.bf16.mxu0 0
        %2052 = vmatpush1.bf16.msra.mxu0 0
        %2053 = vmatprep.subr.bf16.mxu0 0
        %2054 = vmatpush1.bf16.msra.mxu0 0
        %2055 = vmatprep.subr.bf16.mxu0 0
        %2056 = vmatpush1.bf16.msra.mxu0 0
        %2057 = vmatprep.subr.bf16.mxu0 0
        %2058 = vmatpush1.bf16.msra.mxu0 0
        %2059 = vmatprep.subr.bf16.mxu0 0
        %2060 = vmatpush1.bf16.msra.mxu0 0
        %2061 = vmatprep.subr.bf16.mxu0 0
        %2062 = vmatpush1.bf16.msra.mxu0 0
        %2063 = vmatprep.mubr.bf16.mxu0 0
        %2064 = vmatmul.mubr.bf16.gmra.mrb[0].mxu0 %v2029
        %v2065 = vpop.f32.mrb[0].mxu0
        %v2066 = vadd.f32 %v2014, %v2065
        %v2067 = vpop.f32.mrb[0].mxu0
        %v2068 = vpop.f32.mrb[0].mxu0
        %v2069 = vpop.f32.mrb[0].mxu0
        %2070 = vdwg.mxu0
        %v2071 = vmax.f32 %v2066, 0.0
        %v2072 = vpack.c.bf16 %v2071, %v2071
        %v2073 = vld [vmem:[%s14] sm:$0xf]
        %v2074 = vld [vmem:[%s14 + $0x4] sm:$0xf]
        %v2075 = vld [vmem:[%s14 + $0x8] sm:$0xf]
        %v2076 = vld [vmem:[%s14 + $0xc] sm:$0xf]
        %v2077 = vld [vmem:[%s14 + $0x10] sm:$0xf]
        %v2078 = vld [vmem:[%s14 + $0x14] sm:$0xf]
        %v2079 = vld [vmem:[%s14 + $0x18] sm:$0xf]
        %v2080 = vld [vmem:[%s14 + $0x1c] sm:$0xf]
        %v2081 = vld [vmem:[%s14 + $0x20] sm:$0xf]
        %v2082 = vld [vmem:[%s14 + $0x24] sm:$0xf]
        %v2083 = vld [vmem:[%s14 + $0x28] sm:$0xf]
        %v2084 = vld [vmem:[%s14 + $0x2c] sm:$0xf]
        %v2085 = vld [vmem:[%s14 + $0x30] sm:$0xf]
        %v2086 = vld [vmem:[%s14 + $0x34] sm:$0xf]
        %v2087 = vld [vmem:[%s14 + $0x38] sm:$0xf]
        %v2088 = vld [vmem:[%s14 + $0x3c] sm:$0xf]
        %v2089 = vld [vmem:[%s15] sm:$0x1]
        %v2091 = vlaneseq
        %v2092 = vshrl.u32 %v2091, 7
        %v2093 = vsub.s32 0, %v2092
        %v2094 = vrot.slane %v2089, %v2093
        %v2112 = vunpack.c.l.b16 %v2073
        %v2113 = vunpack.c.l.b16 %v2074
        %v2114 = vunpack.c.l.b16 %v2075
        %v2115 = vunpack.c.l.b16 %v2076
        %v2116 = vunpack.c.l.b16 %v2077
        %v2117 = vunpack.c.l.b16 %v2078
        %v2118 = vunpack.c.l.b16 %v2079
        %v2119 = vunpack.c.l.b16 %v2080
        %v2120 = vunpack.c.l.b16 %v2081
        %v2121 = vunpack.c.l.b16 %v2082
        %v2122 = vunpack.c.l.b16 %v2083
        %v2123 = vunpack.c.l.b16 %v2084
        %v2124 = vunpack.c.l.b16 %v2085
        %v2125 = vunpack.c.l.b16 %v2086
        %v2126 = vunpack.c.l.b16 %v2087
        %v2127 = vunpack.c.l.b16 %v2088
        %v2128 = vpack.c.b16 %v2113, %v2112
        %v2129 = vpack.c.b16 %v2115, %v2114
        %v2130 = vpack.c.b16 %v2117, %v2116
        %v2131 = vpack.c.b16 %v2119, %v2118
        %v2132 = vpack.c.b16 %v2121, %v2120
        %v2133 = vpack.c.b16 %v2123, %v2122
        %v2134 = vpack.c.b16 %v2125, %v2124
        %v2135 = vpack.c.b16 %v2127, %v2126
        %2144 = vmatprep.subr.bf16.mxu0 0
        %2145 = vmatpush1.bf16.msra.mxu0 %v2128
        %2146 = vmatprep.subr.bf16.mxu0 0
        %2147 = vmatpush1.bf16.msra.mxu0 %v2129
        %2148 = vmatprep.subr.bf16.mxu0 0
        %2149 = vmatpush1.bf16.msra.mxu0 %v2130
        %2150 = vmatprep.subr.bf16.mxu0 0
        %2151 = vmatpush1.bf16.msra.mxu0 %v2131
        %2152 = vmatprep.subr.bf16.mxu0 0
        %2153 = vmatpush1.bf16.msra.mxu0 %v2132
        %2154 = vmatprep.subr.bf16.mxu0 0
        %2155 = vmatpush1.bf16.msra.mxu0 %v2133
        %2156 = vmatprep.subr.bf16.mxu0 0
        %2157 = vmatpush1.bf16.msra.mxu0 %v2134
        %2158 = vmatprep.subr.bf16.mxu0 0
        %2159 = vmatpush1.bf16.msra.mxu0 %v2135
        %2160 = vmatprep.subr.bf16.mxu0 0
        %2161 = vmatpush1.bf16.msra.mxu0 0
        %2162 = vmatprep.subr.bf16.mxu0 0
        %2163 = vmatpush1.bf16.msra.mxu0 0
        %2164 = vmatprep.subr.bf16.mxu0 0
        %2165 = vmatpush1.bf16.msra.mxu0 0
        %2166 = vmatprep.subr.bf16.mxu0 0
        %2167 = vmatpush1.bf16.msra.mxu0 0
        %2168 = vmatprep.subr.bf16.mxu0 0
        %2169 = vmatpush1.bf16.msra.mxu0 0
        %2170 = vmatprep.subr.bf16.mxu0 0
        %2171 = vmatpush1.bf16.msra.mxu0 0
        %2172 = vmatprep.subr.bf16.mxu0 0
        %2173 = vmatpush1.bf16.msra.mxu0 0
        %2174 = vmatprep.subr.bf16.mxu0 0
        %2175 = vmatpush1.bf16.msra.mxu0 0
        %2176 = vmatprep.mubr.bf16.mxu0 0
        %2177 = vmatmul.mubr.bf16.gmra.mrb[0].mxu0 %v2072
        %v2178 = vpop.f32.mrb[0].mxu0
        %v2179 = vadd.f32 %v2094, %v2178
        %v2180 = vpop.f32.mrb[0].mxu0
        %v2181 = vpop.f32.mrb[0].mxu0
        %v2182 = vpop.f32.mrb[0].mxu0
        %2183 = vdwg.mxu0
        %v2184 = vadd.f32 %v2179, %v2003
        %v2185 = vld [vmem:[%s16] sm:$0x1]
        %v2186 = vld [vmem:[%s17] sm:$0x1]
        %v2187 = vsel %vm1191, %v2184, 0.0
        %2188 = vadd.xlane.f32.xlu0 %v2187
        %v2189 = vpop.xlane.xlu0 %2188
        %v2190 = vmul.f32 %v2189, %v1979
        %v2191 = vsub.f32 %v2184, %v2190
        %v2192 = vmul.f32 %v2191, %v2191
        %v2193 = vsel %vm1191, %v2192, 0.0
        %2194 = vadd.xlane.f32.xlu0 %v2193
        %v2195 = vpop.xlane.xlu0 %2194
        %v2196 = vmul.f32 %v2195, %v1979
        %v2197 = vadd.f32 %v2196, 1e-05
        %v2198 = vrsqrt.pop %v2197
        %v2200 = vlaneseq
        %v2201 = vshrl.u32 %v2200, 7
        %v2202 = vsub.s32 0, %v2201
        %v2203 = vrot.slane %v2185, %v2202
        %v2205 = vmul.f32 %v2203, %v2198
        %v2206 = vmul.f32 %v2191, %v2205
        %v2208 = vlaneseq
        %v2209 = vshrl.u32 %v2208, 7
        %v2210 = vsub.s32 0, %v2209
        %v2211 = vrot.slane %v2186, %v2210
        %v2213 = vadd.f32 %v2206, %v2211
        %2214 = vst.msk [vmem:[%s601] sm:$0xff] %vm1191, %v2213
        %s2215 = sand.u32 %s444, 1
        %s2216 = scalar_lea.sflag [#allocation7], %s2215
        %s2217 = sand.u32 %s444, 1
        %s2218 = smul.addr %s2217, 8
        %s2219 = scalar_lea.vmem [#allocation6], %s2218
        // Predicated region
        $region97: #{tpu_custom_call.1} parent=91 // pred_check
          %p2220 = pneg %p454
        $region98: #{tpu_custom_call.1} parent=91 // pred_check_branch
          %2222 = sbr.rel (%p2220) target = $region100
        $region99: #{tpu_custom_call.1} parent=91 // pred_region
          %s2224 = ssub.s32 128, 128
          %2225 = vsyncadd %s2216, %s2224
          %s2226 = sadd.s32 %s37, %s36
          %s2227 = smul.addr %s2226, 128
          %s2228 = scalar_lea.hbm %s18, %s2227
          %s2230 = sshll.u32 %s2219, 4
          %s2231 = int_to_ptr.vmem [resolvable:$true] %s2230
          %2233 = dma.vmem_to_hbm [thread:$0]  %s2231, 128, %s2228, %s2216
        $region100: #{tpu_custom_call.1} parent=91 // pred_fallthru
          _
      $region92: #{tpu_custom_call.1} parent=5 // pred_fallthru
        _
      %p2234 = scmp.le.s32.totalorder 2, %s27
      // Predicated region
      $region101: #{tpu_custom_call.1} parent=5 // pred_check
        %p2235 = pneg %p2234
      $region102: #{tpu_custom_call.1} parent=5 // pred_check_branch
        %2237 = sbr.rel (%p2235) target = $region104
      $region103: #{tpu_custom_call.1} parent=5 // pred_region
        %s2238 = ssub.s32 %s27, 2
        // Predicated region
        $region105: #{tpu_custom_call.1} parent=103 // pred_check
          %p2239 = pneg %p460
        $region106: #{tpu_custom_call.1} parent=103 // pred_check_branch
          %2241 = sbr.rel (%p2239) target = $region108
        $region107: #{tpu_custom_call.1} parent=103 // pred_region
          %s2242 = sand.u32 %s445, 1
          %s2243 = scalar_lea.sflag [#allocation7], %s2242
          %s2244 = sand.u32 %s445, 1
          %s2245 = smul.addr %s2244, 8
          %s2246 = scalar_lea.vmem [#allocation6], %s2245
          %2247 = dma.done %s2243, 128
        $region108: #{tpu_custom_call.1} parent=103 // pred_fallthru
          _
      $region104: #{tpu_custom_call.1} parent=5 // pred_fallthru
        _
    $region6: #{tpu_custom_call.1} parent=1 // loop_footer
      %s31 = sadd.s32 1, %s27
    $region7: #{tpu_custom_call.1} parent=1 // loop_footer_branch
      %26 = sbr.rel target = $region3
    $region8: #{tpu_custom_call.1} parent=1 // loop_exit
      _
    %2248 = vsyncpa [#allocation7], 1
    %s2249 = scalar_lea.sflag [#allocation7], 1
    %2250 = vsyncpa %s2249, 1

</llo_original>
